<compile_context>
chip_gen: v5e
topology: v5e:2x2
jax: 0.10.0
libtpu: 0.0.40
codegen_flags: <defaults>
</compile_context>

<pallas_src>
import functools
import math

import jax
import jax.numpy as jnp
from jax.experimental import pallas as pl
from jax.experimental.pallas import tpu as pltpu

_VMEM_LIMIT = 32 * 1024 * 1024   # safe scoped-VMEM budget on v5e/v6e/v7x


def _row_tile(m, desired):
    """Row-tile size: full dim when small, else the largest 8-aligned divisor of m
    that is <= desired; if none exists, clamp to `desired` (the ragged final block
    is then handled by a pl.cdiv grid)."""
    if m <= desired:
        return m
    t = (desired // 8) * 8
    while t >= 8:
        if m % t == 0:
            return t
        t -= 8
    return (desired // 8) * 8


# ----------------------------------------------------------------------------
# Fused linear kernel:  x @ w + b  [+ ReLU]  [+ residual]  [+ LayerNorm]
# ----------------------------------------------------------------------------

def _linear_kernel(*refs, activation, has_residual, has_ln, eps):
    x_ref, w_ref, b_ref = refs[0], refs[1], refs[2]
    idx = 3
    res_ref = None
    g_ref = beta_ref = None
    if has_residual:
        res_ref = refs[idx]
        idx += 1
    if has_ln:
        g_ref, beta_ref = refs[idx], refs[idx + 1]
        idx += 2
    o_ref = refs[idx]

    out = jnp.dot(x_ref[...], w_ref[...], preferred_element_type=jnp.float32)
    out = out + b_ref[...]
    if activation == "relu":
        out = jnp.maximum(out, 0.0)
    if has_residual:
        out = out + res_ref[...].astype(jnp.float32)
    if has_ln:
        mean = jnp.mean(out, axis=-1, keepdims=True)
        var = jnp.mean(jnp.square(out - mean), axis=-1, keepdims=True)
        out = (out - mean) * jax.lax.rsqrt(var + eps) * g_ref[...] + beta_ref[...]
    o_ref[...] = out.astype(o_ref.dtype)


def linear(x, w, b, activation=None, residual=None, ln=None, eps=1e-5,
           row_tile=512):
    """(M, K) @ (K, N) + b with a fused epilogue.

    The weight stays resident in VMEM (constant index map -> DMA'd once), only M
    is tiled, so there is no K grid axis / accumulator / init-finalize overhead.
    Optional fused epilogue: ReLU, residual add, LayerNorm over the last dim
    (requires N == model dim, which holds at every fused call site)."""
    m, k = x.shape
    n = w.shape[1]
    tm = _row_tile(m, row_tile)
    grid = (pl.cdiv(m, tm),)

    in_specs = [
        pl.BlockSpec((tm, k), lambda i: (i, 0)),
        pl.BlockSpec((k, n), lambda i: (0, 0)),      # weight resident in VMEM
        pl.BlockSpec((1, n), lambda i: (0, 0)),
    ]
    args = [x, w, b.reshape(1, n)]
    if residual is not None:
        in_specs.append(pl.BlockSpec((tm, n), lambda i: (i, 0)))
        args.append(residual)
    if ln is not None:
        gamma, beta = ln
        in_specs.append(pl.BlockSpec((1, n), lambda i: (0, 0)))
        in_specs.append(pl.BlockSpec((1, n), lambda i: (0, 0)))
        args.append(gamma.reshape(1, n))
        args.append(beta.reshape(1, n))

    kernel = functools.partial(_linear_kernel, activation=activation,
                               has_residual=residual is not None,
                               has_ln=ln is not None, eps=eps)
    return pl.pallas_call(
        kernel,
        out_shape=jax.ShapeDtypeStruct((m, n), x.dtype),
        grid=grid,
        in_specs=in_specs,
        out_specs=pl.BlockSpec((tm, n), lambda i: (i, 0)),
        compiler_params=pltpu.CompilerParams(
            dimension_semantics=("parallel",),
            vmem_limit_bytes=_VMEM_LIMIT),
    )(*args)


# ----------------------------------------------------------------------------
# Attention kernel: heads handled via in-kernel lane slices (no XLA transposes)
# ----------------------------------------------------------------------------

def _attention_kernel(q_ref, k_ref, v_ref, o_ref, *, num_heads, scale):
    # q: (1, tq, D), k/v: (1, Sk, D) bf16; softmax math in f32.
    q = q_ref[0]
    q = q * jnp.asarray(scale, dtype=q.dtype)       # fold 1/sqrt(hd) into q
    k = k_ref[0]
    v = v_ref[0]
    hd = q.shape[-1] // num_heads
    outs = []
    for h in range(num_heads):                      # static unroll over heads
        lo = h * hd
        qh = q[:, lo:lo + hd]
        kh = k[:, lo:lo + hd]
        vh = v[:, lo:lo + hd]
        s = jax.lax.dot_general(qh, kh, (((1,), (1,)), ((), ())),
                                preferred_element_type=jnp.float32)   # (tq, Sk)
        s = s - jnp.max(s, axis=-1, keepdims=True)
        p = jnp.exp(s)
        p = p * pl.reciprocal(jnp.sum(p, axis=-1, keepdims=True), approx=True)
        outs.append(jnp.dot(p.astype(vh.dtype), vh,
                            preferred_element_type=jnp.float32))       # (tq, hd)
    # lane-dense single store of the merged heads
    o_ref[0] = jnp.concatenate(outs, axis=-1).astype(o_ref.dtype)


def attention(q, k, v, num_heads):
    """q: (B, Sq, D), k/v: (B, Sk, D) -> (B, Sq, D); grid (B, Sq tiles)."""
    b, sq, d = q.shape
    sk = k.shape[1]
    hd = d // num_heads
    scale = 1.0 / math.sqrt(hd)
    tq = _row_tile(sq, 256)      # bound the per-head (tq, Sk) f32 score tensor
    grid = (b, pl.cdiv(sq, tq))
    kernel = functools.partial(_attention_kernel, num_heads=num_heads, scale=scale)
    # TODO(synk): switch to online-softmax (flash) over Sk for long sequences.
    return pl.pallas_call(
        kernel,
        out_shape=jax.ShapeDtypeStruct((b, sq, d), q.dtype),
        grid=grid,
        in_specs=[
            pl.BlockSpec((1, tq, d), lambda bi, qi: (bi, qi, 0)),
            pl.BlockSpec((1, sk, d), lambda bi, qi: (bi, 0, 0)),
            pl.BlockSpec((1, sk, d), lambda bi, qi: (bi, 0, 0)),
        ],
        out_specs=pl.BlockSpec((1, tq, d), lambda bi, qi: (bi, qi, 0)),
        compiler_params=pltpu.CompilerParams(
            dimension_semantics=("parallel", "parallel"),
            vmem_limit_bytes=_VMEM_LIMIT),
    )(q, k, v)


# ----------------------------------------------------------------------------
# Model building blocks (plain-JAX glue around the Pallas kernels)
# ----------------------------------------------------------------------------

def multi_head_attention(xq, xk, xv, p, num_heads):
    """Q/K/V projections + attention; out-projection is fused at the call site
    (with residual add + LayerNorm) so it is NOT applied here."""
    b, sq, d = xq.shape
    sk = xk.shape[1]
    q = linear(xq.reshape(b * sq, d), p["wq"], p["bq"]).reshape(b, sq, d)
    k = linear(xk.reshape(b * sk, d), p["wk"], p["bk"]).reshape(b, sk, d)
    v = linear(xv.reshape(b * sk, d), p["wv"], p["bv"]).reshape(b, sk, d)
    return attention(q, k, v, num_heads)            # (B, Sq, D)


def encoder_layer(src, pos, p, num_heads):
    b, s, d = src.shape
    q = src + pos
    a = multi_head_attention(q, q, src, p["attn"], num_heads).reshape(b * s, d)
    # attention out-projection + residual add + LayerNorm fused into one kernel
    src = linear(a, p["attn"]["wo"], p["attn"]["bo"],
                 residual=src.reshape(b * s, d),
                 ln=(p["ln1_g"], p["ln1_b"])).reshape(b, s, d)
    # FFN: ReLU fused into the first matmul, residual+LN fused into the second
    h = linear(src.reshape(b * s, d), p["ffn"]["w1"], p["ffn"]["b1"],
               activation="relu")
    src = linear(h, p["ffn"]["w2"], p["ffn"]["b2"],
                 residual=src.reshape(b * s, d),
                 ln=(p["ln2_g"], p["ln2_b"])).reshape(b, s, d)
    return src


def decoder_layer(tgt, memory, pos, p, num_heads):
    b, s, d = tgt.shape
    q = tgt + pos
    a = multi_head_attention(q, q, tgt, p["self_attn"], num_heads).reshape(b * s, d)
    tgt = linear(a, p["self_attn"]["wo"], p["self_attn"]["bo"],
                 residual=tgt.reshape(b * s, d),
                 ln=(p["ln1_g"], p["ln1_b"])).reshape(b, s, d)
    qc = tgt + pos
    a = multi_head_attention(qc, memory, memory, p["cross_attn"],
                             num_heads).reshape(b * s, d)
    tgt = linear(a, p["cross_attn"]["wo"], p["cross_attn"]["bo"],
                 residual=tgt.reshape(b * s, d),
                 ln=(p["ln2_g"], p["ln2_b"])).reshape(b, s, d)
    h = linear(tgt.reshape(b * s, d), p["ffn"]["w1"], p["ffn"]["b1"],
               activation="relu")
    tgt = linear(h, p["ffn"]["w2"], p["ffn"]["b2"],
                 residual=tgt.reshape(b * s, d),
                 ln=(p["ln3_g"], p["ln3_b"])).reshape(b, s, d)
    return tgt


def sinusoid_pos_encoding(s, d):
    pos = jnp.arange(s, dtype=jnp.float32)[:, None]
    i = jnp.arange(d, dtype=jnp.float32)[None, :]
    angle = pos / jnp.power(10000.0, (2.0 * jnp.floor(i / 2.0)) / d)
    pe = jnp.where((jnp.arange(d) % 2) == 0, jnp.sin(angle), jnp.cos(angle))
    return pe.astype(jnp.float32)                                        # (S, D)


def extract_patches(img, patch):
    # img: (B, C, H, W) NCHW -> (B * num_patches, C*patch*patch)
    b, c, h, w = img.shape
    gh, gw = h // patch, w // patch
    x = img.reshape(b, c, gh, patch, gw, patch)
    x = x.transpose(0, 2, 4, 1, 3, 5)                                    # (B,gh,gw,C,p,p)
    return x.reshape(b * gh * gw, c * patch * patch), gh * gw


def encoder_forward(p, img, *, patch, num_heads):
    # Returns (features (B, S, D), pos (B, S, D)).  The torch seq-first (S, B, D)
    # round trip is elided since the decoder immediately transposes back.
    b = img.shape[0]
    patches, s = extract_patches(img, patch)
    d = p["patch_w"].shape[1]
    tokens = linear(patches.astype(jnp.bfloat16),
                    p["patch_w"], p["patch_b"]).reshape(b, s, d)         # bf16
    pos = jnp.broadcast_to(
        sinusoid_pos_encoding(s, d)[None].astype(tokens.dtype), (b, s, d))
    x = tokens
    for lyr in p["layers"]:
        x = encoder_layer(x, pos, lyr, num_heads)
    return x, pos


def decoder_forward(p, content, style, content_pos, *, num_heads):
    x = content
    for lyr in p["layers"]:
        x = decoder_layer(x, style, content_pos, lyr, num_heads)
    # TODO(synk): the original Decoder likely ends with a CNN upsampling head back
    # to image space; its architecture is not given, so the stylized token
    # sequence is returned instead.
    return x


def nst_forward(params, content_image, style_image, *, patch, num_heads):
    content, content_pos = encoder_forward(params["encoder_c"], content_image,
                                           patch=patch, num_heads=num_heads)
    style, _ = encoder_forward(params["encoder_s"], style_image,
                               patch=patch, num_heads=num_heads)
    # torch's transpose(0, 1) round trips are elided: everything stays (B, S, D).
    return decoder_forward(params["decoder"], content, style, content_pos,
                           num_heads=num_heads)


# ----------------------------------------------------------------------------
# Deterministic parameter init (matmul weights bf16, biases / LN params f32)
# ----------------------------------------------------------------------------

def _init_linear(key, din, dout):
    w = (jax.random.normal(key, (din, dout), jnp.float32) * 0.02).astype(jnp.bfloat16)
    b = jnp.zeros((dout,), jnp.float32)
    return w, b


def _init_attn(key, d):
    k1, k2, k3, k4 = jax.random.split(key, 4)
    wq, bq = _init_linear(k1, d, d)
    wk, bk = _init_linear(k2, d, d)
    wv, bv = _init_linear(k3, d, d)
    wo, bo = _init_linear(k4, d, d)
    return dict(wq=wq, bq=bq, wk=wk, bk=bk, wv=wv, bv=bv, wo=wo, bo=bo)


def _init_ffn(key, d, dff):
    k1, k2 = jax.random.split(key)
    w1, b1 = _init_linear(k1, d, dff)
    w2, b2 = _init_linear(k2, dff, d)
    return dict(w1=w1, b1=b1, w2=w2, b2=b2)


def _init_encoder_layer(key, d, dff):
    k1, k2 = jax.random.split(key)
    return dict(attn=_init_attn(k1, d), ffn=_init_ffn(k2, d, dff),
                ln1_g=jnp.ones((d,), jnp.float32), ln1_b=jnp.zeros((d,), jnp.float32),
                ln2_g=jnp.ones((d,), jnp.float32), ln2_b=jnp.zeros((d,), jnp.float32))


def _init_decoder_layer(key, d, dff):
    k1, k2, k3 = jax.random.split(key, 3)
    return dict(self_attn=_init_attn(k1, d), cross_attn=_init_attn(k2, d),
                ffn=_init_ffn(k3, d, dff),
                ln1_g=jnp.ones((d,), jnp.float32), ln1_b=jnp.zeros((d,), jnp.float32),
                ln2_g=jnp.ones((d,), jnp.float32), ln2_b=jnp.zeros((d,), jnp.float32),
                ln3_g=jnp.ones((d,), jnp.float32), ln3_b=jnp.zeros((d,), jnp.float32))


def _init_encoder(key, num_layers, c, patch, d, dff):
    keys = jax.random.split(key, num_layers + 1)
    pw, pb = _init_linear(keys[0], c * patch * patch, d)
    return dict(patch_w=pw, patch_b=pb,
                layers=[_init_encoder_layer(keys[i + 1], d, dff)
                        for i in range(num_layers)])


def init_nst(key, *, encoder_num_layers, decoder_num_layers, c, patch, d, dff):
    k1, k2, k3 = jax.random.split(key, 3)
    return dict(
        encoder_c=_init_encoder(k1, encoder_num_layers, c, patch, d, dff),
        encoder_s=_init_encoder(k2, encoder_num_layers, c, patch, d, dff),
        decoder=dict(layers=[_init_decoder_layer(k, d, dff)
                             for k in jax.random.split(k3, decoder_num_layers)]),
    )


# ----------------------------------------------------------------------------
# Demo
# ----------------------------------------------------------------------------

if __name__ == "__main__":
    # Small config: B=2, C=3, H=W=32, patch=8 -> 16 tokens, D=128 (lane-aligned),
    # 4 heads (hd=32), FFN=256.  Layer counts kept small for the demo run
    # (original defaults are 6 encoder / 3 decoder layers).
    B, C, H, W = 2, 3, 32, 32
    PATCH, D, HEADS, DFF = 8, 128, 4, 256
    ENC_LAYERS, DEC_LAYERS = 2, 2

    key = jax.random.PRNGKey(0)
    k_params, k_c, k_s = jax.random.split(key, 3)
    params = init_nst(k_params, encoder_num_layers=ENC_LAYERS,
                      decoder_num_layers=DEC_LAYERS,
                      c=C, patch=PATCH, d=D, dff=DFF)

    content_image = jax.random.normal(k_c, (B, C, H, W), jnp.float32)
    style_image = jax.random.normal(k_s, (B, C, H, W), jnp.float32)

    fwd = jax.jit(functools.partial(nst_forward, patch=PATCH, num_heads=HEADS))
    out = fwd(params, content_image, style_image)
    jax.block_until_ready(out)

    expected = (B, (H // PATCH) * (W // PATCH), D)
    assert out.shape == expected, (out.shape, expected)
    assert jnp.isfinite(out.astype(jnp.float32)).all()
    print("KERNEL_OK")
</pallas_src>

<mosaic_0001>
module attributes {stable_mosaic.version = 11 : i64} {
  func.func @_linear_kernel(%arg0: i32, %arg1: memref<32x192xbf16, #tpu.memory_space<vmem>>, %arg2: memref<192x128xbf16, #tpu.memory_space<vmem>>, %arg3: memref<1x128xf32, #tpu.memory_space<vmem>>, %arg4: memref<32x128xbf16, #tpu.memory_space<vmem>>) attributes {dimension_semantics = [#tpu.dimension_semantics<parallel>], iteration_bounds = array<i64: 1>, scalar_prefetch = 0 : i64, scratch_operands = 0 : i64, tpu.core_type = #tpu.core_type<tc>, window_params = [{transform_indices = @transform_0, window_bounds = array<i64: 32, 192>}, {pipeline_mode = #tpu.pipeline_mode<synchronous>, transform_indices = @transform_1, window_bounds = array<i64: 192, 128>}, {pipeline_mode = #tpu.pipeline_mode<synchronous>, transform_indices = @transform_2, window_bounds = array<i64: 1, 128>}, {transform_indices = @transform_3, window_bounds = array<i64: 32, 128>}]} {
    %c0 = arith.constant 0 : index
    %c0_0 = arith.constant 0 : index
    %0 = vector.load %arg1[%c0, %c0_0] : memref<32x192xbf16, #tpu.memory_space<vmem>>, vector<32x192xbf16>
    %c0_1 = arith.constant 0 : index
    %c0_2 = arith.constant 0 : index
    %1 = vector.load %arg2[%c0_1, %c0_2] : memref<192x128xbf16, #tpu.memory_space<vmem>>, vector<192x128xbf16>
    %cst = arith.constant dense<0.000000e+00> : vector<32x128xf32>
    %2 = tpu.matmul %0, %1, %cst {dimension_numbers = #tpu.dot_dimension_numbers<[1], [0], [0], [1], [0, 0, 1, 1], [], []>} : vector<32x192xbf16>, vector<192x128xbf16>, vector<32x128xf32> -> vector<32x128xf32>
    %c0_3 = arith.constant 0 : index
    %c0_4 = arith.constant 0 : index
    %3 = vector.load %arg3[%c0_3, %c0_4] : memref<1x128xf32, #tpu.memory_space<vmem>>, vector<1x128xf32>
    %4 = vector.broadcast %3 : vector<1x128xf32> to vector<32x128xf32>
    %5 = arith.addf %2, %4 : vector<32x128xf32>
    %6 = arith.truncf %5 : vector<32x128xf32> to vector<32x128xbf16>
    %c0_5 = arith.constant 0 : index
    %c0_6 = arith.constant 0 : index
    %7 = vector.load %arg4[%c0_5, %c0_6] : memref<32x128xbf16, #tpu.memory_space<vmem>>, vector<32x128xbf16>
    tpu.vector_store %arg4[%c0_5, %c0_6], %6 {strides = array<i32>} : memref<32x128xbf16, #tpu.memory_space<vmem>>, vector<32x128xbf16>,
    return
  }
  func.func @transform_0(%arg0: i32) -> (i32, i32) {
    %c0_i32 = arith.constant 0 : i32
    %c0_i32_0 = arith.constant 0 : i32
    return %arg0, %c0_i32 : i32, i32
  }
  func.func @transform_1(%arg0: i32) -> (i32, i32) {
    %c0_i32 = arith.constant 0 : i32
    %c0_i32_0 = arith.constant 0 : i32
    %c0_i32_1 = arith.constant 0 : i32
    return %c0_i32, %c0_i32_0 : i32, i32
  }
  func.func @transform_2(%arg0: i32) -> (i32, i32) {
    %c0_i32 = arith.constant 0 : i32
    %c0_i32_0 = arith.constant 0 : i32
    %c0_i32_1 = arith.constant 0 : i32
    return %c0_i32, %c0_i32_0 : i32, i32
  }
  func.func @transform_3(%arg0: i32) -> (i32, i32) {
    %c0_i32 = arith.constant 0 : i32
    %c0_i32_0 = arith.constant 0 : i32
    return %arg0, %c0_i32 : i32, i32
  }
}

module attributes {stable_mosaic.version = 11 : i64} {
  func.func @_linear_kernel(%arg0: i32, %arg1: memref<32x128xbf16, #tpu.memory_space<vmem>>, %arg2: memref<128x128xbf16, #tpu.memory_space<vmem>>, %arg3: memref<1x128xf32, #tpu.memory_space<vmem>>, %arg4: memref<32x128xbf16, #tpu.memory_space<vmem>>) attributes {dimension_semantics = [#tpu.dimension_semantics<parallel>], iteration_bounds = array<i64: 1>, scalar_prefetch = 0 : i64, scratch_operands = 0 : i64, tpu.core_type = #tpu.core_type<tc>, window_params = [{transform_indices = @transform_0, window_bounds = array<i64: 32, 128>}, {pipeline_mode = #tpu.pipeline_mode<synchronous>, transform_indices = @transform_1, window_bounds = array<i64: 128, 128>}, {pipeline_mode = #tpu.pipeline_mode<synchronous>, transform_indices = @transform_2, window_bounds = array<i64: 1, 128>}, {transform_indices = @transform_3, window_bounds = array<i64: 32, 128>}]} {
    %c0 = arith.constant 0 : index
    %c0_0 = arith.constant 0 : index
    %0 = vector.load %arg1[%c0, %c0_0] : memref<32x128xbf16, #tpu.memory_space<vmem>>, vector<32x128xbf16>
    %c0_1 = arith.constant 0 : index
    %c0_2 = arith.constant 0 : index
    %1 = vector.load %arg2[%c0_1, %c0_2] : memref<128x128xbf16, #tpu.memory_space<vmem>>, vector<128x128xbf16>
    %cst = arith.constant dense<0.000000e+00> : vector<32x128xf32>
    %2 = tpu.matmul %0, %1, %cst {dimension_numbers = #tpu.dot_dimension_numbers<[1], [0], [0], [1], [0, 0, 1, 1], [], []>} : vector<32x128xbf16>, vector<128x128xbf16>, vector<32x128xf32> -> vector<32x128xf32>
    %c0_3 = arith.constant 0 : index
    %c0_4 = arith.constant 0 : index
    %3 = vector.load %arg3[%c0_3, %c0_4] : memref<1x128xf32, #tpu.memory_space<vmem>>, vector<1x128xf32>
    %4 = vector.broadcast %3 : vector<1x128xf32> to vector<32x128xf32>
    %5 = arith.addf %2, %4 : vector<32x128xf32>
    %6 = arith.truncf %5 : vector<32x128xf32> to vector<32x128xbf16>
    %c0_5 = arith.constant 0 : index
    %c0_6 = arith.constant 0 : index
    %7 = vector.load %arg4[%c0_5, %c0_6] : memref<32x128xbf16, #tpu.memory_space<vmem>>, vector<32x128xbf16>
    tpu.vector_store %arg4[%c0_5, %c0_6], %6 {strides = array<i32>} : memref<32x128xbf16, #tpu.memory_space<vmem>>, vector<32x128xbf16>,
    return
  }
  func.func @transform_0(%arg0: i32) -> (i32, i32) {
    %c0_i32 = arith.constant 0 : i32
    %c0_i32_0 = arith.constant 0 : i32
    return %arg0, %c0_i32 : i32, i32
  }
  func.func @transform_1(%arg0: i32) -> (i32, i32) {
    %c0_i32 = arith.constant 0 : i32
    %c0_i32_0 = arith.constant 0 : i32
    %c0_i32_1 = arith.constant 0 : i32
    return %c0_i32, %c0_i32_0 : i32, i32
  }
  func.func @transform_2(%arg0: i32) -> (i32, i32) {
    %c0_i32 = arith.constant 0 : i32
    %c0_i32_0 = arith.constant 0 : i32
    %c0_i32_1 = arith.constant 0 : i32
    return %c0_i32, %c0_i32_0 : i32, i32
  }
  func.func @transform_3(%arg0: i32) -> (i32, i32) {
    %c0_i32 = arith.constant 0 : i32
    %c0_i32_0 = arith.constant 0 : i32
    return %arg0, %c0_i32 : i32, i32
  }
}

module attributes {stable_mosaic.version = 11 : i64} {
  func.func @_attention_kernel(%arg0: i32, %arg1: i32, %arg2: memref<1x16x128xbf16, #tpu.memory_space<vmem>>, %arg3: memref<1x16x128xbf16, #tpu.memory_space<vmem>>, %arg4: memref<1x16x128xbf16, #tpu.memory_space<vmem>>, %arg5: memref<1x16x128xbf16, #tpu.memory_space<vmem>>) attributes {dimension_semantics = [#tpu.dimension_semantics<parallel>, #tpu.dimension_semantics<parallel>], iteration_bounds = array<i64: 2, 1>, scalar_prefetch = 0 : i64, scratch_operands = 0 : i64, tpu.core_type = #tpu.core_type<tc>, window_params = [{transform_indices = @transform_0, window_bounds = array<i64: 1, 16, 128>}, {transform_indices = @transform_1, window_bounds = array<i64: 1, 16, 128>}, {transform_indices = @transform_2, window_bounds = array<i64: 1, 16, 128>}, {transform_indices = @transform_3, window_bounds = array<i64: 1, 16, 128>}]} {
    %c0 = arith.constant 0 : index
    %c0_0 = arith.constant 0 : index
    %c0_1 = arith.constant 0 : index
    %0 = vector.load %arg2[%c0, %c0_0, %c0_1] : memref<1x16x128xbf16, #tpu.memory_space<vmem>>, vector<1x16x128xbf16>
    %1 = vector.shape_cast %0 : vector<1x16x128xbf16> to vector<16x128xbf16>
    %cst = arith.constant 1.767580e-01 : bf16
    %2 = vector.broadcast %cst : bf16 to vector<16x128xbf16>
    %3 = arith.mulf %1, %2 : vector<16x128xbf16>
    %c0_2 = arith.constant 0 : index
    %c0_3 = arith.constant 0 : index
    %c0_4 = arith.constant 0 : index
    %4 = vector.load %arg3[%c0_2, %c0_3, %c0_4] : memref<1x16x128xbf16, #tpu.memory_space<vmem>>, vector<1x16x128xbf16>
    %5 = vector.shape_cast %4 : vector<1x16x128xbf16> to vector<16x128xbf16>
    %c0_5 = arith.constant 0 : index
    %c0_6 = arith.constant 0 : index
    %c0_7 = arith.constant 0 : index
    %6 = vector.load %arg4[%c0_5, %c0_6, %c0_7] : memref<1x16x128xbf16, #tpu.memory_space<vmem>>, vector<1x16x128xbf16>
    %7 = vector.shape_cast %6 : vector<1x16x128xbf16> to vector<16x128xbf16>
    %8 = vector.extract_strided_slice %3 {offsets = [0, 0], sizes = [16, 32], strides = [1, 1]} : vector<16x128xbf16> to vector<16x32xbf16>
    %9 = vector.extract_strided_slice %5 {offsets = [0, 0], sizes = [16, 32], strides = [1, 1]} : vector<16x128xbf16> to vector<16x32xbf16>
    %10 = vector.extract_strided_slice %7 {offsets = [0, 0], sizes = [16, 32], strides = [1, 1]} : vector<16x128xbf16> to vector<16x32xbf16>
    %cst_8 = arith.constant dense<0.000000e+00> : vector<16x16xf32>
    %11 = tpu.matmul %8, %9, %cst_8 {dimension_numbers = #tpu.dot_dimension_numbers<[1], [1], [0], [0], [0, 0, 1, 0], [], []>} : vector<16x32xbf16>, vector<16x32xbf16>, vector<16x16xf32> -> vector<16x16xf32>
    %cst_9 = arith.constant dense<0xFF800000> : vector<16xf32>
    %12 = vector.multi_reduction <maximumf>, %11, %cst_9 [1] : vector<16x16xf32> to vector<16xf32>
    %13 = vector.shape_cast %12 : vector<16xf32> to vector<16x1xf32>
    %14 = vector.broadcast %13 : vector<16x1xf32> to vector<16x16xf32>
    %15 = arith.subf %11, %14 : vector<16x16xf32>
    %16 = math.exp %15 : vector<16x16xf32>
    %cst_10 = arith.constant dense<0.000000e+00> : vector<16xf32>
    %17 = vector.multi_reduction <add>, %16, %cst_10 [1] : vector<16x16xf32> to vector<16xf32>
    %18 = vector.shape_cast %17 : vector<16xf32> to vector<16x1xf32>
    %19 = tpu.reciprocal %18 {approx = true} : vector<16x1xf32> -> vector<16x1xf32>
    %20 = vector.broadcast %19 : vector<16x1xf32> to vector<16x16xf32>
    %21 = arith.mulf %16, %20 : vector<16x16xf32>
    %22 = arith.truncf %21 : vector<16x16xf32> to vector<16x16xbf16>
    %cst_11 = arith.constant dense<0.000000e+00> : vector<16x32xf32>
    %23 = tpu.matmul %22, %10, %cst_11 {dimension_numbers = #tpu.dot_dimension_numbers<[1], [0], [0], [1], [0, 0, 1, 1], [], []>} : vector<16x16xbf16>, vector<16x32xbf16>, vector<16x32xf32> -> vector<16x32xf32>
    %24 = vector.extract_strided_slice %3 {offsets = [0, 32], sizes = [16, 32], strides = [1, 1]} : vector<16x128xbf16> to vector<16x32xbf16>
    %25 = vector.extract_strided_slice %5 {offsets = [0, 32], sizes = [16, 32], strides = [1, 1]} : vector<16x128xbf16> to vector<16x32xbf16>
    %26 = vector.extract_strided_slice %7 {offsets = [0, 32], sizes = [16, 32], strides = [1, 1]} : vector<16x128xbf16> to vector<16x32xbf16>
    %cst_12 = arith.constant dense<0.000000e+00> : vector<16x16xf32>
    %27 = tpu.matmul %24, %25, %cst_12 {dimension_numbers = #tpu.dot_dimension_numbers<[1], [1], [0], [0], [0, 0, 1, 0], [], []>} : vector<16x32xbf16>, vector<16x32xbf16>, vector<16x16xf32> -> vector<16x16xf32>
    %cst_13 = arith.constant dense<0xFF800000> : vector<16xf32>
    %28 = vector.multi_reduction <maximumf>, %27, %cst_13 [1] : vector<16x16xf32> to vector<16xf32>
    %29 = vector.shape_cast %28 : vector<16xf32> to vector<16x1xf32>
    %30 = vector.broadcast %29 : vector<16x1xf32> to vector<16x16xf32>
    %31 = arith.subf %27, %30 : vector<16x16xf32>
    %32 = math.exp %31 : vector<16x16xf32>
    %cst_14 = arith.constant dense<0.000000e+00> : vector<16xf32>
    %33 = vector.multi_reduction <add>, %32, %cst_14 [1] : vector<16x16xf32> to vector<16xf32>
    %34 = vector.shape_cast %33 : vector<16xf32> to vector<16x1xf32>
    %35 = tpu.reciprocal %34 {approx = true} : vector<16x1xf32> -> vector<16x1xf32>
    %36 = vector.broadcast %35 : vector<16x1xf32> to vector<16x16xf32>
    %37 = arith.mulf %32, %36 : vector<16x16xf32>
    %38 = arith.truncf %37 : vector<16x16xf32> to vector<16x16xbf16>
    %cst_15 = arith.constant dense<0.000000e+00> : vector<16x32xf32>
    %39 = tpu.matmul %38, %26, %cst_15 {dimension_numbers = #tpu.dot_dimension_numbers<[1], [0], [0], [1], [0, 0, 1, 1], [], []>} : vector<16x16xbf16>, vector<16x32xbf16>, vector<16x32xf32> -> vector<16x32xf32>
    %40 = vector.extract_strided_slice %3 {offsets = [0, 64], sizes = [16, 32], strides = [1, 1]} : vector<16x128xbf16> to vector<16x32xbf16>
    %41 = vector.extract_strided_slice %5 {offsets = [0, 64], sizes = [16, 32], strides = [1, 1]} : vector<16x128xbf16> to vector<16x32xbf16>
    %42 = vector.extract_strided_slice %7 {offsets = [0, 64], sizes = [16, 32], strides = [1, 1]} : vector<16x128xbf16> to vector<16x32xbf16>
    %cst_16 = arith.constant dense<0.000000e+00> : vector<16x16xf32>
    %43 = tpu.matmul %40, %41, %cst_16 {dimension_numbers = #tpu.dot_dimension_numbers<[1], [1], [0], [0], [0, 0, 1, 0], [], []>} : vector<16x32xbf16>, vector<16x32xbf16>, vector<16x16xf32> -> vector<16x16xf32>
    %cst_17 = arith.constant dense<0xFF800000> : vector<16xf32>
    %44 = vector.multi_reduction <maximumf>, %43, %cst_17 [1] : vector<16x16xf32> to vector<16xf32>
    %45 = vector.shape_cast %44 : vector<16xf32> to vector<16x1xf32>
    %46 = vector.broadcast %45 : vector<16x1xf32> to vector<16x16xf32>
    %47 = arith.subf %43, %46 : vector<16x16xf32>
    %48 = math.exp %47 : vector<16x16xf32>
    %cst_18 = arith.constant dense<0.000000e+00> : vector<16xf32>
    %49 = vector.multi_reduction <add>, %48, %cst_18 [1] : vector<16x16xf32> to vector<16xf32>
    %50 = vector.shape_cast %49 : vector<16xf32> to vector<16x1xf32>
    %51 = tpu.reciprocal %50 {approx = true} : vector<16x1xf32> -> vector<16x1xf32>
    %52 = vector.broadcast %51 : vector<16x1xf32> to vector<16x16xf32>
    %53 = arith.mulf %48, %52 : vector<16x16xf32>
    %54 = arith.truncf %53 : vector<16x16xf32> to vector<16x16xbf16>
    %cst_19 = arith.constant dense<0.000000e+00> : vector<16x32xf32>
    %55 = tpu.matmul %54, %42, %cst_19 {dimension_numbers = #tpu.dot_dimension_numbers<[1], [0], [0], [1], [0, 0, 1, 1], [], []>} : vector<16x16xbf16>, vector<16x32xbf16>, vector<16x32xf32> -> vector<16x32xf32>
    %56 = vector.extract_strided_slice %3 {offsets = [0, 96], sizes = [16, 32], strides = [1, 1]} : vector<16x128xbf16> to vector<16x32xbf16>
    %57 = vector.extract_strided_slice %5 {offsets = [0, 96], sizes = [16, 32], strides = [1, 1]} : vector<16x128xbf16> to vector<16x32xbf16>
    %58 = vector.extract_strided_slice %7 {offsets = [0, 96], sizes = [16, 32], strides = [1, 1]} : vector<16x128xbf16> to vector<16x32xbf16>
    %cst_20 = arith.constant dense<0.000000e+00> : vector<16x16xf32>
    %59 = tpu.matmul %56, %57, %cst_20 {dimension_numbers = #tpu.dot_dimension_numbers<[1], [1], [0], [0], [0, 0, 1, 0], [], []>} : vector<16x32xbf16>, vector<16x32xbf16>, vector<16x16xf32> -> vector<16x16xf32>
    %cst_21 = arith.constant dense<0xFF800000> : vector<16xf32>
    %60 = vector.multi_reduction <maximumf>, %59, %cst_21 [1] : vector<16x16xf32> to vector<16xf32>
    %61 = vector.shape_cast %60 : vector<16xf32> to vector<16x1xf32>
    %62 = vector.broadcast %61 : vector<16x1xf32> to vector<16x16xf32>
    %63 = arith.subf %59, %62 : vector<16x16xf32>
    %64 = math.exp %63 : vector<16x16xf32>
    %cst_22 = arith.constant dense<0.000000e+00> : vector<16xf32>
    %65 = vector.multi_reduction <add>, %64, %cst_22 [1] : vector<16x16xf32> to vector<16xf32>
    %66 = vector.shape_cast %65 : vector<16xf32> to vector<16x1xf32>
    %67 = tpu.reciprocal %66 {approx = true} : vector<16x1xf32> -> vector<16x1xf32>
    %68 = vector.broadcast %67 : vector<16x1xf32> to vector<16x16xf32>
    %69 = arith.mulf %64, %68 : vector<16x16xf32>
    %70 = arith.truncf %69 : vector<16x16xf32> to vector<16x16xbf16>
    %cst_23 = arith.constant dense<0.000000e+00> : vector<16x32xf32>
    %71 = tpu.matmul %70, %58, %cst_23 {dimension_numbers = #tpu.dot_dimension_numbers<[1], [0], [0], [1], [0, 0, 1, 1], [], []>} : vector<16x16xbf16>, vector<16x32xbf16>, vector<16x32xf32> -> vector<16x32xf32>
    %72 = tpu.concatenate %23, %39, %55, %71 in 1 : vector<16x32xf32>, vector<16x32xf32>, vector<16x32xf32>, vector<16x32xf32> -> vector<16x128xf32>
    %73 = arith.truncf %72 : vector<16x128xf32> to vector<16x128xbf16>
    %c0_24 = arith.constant 0 : index
    %c0_25 = arith.constant 0 : index
    %c0_26 = arith.constant 0 : index
    %74 = vector.load %arg5[%c0_24, %c0_25, %c0_26] : memref<1x16x128xbf16, #tpu.memory_space<vmem>>, vector<1x16x128xbf16>
    %75 = vector.shape_cast %74 : vector<1x16x128xbf16> to vector<16x128xbf16>
    %76 = vector.shape_cast %73 : vector<16x128xbf16> to vector<1x16x128xbf16>
    tpu.vector_store %arg5[%c0_24, %c0_25, %c0_26], %76 {strides = array<i32>} : memref<1x16x128xbf16, #tpu.memory_space<vmem>>, vector<1x16x128xbf16>,
    return
  }
  func.func @transform_0(%arg0: i32, %arg1: i32) -> (i32, i32, i32) {
    %c0_i32 = arith.constant 0 : i32
    %c0_i32_0 = arith.constant 0 : i32
    return %arg0, %arg1, %c0_i32 : i32, i32, i32
  }
  func.func @transform_1(%arg0: i32, %arg1: i32) -> (i32, i32, i32) {
    %c0_i32 = arith.constant 0 : i32
    %c0_i32_0 = arith.constant 0 : i32
    %c0_i32_1 = arith.constant 0 : i32
    return %arg0, %c0_i32, %c0_i32_0 : i32, i32, i32
  }
  func.func @transform_2(%arg0: i32, %arg1: i32) -> (i32, i32, i32) {
    %c0_i32 = arith.constant 0 : i32
    %c0_i32_0 = arith.constant 0 : i32
    %c0_i32_1 = arith.constant 0 : i32
    return %arg0, %c0_i32, %c0_i32_0 : i32, i32, i32
  }
  func.func @transform_3(%arg0: i32, %arg1: i32) -> (i32, i32, i32) {
    %c0_i32 = arith.constant 0 : i32
    %c0_i32_0 = arith.constant 0 : i32
    return %arg0, %arg1, %c0_i32 : i32, i32, i32
  }
}

module attributes {stable_mosaic.version = 11 : i64} {
  func.func @_linear_kernel(%arg0: i32, %arg1: memref<32x128xbf16, #tpu.memory_space<vmem>>, %arg2: memref<128x128xbf16, #tpu.memory_space<vmem>>, %arg3: memref<1x128xf32, #tpu.memory_space<vmem>>, %arg4: memref<32x128xbf16, #tpu.memory_space<vmem>>, %arg5: memref<1x128xf32, #tpu.memory_space<vmem>>, %arg6: memref<1x128xf32, #tpu.memory_space<vmem>>, %arg7: memref<32x128xbf16, #tpu.memory_space<vmem>>) attributes {dimension_semantics = [#tpu.dimension_semantics<parallel>], iteration_bounds = array<i64: 1>, scalar_prefetch = 0 : i64, scratch_operands = 0 : i64, tpu.core_type = #tpu.core_type<tc>, window_params = [{transform_indices = @transform_0, window_bounds = array<i64: 32, 128>}, {pipeline_mode = #tpu.pipeline_mode<synchronous>, transform_indices = @transform_1, window_bounds = array<i64: 128, 128>}, {pipeline_mode = #tpu.pipeline_mode<synchronous>, transform_indices = @transform_2, window_bounds = array<i64: 1, 128>}, {transform_indices = @transform_3, window_bounds = array<i64: 32, 128>}, {pipeline_mode = #tpu.pipeline_mode<synchronous>, transform_indices = @transform_4, window_bounds = array<i64: 1, 128>}, {pipeline_mode = #tpu.pipeline_mode<synchronous>, transform_indices = @transform_5, window_bounds = array<i64: 1, 128>}, {transform_indices = @transform_6, window_bounds = array<i64: 32, 128>}]} {
    %c0 = arith.constant 0 : index
    %c0_0 = arith.constant 0 : index
    %0 = vector.load %arg1[%c0, %c0_0] : memref<32x128xbf16, #tpu.memory_space<vmem>>, vector<32x128xbf16>
    %c0_1 = arith.constant 0 : index
    %c0_2 = arith.constant 0 : index
    %1 = vector.load %arg2[%c0_1, %c0_2] : memref<128x128xbf16, #tpu.memory_space<vmem>>, vector<128x128xbf16>
    %cst = arith.constant dense<0.000000e+00> : vector<32x128xf32>
    %2 = tpu.matmul %0, %1, %cst {dimension_numbers = #tpu.dot_dimension_numbers<[1], [0], [0], [1], [0, 0, 1, 1], [], []>} : vector<32x128xbf16>, vector<128x128xbf16>, vector<32x128xf32> -> vector<32x128xf32>
    %c0_3 = arith.constant 0 : index
    %c0_4 = arith.constant 0 : index
    %3 = vector.load %arg3[%c0_3, %c0_4] : memref<1x128xf32, #tpu.memory_space<vmem>>, vector<1x128xf32>
    %4 = vector.broadcast %3 : vector<1x128xf32> to vector<32x128xf32>
    %5 = arith.addf %2, %4 : vector<32x128xf32>
    %c0_5 = arith.constant 0 : index
    %c0_6 = arith.constant 0 : index
    %6 = vector.load %arg4[%c0_5, %c0_6] : memref<32x128xbf16, #tpu.memory_space<vmem>>, vector<32x128xbf16>
    %7 = arith.extf %6 : vector<32x128xbf16> to vector<32x128xf32>
    %8 = arith.addf %5, %7 : vector<32x128xf32>
    %cst_7 = arith.constant dense<0.000000e+00> : vector<32xf32>
    %9 = vector.multi_reduction <add>, %8, %cst_7 [1] : vector<32x128xf32> to vector<32xf32>
    %10 = vector.shape_cast %9 : vector<32xf32> to vector<32x1xf32>
    %cst_8 = arith.constant 1.280000e+02 : f32
    %11 = vector.broadcast %cst_8 : f32 to vector<32x1xf32>
    %12 = arith.divf %10, %11 : vector<32x1xf32>
    %13 = vector.broadcast %12 : vector<32x1xf32> to vector<32x128xf32>
    %14 = arith.subf %8, %13 : vector<32x128xf32>
    %15 = arith.mulf %14, %14 : vector<32x128xf32>
    %cst_9 = arith.constant dense<0.000000e+00> : vector<32xf32>
    %16 = vector.multi_reduction <add>, %15, %cst_9 [1] : vector<32x128xf32> to vector<32xf32>
    %17 = vector.shape_cast %16 : vector<32xf32> to vector<32x1xf32>
    %cst_10 = arith.constant 1.280000e+02 : f32
    %18 = vector.broadcast %cst_10 : f32 to vector<32x1xf32>
    %19 = arith.divf %17, %18 : vector<32x1xf32>
    %20 = vector.broadcast %12 : vector<32x1xf32> to vector<32x128xf32>
    %21 = arith.subf %8, %20 : vector<32x128xf32>
    %cst_11 = arith.constant 9.99999974E-6 : f32
    %22 = vector.broadcast %cst_11 : f32 to vector<32x1xf32>
    %23 = arith.addf %19, %22 : vector<32x1xf32>
    %24 = math.rsqrt %23 : vector<32x1xf32>
    %25 = vector.broadcast %24 : vector<32x1xf32> to vector<32x128xf32>
    %26 = arith.mulf %21, %25 : vector<32x128xf32>
    %c0_12 = arith.constant 0 : index
    %c0_13 = arith.constant 0 : index
    %27 = vector.load %arg5[%c0_12, %c0_13] : memref<1x128xf32, #tpu.memory_space<vmem>>, vector<1x128xf32>
    %28 = vector.broadcast %27 : vector<1x128xf32> to vector<32x128xf32>
    %29 = arith.mulf %26, %28 : vector<32x128xf32>
    %c0_14 = arith.constant 0 : index
    %c0_15 = arith.constant 0 : index
    %30 = vector.load %arg6[%c0_14, %c0_15] : memref<1x128xf32, #tpu.memory_space<vmem>>, vector<1x128xf32>
    %31 = vector.broadcast %30 : vector<1x128xf32> to vector<32x128xf32>
    %32 = arith.addf %29, %31 : vector<32x128xf32>
    %33 = arith.truncf %32 : vector<32x128xf32> to vector<32x128xbf16>
    %c0_16 = arith.constant 0 : index
    %c0_17 = arith.constant 0 : index
    %34 = vector.load %arg7[%c0_16, %c0_17] : memref<32x128xbf16, #tpu.memory_space<vmem>>, vector<32x128xbf16>
    tpu.vector_store %arg7[%c0_16, %c0_17], %33 {strides = array<i32>} : memref<32x128xbf16, #tpu.memory_space<vmem>>, vector<32x128xbf16>,
    return
  }
  func.func @transform_0(%arg0: i32) -> (i32, i32) {
    %c0_i32 = arith.constant 0 : i32
    %c0_i32_0 = arith.constant 0 : i32
    return %arg0, %c0_i32 : i32, i32
  }
  func.func @transform_1(%arg0: i32) -> (i32, i32) {
    %c0_i32 = arith.constant 0 : i32
    %c0_i32_0 = arith.constant 0 : i32
    %c0_i32_1 = arith.constant 0 : i32
    return %c0_i32, %c0_i32_0 : i32, i32
  }
  func.func @transform_2(%arg0: i32) -> (i32, i32) {
    %c0_i32 = arith.constant 0 : i32
    %c0_i32_0 = arith.constant 0 : i32
    %c0_i32_1 = arith.constant 0 : i32
    return %c0_i32, %c0_i32_0 : i32, i32
  }
  func.func @transform_3(%arg0: i32) -> (i32, i32) {
    %c0_i32 = arith.constant 0 : i32
    %c0_i32_0 = arith.constant 0 : i32
    return %arg0, %c0_i32 : i32, i32
  }
  func.func @transform_4(%arg0: i32) -> (i32, i32) {
    %c0_i32 = arith.constant 0 : i32
    %c0_i32_0 = arith.constant 0 : i32
    %c0_i32_1 = arith.constant 0 : i32
    return %c0_i32, %c0_i32_0 : i32, i32
  }
  func.func @transform_5(%arg0: i32) -> (i32, i32) {
    %c0_i32 = arith.constant 0 : i32
    %c0_i32_0 = arith.constant 0 : i32
    %c0_i32_1 = arith.constant 0 : i32
    return %c0_i32, %c0_i32_0 : i32, i32
  }
  func.func @transform_6(%arg0: i32) -> (i32, i32) {
    %c0_i32 = arith.constant 0 : i32
    %c0_i32_0 = arith.constant 0 : i32
    return %arg0, %c0_i32 : i32, i32
  }
}

module attributes {stable_mosaic.version = 11 : i64} {
  func.func @_linear_kernel(%arg0: i32, %arg1: memref<32x128xbf16, #tpu.memory_space<vmem>>, %arg2: memref<128x256xbf16, #tpu.memory_space<vmem>>, %arg3: memref<1x256xf32, #tpu.memory_space<vmem>>, %arg4: memref<32x256xbf16, #tpu.memory_space<vmem>>) attributes {dimension_semantics = [#tpu.dimension_semantics<parallel>], iteration_bounds = array<i64: 1>, scalar_prefetch = 0 : i64, scratch_operands = 0 : i64, tpu.core_type = #tpu.core_type<tc>, window_params = [{transform_indices = @transform_0, window_bounds = array<i64: 32, 128>}, {pipeline_mode = #tpu.pipeline_mode<synchronous>, transform_indices = @transform_1, window_bounds = array<i64: 128, 256>}, {pipeline_mode = #tpu.pipeline_mode<synchronous>, transform_indices = @transform_2, window_bounds = array<i64: 1, 256>}, {transform_indices = @transform_3, window_bounds = array<i64: 32, 256>}]} {
    %c0 = arith.constant 0 : index
    %c0_0 = arith.constant 0 : index
    %0 = vector.load %arg1[%c0, %c0_0] : memref<32x128xbf16, #tpu.memory_space<vmem>>, vector<32x128xbf16>
    %c0_1 = arith.constant 0 : index
    %c0_2 = arith.constant 0 : index
    %1 = vector.load %arg2[%c0_1, %c0_2] : memref<128x256xbf16, #tpu.memory_space<vmem>>, vector<128x256xbf16>
    %cst = arith.constant dense<0.000000e+00> : vector<32x256xf32>
    %2 = tpu.matmul %0, %1, %cst {dimension_numbers = #tpu.dot_dimension_numbers<[1], [0], [0], [1], [0, 0, 1, 1], [], []>} : vector<32x128xbf16>, vector<128x256xbf16>, vector<32x256xf32> -> vector<32x256xf32>
    %c0_3 = arith.constant 0 : index
    %c0_4 = arith.constant 0 : index
    %3 = vector.load %arg3[%c0_3, %c0_4] : memref<1x256xf32, #tpu.memory_space<vmem>>, vector<1x256xf32>
    %4 = vector.broadcast %3 : vector<1x256xf32> to vector<32x256xf32>
    %5 = arith.addf %2, %4 : vector<32x256xf32>
    %cst_5 = arith.constant 0.000000e+00 : f32
    %6 = vector.broadcast %cst_5 : f32 to vector<32x256xf32>
    %7 = arith.maximumf %5, %6 : vector<32x256xf32>
    %8 = arith.truncf %7 : vector<32x256xf32> to vector<32x256xbf16>
    %c0_6 = arith.constant 0 : index
    %c0_7 = arith.constant 0 : index
    %9 = vector.load %arg4[%c0_6, %c0_7] : memref<32x256xbf16, #tpu.memory_space<vmem>>, vector<32x256xbf16>
    tpu.vector_store %arg4[%c0_6, %c0_7], %8 {strides = array<i32>} : memref<32x256xbf16, #tpu.memory_space<vmem>>, vector<32x256xbf16>,
    return
  }
  func.func @transform_0(%arg0: i32) -> (i32, i32) {
    %c0_i32 = arith.constant 0 : i32
    %c0_i32_0 = arith.constant 0 : i32
    return %arg0, %c0_i32 : i32, i32
  }
  func.func @transform_1(%arg0: i32) -> (i32, i32) {
    %c0_i32 = arith.constant 0 : i32
    %c0_i32_0 = arith.constant 0 : i32
    %c0_i32_1 = arith.constant 0 : i32
    return %c0_i32, %c0_i32_0 : i32, i32
  }
  func.func @transform_2(%arg0: i32) -> (i32, i32) {
    %c0_i32 = arith.constant 0 : i32
    %c0_i32_0 = arith.constant 0 : i32
    %c0_i32_1 = arith.constant 0 : i32
    return %c0_i32, %c0_i32_0 : i32, i32
  }
  func.func @transform_3(%arg0: i32) -> (i32, i32) {
    %c0_i32 = arith.constant 0 : i32
    %c0_i32_0 = arith.constant 0 : i32
    return %arg0, %c0_i32 : i32, i32
  }
}

module attributes {stable_mosaic.version = 11 : i64} {
  func.func @_linear_kernel(%arg0: i32, %arg1: memref<32x256xbf16, #tpu.memory_space<vmem>>, %arg2: memref<256x128xbf16, #tpu.memory_space<vmem>>, %arg3: memref<1x128xf32, #tpu.memory_space<vmem>>, %arg4: memref<32x128xbf16, #tpu.memory_space<vmem>>, %arg5: memref<1x128xf32, #tpu.memory_space<vmem>>, %arg6: memref<1x128xf32, #tpu.memory_space<vmem>>, %arg7: memref<32x128xbf16, #tpu.memory_space<vmem>>) attributes {dimension_semantics = [#tpu.dimension_semantics<parallel>], iteration_bounds = array<i64: 1>, scalar_prefetch = 0 : i64, scratch_operands = 0 : i64, tpu.core_type = #tpu.core_type<tc>, window_params = [{transform_indices = @transform_0, window_bounds = array<i64: 32, 256>}, {pipeline_mode = #tpu.pipeline_mode<synchronous>, transform_indices = @transform_1, window_bounds = array<i64: 256, 128>}, {pipeline_mode = #tpu.pipeline_mode<synchronous>, transform_indices = @transform_2, window_bounds = array<i64: 1, 128>}, {transform_indices = @transform_3, window_bounds = array<i64: 32, 128>}, {pipeline_mode = #tpu.pipeline_mode<synchronous>, transform_indices = @transform_4, window_bounds = array<i64: 1, 128>}, {pipeline_mode = #tpu.pipeline_mode<synchronous>, transform_indices = @transform_5, window_bounds = array<i64: 1, 128>}, {transform_indices = @transform_6, window_bounds = array<i64: 32, 128>}]} {
    %c0 = arith.constant 0 : index
    %c0_0 = arith.constant 0 : index
    %0 = vector.load %arg1[%c0, %c0_0] : memref<32x256xbf16, #tpu.memory_space<vmem>>, vector<32x256xbf16>
    %c0_1 = arith.constant 0 : index
    %c0_2 = arith.constant 0 : index
    %1 = vector.load %arg2[%c0_1, %c0_2] : memref<256x128xbf16, #tpu.memory_space<vmem>>, vector<256x128xbf16>
    %cst = arith.constant dense<0.000000e+00> : vector<32x128xf32>
    %2 = tpu.matmul %0, %1, %cst {dimension_numbers = #tpu.dot_dimension_numbers<[1], [0], [0], [1], [0, 0, 1, 1], [], []>} : vector<32x256xbf16>, vector<256x128xbf16>, vector<32x128xf32> -> vector<32x128xf32>
    %c0_3 = arith.constant 0 : index
    %c0_4 = arith.constant 0 : index
    %3 = vector.load %arg3[%c0_3, %c0_4] : memref<1x128xf32, #tpu.memory_space<vmem>>, vector<1x128xf32>
    %4 = vector.broadcast %3 : vector<1x128xf32> to vector<32x128xf32>
    %5 = arith.addf %2, %4 : vector<32x128xf32>
    %c0_5 = arith.constant 0 : index
    %c0_6 = arith.constant 0 : index
    %6 = vector.load %arg4[%c0_5, %c0_6] : memref<32x128xbf16, #tpu.memory_space<vmem>>, vector<32x128xbf16>
    %7 = arith.extf %6 : vector<32x128xbf16> to vector<32x128xf32>
    %8 = arith.addf %5, %7 : vector<32x128xf32>
    %cst_7 = arith.constant dense<0.000000e+00> : vector<32xf32>
    %9 = vector.multi_reduction <add>, %8, %cst_7 [1] : vector<32x128xf32> to vector<32xf32>
    %10 = vector.shape_cast %9 : vector<32xf32> to vector<32x1xf32>
    %cst_8 = arith.constant 1.280000e+02 : f32
    %11 = vector.broadcast %cst_8 : f32 to vector<32x1xf32>
    %12 = arith.divf %10, %11 : vector<32x1xf32>
    %13 = vector.broadcast %12 : vector<32x1xf32> to vector<32x128xf32>
    %14 = arith.subf %8, %13 : vector<32x128xf32>
    %15 = arith.mulf %14, %14 : vector<32x128xf32>
    %cst_9 = arith.constant dense<0.000000e+00> : vector<32xf32>
    %16 = vector.multi_reduction <add>, %15, %cst_9 [1] : vector<32x128xf32> to vector<32xf32>
    %17 = vector.shape_cast %16 : vector<32xf32> to vector<32x1xf32>
    %cst_10 = arith.constant 1.280000e+02 : f32
    %18 = vector.broadcast %cst_10 : f32 to vector<32x1xf32>
    %19 = arith.divf %17, %18 : vector<32x1xf32>
    %20 = vector.broadcast %12 : vector<32x1xf32> to vector<32x128xf32>
    %21 = arith.subf %8, %20 : vector<32x128xf32>
    %cst_11 = arith.constant 9.99999974E-6 : f32
    %22 = vector.broadcast %cst_11 : f32 to vector<32x1xf32>
    %23 = arith.addf %19, %22 : vector<32x1xf32>
    %24 = math.rsqrt %23 : vector<32x1xf32>
    %25 = vector.broadcast %24 : vector<32x1xf32> to vector<32x128xf32>
    %26 = arith.mulf %21, %25 : vector<32x128xf32>
    %c0_12 = arith.constant 0 : index
    %c0_13 = arith.constant 0 : index
    %27 = vector.load %arg5[%c0_12, %c0_13] : memref<1x128xf32, #tpu.memory_space<vmem>>, vector<1x128xf32>
    %28 = vector.broadcast %27 : vector<1x128xf32> to vector<32x128xf32>
    %29 = arith.mulf %26, %28 : vector<32x128xf32>
    %c0_14 = arith.constant 0 : index
    %c0_15 = arith.constant 0 : index
    %30 = vector.load %arg6[%c0_14, %c0_15] : memref<1x128xf32, #tpu.memory_space<vmem>>, vector<1x128xf32>
    %31 = vector.broadcast %30 : vector<1x128xf32> to vector<32x128xf32>
    %32 = arith.addf %29, %31 : vector<32x128xf32>
    %33 = arith.truncf %32 : vector<32x128xf32> to vector<32x128xbf16>
    %c0_16 = arith.constant 0 : index
    %c0_17 = arith.constant 0 : index
    %34 = vector.load %arg7[%c0_16, %c0_17] : memref<32x128xbf16, #tpu.memory_space<vmem>>, vector<32x128xbf16>
    tpu.vector_store %arg7[%c0_16, %c0_17], %33 {strides = array<i32>} : memref<32x128xbf16, #tpu.memory_space<vmem>>, vector<32x128xbf16>,
    return
  }
  func.func @transform_0(%arg0: i32) -> (i32, i32) {
    %c0_i32 = arith.constant 0 : i32
    %c0_i32_0 = arith.constant 0 : i32
    return %arg0, %c0_i32 : i32, i32
  }
  func.func @transform_1(%arg0: i32) -> (i32, i32) {
    %c0_i32 = arith.constant 0 : i32
    %c0_i32_0 = arith.constant 0 : i32
    %c0_i32_1 = arith.constant 0 : i32
    return %c0_i32, %c0_i32_0 : i32, i32
  }
  func.func @transform_2(%arg0: i32) -> (i32, i32) {
    %c0_i32 = arith.constant 0 : i32
    %c0_i32_0 = arith.constant 0 : i32
    %c0_i32_1 = arith.constant 0 : i32
    return %c0_i32, %c0_i32_0 : i32, i32
  }
  func.func @transform_3(%arg0: i32) -> (i32, i32) {
    %c0_i32 = arith.constant 0 : i32
    %c0_i32_0 = arith.constant 0 : i32
    return %arg0, %c0_i32 : i32, i32
  }
  func.func @transform_4(%arg0: i32) -> (i32, i32) {
    %c0_i32 = arith.constant 0 : i32
    %c0_i32_0 = arith.constant 0 : i32
    %c0_i32_1 = arith.constant 0 : i32
    return %c0_i32, %c0_i32_0 : i32, i32
  }
  func.func @transform_5(%arg0: i32) -> (i32, i32) {
    %c0_i32 = arith.constant 0 : i32
    %c0_i32_0 = arith.constant 0 : i32
    %c0_i32_1 = arith.constant 0 : i32
    return %c0_i32, %c0_i32_0 : i32, i32
  }
  func.func @transform_6(%arg0: i32) -> (i32, i32) {
    %c0_i32 = arith.constant 0 : i32
    %c0_i32_0 = arith.constant 0 : i32
    return %arg0, %c0_i32 : i32, i32
  }
}

module attributes {stable_mosaic.version = 11 : i64} {
  func.func @_linear_kernel(%arg0: i32, %arg1: memref<32x128xbf16, #tpu.memory_space<vmem>>, %arg2: memref<128x128xbf16, #tpu.memory_space<vmem>>, %arg3: memref<1x128xf32, #tpu.memory_space<vmem>>, %arg4: memref<32x128xbf16, #tpu.memory_space<vmem>>) attributes {dimension_semantics = [#tpu.dimension_semantics<parallel>], iteration_bounds = array<i64: 1>, scalar_prefetch = 0 : i64, scratch_operands = 0 : i64, tpu.core_type = #tpu.core_type<tc>, window_params = [{transform_indices = @transform_0, window_bounds = array<i64: 32, 128>}, {pipeline_mode = #tpu.pipeline_mode<synchronous>, transform_indices = @transform_1, window_bounds = array<i64: 128, 128>}, {pipeline_mode = #tpu.pipeline_mode<synchronous>, transform_indices = @transform_2, window_bounds = array<i64: 1, 128>}, {transform_indices = @transform_3, window_bounds = array<i64: 32, 128>}]} {
    %c0 = arith.constant 0 : index
    %c0_0 = arith.constant 0 : index
    %0 = vector.load %arg1[%c0, %c0_0] : memref<32x128xbf16, #tpu.memory_space<vmem>>, vector<32x128xbf16>
    %c0_1 = arith.constant 0 : index
    %c0_2 = arith.constant 0 : index
    %1 = vector.load %arg2[%c0_1, %c0_2] : memref<128x128xbf16, #tpu.memory_space<vmem>>, vector<128x128xbf16>
    %cst = arith.constant dense<0.000000e+00> : vector<32x128xf32>
    %2 = tpu.matmul %0, %1, %cst {dimension_numbers = #tpu.dot_dimension_numbers<[1], [0], [0], [1], [0, 0, 1, 1], [], []>} : vector<32x128xbf16>, vector<128x128xbf16>, vector<32x128xf32> -> vector<32x128xf32>
    %c0_3 = arith.constant 0 : index
    %c0_4 = arith.constant 0 : index
    %3 = vector.load %arg3[%c0_3, %c0_4] : memref<1x128xf32, #tpu.memory_space<vmem>>, vector<1x128xf32>
    %4 = vector.broadcast %3 : vector<1x128xf32> to vector<32x128xf32>
    %5 = arith.addf %2, %4 : vector<32x128xf32>
    %6 = arith.truncf %5 : vector<32x128xf32> to vector<32x128xbf16>
    %c0_5 = arith.constant 0 : index
    %c0_6 = arith.constant 0 : index
    %7 = vector.load %arg4[%c0_5, %c0_6] : memref<32x128xbf16, #tpu.memory_space<vmem>>, vector<32x128xbf16>
    tpu.vector_store %arg4[%c0_5, %c0_6], %6 {strides = array<i32>} : memref<32x128xbf16, #tpu.memory_space<vmem>>, vector<32x128xbf16>,
    return
  }
  func.func @transform_0(%arg0: i32) -> (i32, i32) {
    %c0_i32 = arith.constant 0 : i32
    %c0_i32_0 = arith.constant 0 : i32
    return %arg0, %c0_i32 : i32, i32
  }
  func.func @transform_1(%arg0: i32) -> (i32, i32) {
    %c0_i32 = arith.constant 0 : i32
    %c0_i32_0 = arith.constant 0 : i32
    %c0_i32_1 = arith.constant 0 : i32
    return %c0_i32, %c0_i32_0 : i32, i32
  }
  func.func @transform_2(%arg0: i32) -> (i32, i32) {
    %c0_i32 = arith.constant 0 : i32
    %c0_i32_0 = arith.constant 0 : i32
    %c0_i32_1 = arith.constant 0 : i32
    return %c0_i32, %c0_i32_0 : i32, i32
  }
  func.func @transform_3(%arg0: i32) -> (i32, i32) {
    %c0_i32 = arith.constant 0 : i32
    %c0_i32_0 = arith.constant 0 : i32
    return %arg0, %c0_i32 : i32, i32
  }
}

module attributes {stable_mosaic.version = 11 : i64} {
  func.func @_linear_kernel(%arg0: i32, %arg1: memref<32x256xbf16, #tpu.memory_space<vmem>>, %arg2: memref<256x128xbf16, #tpu.memory_space<vmem>>, %arg3: memref<1x128xf32, #tpu.memory_space<vmem>>, %arg4: memref<32x128xbf16, #tpu.memory_space<vmem>>, %arg5: memref<1x128xf32, #tpu.memory_space<vmem>>, %arg6: memref<1x128xf32, #tpu.memory_space<vmem>>, %arg7: memref<32x128xbf16, #tpu.memory_space<vmem>>) attributes {dimension_semantics = [#tpu.dimension_semantics<parallel>], iteration_bounds = array<i64: 1>, scalar_prefetch = 0 : i64, scratch_operands = 0 : i64, tpu.core_type = #tpu.core_type<tc>, window_params = [{transform_indices = @transform_0, window_bounds = array<i64: 32, 256>}, {pipeline_mode = #tpu.pipeline_mode<synchronous>, transform_indices = @transform_1, window_bounds = array<i64: 256, 128>}, {pipeline_mode = #tpu.pipeline_mode<synchronous>, transform_indices = @transform_2, window_bounds = array<i64: 1, 128>}, {transform_indices = @transform_3, window_bounds = array<i64: 32, 128>}, {pipeline_mode = #tpu.pipeline_mode<synchronous>, transform_indices = @transform_4, window_bounds = array<i64: 1, 128>}, {pipeline_mode = #tpu.pipeline_mode<synchronous>, transform_indices = @transform_5, window_bounds = array<i64: 1, 128>}, {transform_indices = @transform_6, window_bounds = array<i64: 32, 128>}]} {
    %c0 = arith.constant 0 : index
    %c0_0 = arith.constant 0 : index
    %0 = vector.load %arg1[%c0, %c0_0] : memref<32x256xbf16, #tpu.memory_space<vmem>>, vector<32x256xbf16>
    %c0_1 = arith.constant 0 : index
    %c0_2 = arith.constant 0 : index
    %1 = vector.load %arg2[%c0_1, %c0_2] : memref<256x128xbf16, #tpu.memory_space<vmem>>, vector<256x128xbf16>
    %cst = arith.constant dense<0.000000e+00> : vector<32x128xf32>
    %2 = tpu.matmul %0, %1, %cst {dimension_numbers = #tpu.dot_dimension_numbers<[1], [0], [0], [1], [0, 0, 1, 1], [], []>} : vector<32x256xbf16>, vector<256x128xbf16>, vector<32x128xf32> -> vector<32x128xf32>
    %c0_3 = arith.constant 0 : index
    %c0_4 = arith.constant 0 : index
    %3 = vector.load %arg3[%c0_3, %c0_4] : memref<1x128xf32, #tpu.memory_space<vmem>>, vector<1x128xf32>
    %4 = vector.broadcast %3 : vector<1x128xf32> to vector<32x128xf32>
    %5 = arith.addf %2, %4 : vector<32x128xf32>
    %c0_5 = arith.constant 0 : index
    %c0_6 = arith.constant 0 : index
    %6 = vector.load %arg4[%c0_5, %c0_6] : memref<32x128xbf16, #tpu.memory_space<vmem>>, vector<32x128xbf16>
    %7 = arith.extf %6 : vector<32x128xbf16> to vector<32x128xf32>
    %8 = arith.addf %5, %7 : vector<32x128xf32>
    %cst_7 = arith.constant dense<0.000000e+00> : vector<32xf32>
    %9 = vector.multi_reduction <add>, %8, %cst_7 [1] : vector<32x128xf32> to vector<32xf32>
    %10 = vector.shape_cast %9 : vector<32xf32> to vector<32x1xf32>
    %cst_8 = arith.constant 1.280000e+02 : f32
    %11 = vector.broadcast %cst_8 : f32 to vector<32x1xf32>
    %12 = arith.divf %10, %11 : vector<32x1xf32>
    %13 = vector.broadcast %12 : vector<32x1xf32> to vector<32x128xf32>
    %14 = arith.subf %8, %13 : vector<32x128xf32>
    %15 = arith.mulf %14, %14 : vector<32x128xf32>
    %cst_9 = arith.constant dense<0.000000e+00> : vector<32xf32>
    %16 = vector.multi_reduction <add>, %15, %cst_9 [1] : vector<32x128xf32> to vector<32xf32>
    %17 = vector.shape_cast %16 : vector<32xf32> to vector<32x1xf32>
    %cst_10 = arith.constant 1.280000e+02 : f32
    %18 = vector.broadcast %cst_10 : f32 to vector<32x1xf32>
    %19 = arith.divf %17, %18 : vector<32x1xf32>
    %20 = vector.broadcast %12 : vector<32x1xf32> to vector<32x128xf32>
    %21 = arith.subf %8, %20 : vector<32x128xf32>
    %cst_11 = arith.constant 9.99999974E-6 : f32
    %22 = vector.broadcast %cst_11 : f32 to vector<32x1xf32>
    %23 = arith.addf %19, %22 : vector<32x1xf32>
    %24 = math.rsqrt %23 : vector<32x1xf32>
    %25 = vector.broadcast %24 : vector<32x1xf32> to vector<32x128xf32>
    %26 = arith.mulf %21, %25 : vector<32x128xf32>
    %c0_12 = arith.constant 0 : index
    %c0_13 = arith.constant 0 : index
    %27 = vector.load %arg5[%c0_12, %c0_13] : memref<1x128xf32, #tpu.memory_space<vmem>>, vector<1x128xf32>
    %28 = vector.broadcast %27 : vector<1x128xf32> to vector<32x128xf32>
    %29 = arith.mulf %26, %28 : vector<32x128xf32>
    %c0_14 = arith.constant 0 : index
    %c0_15 = arith.constant 0 : index
    %30 = vector.load %arg6[%c0_14, %c0_15] : memref<1x128xf32, #tpu.memory_space<vmem>>, vector<1x128xf32>
    %31 = vector.broadcast %30 : vector<1x128xf32> to vector<32x128xf32>
    %32 = arith.addf %29, %31 : vector<32x128xf32>
    %33 = arith.truncf %32 : vector<32x128xf32> to vector<32x128xbf16>
    %c0_16 = arith.constant 0 : index
    %c0_17 = arith.constant 0 : index
    %34 = vector.load %arg7[%c0_16, %c0_17] : memref<32x128xbf16, #tpu.memory_space<vmem>>, vector<32x128xbf16>
    tpu.vector_store %arg7[%c0_16, %c0_17], %33 {strides = array<i32>} : memref<32x128xbf16, #tpu.memory_space<vmem>>, vector<32x128xbf16>,
    return
  }
  func.func @transform_0(%arg0: i32) -> (i32, i32) {
    %c0_i32 = arith.constant 0 : i32
    %c0_i32_0 = arith.constant 0 : i32
    return %arg0, %c0_i32 : i32, i32
  }
  func.func @transform_1(%arg0: i32) -> (i32, i32) {
    %c0_i32 = arith.constant 0 : i32
    %c0_i32_0 = arith.constant 0 : i32
    %c0_i32_1 = arith.constant 0 : i32
    return %c0_i32, %c0_i32_0 : i32, i32
  }
  func.func @transform_2(%arg0: i32) -> (i32, i32) {
    %c0_i32 = arith.constant 0 : i32
    %c0_i32_0 = arith.constant 0 : i32
    %c0_i32_1 = arith.constant 0 : i32
    return %c0_i32, %c0_i32_0 : i32, i32
  }
  func.func @transform_3(%arg0: i32) -> (i32, i32) {
    %c0_i32 = arith.constant 0 : i32
    %c0_i32_0 = arith.constant 0 : i32
    return %arg0, %c0_i32 : i32, i32
  }
  func.func @transform_4(%arg0: i32) -> (i32, i32) {
    %c0_i32 = arith.constant 0 : i32
    %c0_i32_0 = arith.constant 0 : i32
    %c0_i32_1 = arith.constant 0 : i32
    return %c0_i32, %c0_i32_0 : i32, i32
  }
  func.func @transform_5(%arg0: i32) -> (i32, i32) {
    %c0_i32 = arith.constant 0 : i32
    %c0_i32_0 = arith.constant 0 : i32
    %c0_i32_1 = arith.constant 0 : i32
    return %c0_i32, %c0_i32_0 : i32, i32
  }
  func.func @transform_6(%arg0: i32) -> (i32, i32) {
    %c0_i32 = arith.constant 0 : i32
    %c0_i32_0 = arith.constant 0 : i32
    return %arg0, %c0_i32 : i32, i32
  }
}

module attributes {stable_mosaic.version = 11 : i64} {
  func.func @_linear_kernel(%arg0: i32, %arg1: memref<32x128xbf16, #tpu.memory_space<vmem>>, %arg2: memref<128x128xbf16, #tpu.memory_space<vmem>>, %arg3: memref<1x128xf32, #tpu.memory_space<vmem>>, %arg4: memref<32x128xbf16, #tpu.memory_space<vmem>>, %arg5: memref<1x128xf32, #tpu.memory_space<vmem>>, %arg6: memref<1x128xf32, #tpu.memory_space<vmem>>, %arg7: memref<32x128xbf16, #tpu.memory_space<vmem>>) attributes {dimension_semantics = [#tpu.dimension_semantics<parallel>], iteration_bounds = array<i64: 1>, scalar_prefetch = 0 : i64, scratch_operands = 0 : i64, tpu.core_type = #tpu.core_type<tc>, window_params = [{transform_indices = @transform_0, window_bounds = array<i64: 32, 128>}, {pipeline_mode = #tpu.pipeline_mode<synchronous>, transform_indices = @transform_1, window_bounds = array<i64: 128, 128>}, {pipeline_mode = #tpu.pipeline_mode<synchronous>, transform_indices = @transform_2, window_bounds = array<i64: 1, 128>}, {transform_indices = @transform_3, window_bounds = array<i64: 32, 128>}, {pipeline_mode = #tpu.pipeline_mode<synchronous>, transform_indices = @transform_4, window_bounds = array<i64: 1, 128>}, {pipeline_mode = #tpu.pipeline_mode<synchronous>, transform_indices = @transform_5, window_bounds = array<i64: 1, 128>}, {transform_indices = @transform_6, window_bounds = array<i64: 32, 128>}]} {
    %c0 = arith.constant 0 : index
    %c0_0 = arith.constant 0 : index
    %0 = vector.load %arg1[%c0, %c0_0] : memref<32x128xbf16, #tpu.memory_space<vmem>>, vector<32x128xbf16>
    %c0_1 = arith.constant 0 : index
    %c0_2 = arith.constant 0 : index
    %1 = vector.load %arg2[%c0_1, %c0_2] : memref<128x128xbf16, #tpu.memory_space<vmem>>, vector<128x128xbf16>
    %cst = arith.constant dense<0.000000e+00> : vector<32x128xf32>
    %2 = tpu.matmul %0, %1, %cst {dimension_numbers = #tpu.dot_dimension_numbers<[1], [0], [0], [1], [0, 0, 1, 1], [], []>} : vector<32x128xbf16>, vector<128x128xbf16>, vector<32x128xf32> -> vector<32x128xf32>
    %c0_3 = arith.constant 0 : index
    %c0_4 = arith.constant 0 : index
    %3 = vector.load %arg3[%c0_3, %c0_4] : memref<1x128xf32, #tpu.memory_space<vmem>>, vector<1x128xf32>
    %4 = vector.broadcast %3 : vector<1x128xf32> to vector<32x128xf32>
    %5 = arith.addf %2, %4 : vector<32x128xf32>
    %c0_5 = arith.constant 0 : index
    %c0_6 = arith.constant 0 : index
    %6 = vector.load %arg4[%c0_5, %c0_6] : memref<32x128xbf16, #tpu.memory_space<vmem>>, vector<32x128xbf16>
    %7 = arith.extf %6 : vector<32x128xbf16> to vector<32x128xf32>
    %8 = arith.addf %5, %7 : vector<32x128xf32>
    %cst_7 = arith.constant dense<0.000000e+00> : vector<32xf32>
    %9 = vector.multi_reduction <add>, %8, %cst_7 [1] : vector<32x128xf32> to vector<32xf32>
    %10 = vector.shape_cast %9 : vector<32xf32> to vector<32x1xf32>
    %cst_8 = arith.constant 1.280000e+02 : f32
    %11 = vector.broadcast %cst_8 : f32 to vector<32x1xf32>
    %12 = arith.divf %10, %11 : vector<32x1xf32>
    %13 = vector.broadcast %12 : vector<32x1xf32> to vector<32x128xf32>
    %14 = arith.subf %8, %13 : vector<32x128xf32>
    %15 = arith.mulf %14, %14 : vector<32x128xf32>
    %cst_9 = arith.constant dense<0.000000e+00> : vector<32xf32>
    %16 = vector.multi_reduction <add>, %15, %cst_9 [1] : vector<32x128xf32> to vector<32xf32>
    %17 = vector.shape_cast %16 : vector<32xf32> to vector<32x1xf32>
    %cst_10 = arith.constant 1.280000e+02 : f32
    %18 = vector.broadcast %cst_10 : f32 to vector<32x1xf32>
    %19 = arith.divf %17, %18 : vector<32x1xf32>
    %20 = vector.broadcast %12 : vector<32x1xf32> to vector<32x128xf32>
    %21 = arith.subf %8, %20 : vector<32x128xf32>
    %cst_11 = arith.constant 9.99999974E-6 : f32
    %22 = vector.broadcast %cst_11 : f32 to vector<32x1xf32>
    %23 = arith.addf %19, %22 : vector<32x1xf32>
    %24 = math.rsqrt %23 : vector<32x1xf32>
    %25 = vector.broadcast %24 : vector<32x1xf32> to vector<32x128xf32>
    %26 = arith.mulf %21, %25 : vector<32x128xf32>
    %c0_12 = arith.constant 0 : index
    %c0_13 = arith.constant 0 : index
    %27 = vector.load %arg5[%c0_12, %c0_13] : memref<1x128xf32, #tpu.memory_space<vmem>>, vector<1x128xf32>
    %28 = vector.broadcast %27 : vector<1x128xf32> to vector<32x128xf32>
    %29 = arith.mulf %26, %28 : vector<32x128xf32>
    %c0_14 = arith.constant 0 : index
    %c0_15 = arith.constant 0 : index
    %30 = vector.load %arg6[%c0_14, %c0_15] : memref<1x128xf32, #tpu.memory_space<vmem>>, vector<1x128xf32>
    %31 = vector.broadcast %30 : vector<1x128xf32> to vector<32x128xf32>
    %32 = arith.addf %29, %31 : vector<32x128xf32>
    %33 = arith.truncf %32 : vector<32x128xf32> to vector<32x128xbf16>
    %c0_16 = arith.constant 0 : index
    %c0_17 = arith.constant 0 : index
    %34 = vector.load %arg7[%c0_16, %c0_17] : memref<32x128xbf16, #tpu.memory_space<vmem>>, vector<32x128xbf16>
    tpu.vector_store %arg7[%c0_16, %c0_17], %33 {strides = array<i32>} : memref<32x128xbf16, #tpu.memory_space<vmem>>, vector<32x128xbf16>,
    return
  }
  func.func @transform_0(%arg0: i32) -> (i32, i32) {
    %c0_i32 = arith.constant 0 : i32
    %c0_i32_0 = arith.constant 0 : i32
    return %arg0, %c0_i32 : i32, i32
  }
  func.func @transform_1(%arg0: i32) -> (i32, i32) {
    %c0_i32 = arith.constant 0 : i32
    %c0_i32_0 = arith.constant 0 : i32
    %c0_i32_1 = arith.constant 0 : i32
    return %c0_i32, %c0_i32_0 : i32, i32
  }
  func.func @transform_2(%arg0: i32) -> (i32, i32) {
    %c0_i32 = arith.constant 0 : i32
    %c0_i32_0 = arith.constant 0 : i32
    %c0_i32_1 = arith.constant 0 : i32
    return %c0_i32, %c0_i32_0 : i32, i32
  }
  func.func @transform_3(%arg0: i32) -> (i32, i32) {
    %c0_i32 = arith.constant 0 : i32
    %c0_i32_0 = arith.constant 0 : i32
    return %arg0, %c0_i32 : i32, i32
  }
  func.func @transform_4(%arg0: i32) -> (i32, i32) {
    %c0_i32 = arith.constant 0 : i32
    %c0_i32_0 = arith.constant 0 : i32
    %c0_i32_1 = arith.constant 0 : i32
    return %c0_i32, %c0_i32_0 : i32, i32
  }
  func.func @transform_5(%arg0: i32) -> (i32, i32) {
    %c0_i32 = arith.constant 0 : i32
    %c0_i32_0 = arith.constant 0 : i32
    %c0_i32_1 = arith.constant 0 : i32
    return %c0_i32, %c0_i32_0 : i32, i32
  }
  func.func @transform_6(%arg0: i32) -> (i32, i32) {
    %c0_i32 = arith.constant 0 : i32
    %c0_i32_0 = arith.constant 0 : i32
    return %arg0, %c0_i32 : i32, i32
  }
}

module attributes {stable_mosaic.version = 11 : i64} {
  func.func @_linear_kernel(%arg0: i32, %arg1: memref<32x128xbf16, #tpu.memory_space<vmem>>, %arg2: memref<128x128xbf16, #tpu.memory_space<vmem>>, %arg3: memref<1x128xf32, #tpu.memory_space<vmem>>, %arg4: memref<32x128xbf16, #tpu.memory_space<vmem>>) attributes {dimension_semantics = [#tpu.dimension_semantics<parallel>], iteration_bounds = array<i64: 1>, scalar_prefetch = 0 : i64, scratch_operands = 0 : i64, tpu.core_type = #tpu.core_type<tc>, window_params = [{transform_indices = @transform_0, window_bounds = array<i64: 32, 128>}, {pipeline_mode = #tpu.pipeline_mode<synchronous>, transform_indices = @transform_1, window_bounds = array<i64: 128, 128>}, {pipeline_mode = #tpu.pipeline_mode<synchronous>, transform_indices = @transform_2, window_bounds = array<i64: 1, 128>}, {transform_indices = @transform_3, window_bounds = array<i64: 32, 128>}]} {
    %c0 = arith.constant 0 : index
    %c0_0 = arith.constant 0 : index
    %0 = vector.load %arg1[%c0, %c0_0] : memref<32x128xbf16, #tpu.memory_space<vmem>>, vector<32x128xbf16>
    %c0_1 = arith.constant 0 : index
    %c0_2 = arith.constant 0 : index
    %1 = vector.load %arg2[%c0_1, %c0_2] : memref<128x128xbf16, #tpu.memory_space<vmem>>, vector<128x128xbf16>
    %cst = arith.constant dense<0.000000e+00> : vector<32x128xf32>
    %2 = tpu.matmul %0, %1, %cst {dimension_numbers = #tpu.dot_dimension_numbers<[1], [0], [0], [1], [0, 0, 1, 1], [], []>} : vector<32x128xbf16>, vector<128x128xbf16>, vector<32x128xf32> -> vector<32x128xf32>
    %c0_3 = arith.constant 0 : index
    %c0_4 = arith.constant 0 : index
    %3 = vector.load %arg3[%c0_3, %c0_4] : memref<1x128xf32, #tpu.memory_space<vmem>>, vector<1x128xf32>
    %4 = vector.broadcast %3 : vector<1x128xf32> to vector<32x128xf32>
    %5 = arith.addf %2, %4 : vector<32x128xf32>
    %6 = arith.truncf %5 : vector<32x128xf32> to vector<32x128xbf16>
    %c0_5 = arith.constant 0 : index
    %c0_6 = arith.constant 0 : index
    %7 = vector.load %arg4[%c0_5, %c0_6] : memref<32x128xbf16, #tpu.memory_space<vmem>>, vector<32x128xbf16>
    tpu.vector_store %arg4[%c0_5, %c0_6], %6 {strides = array<i32>} : memref<32x128xbf16, #tpu.memory_space<vmem>>, vector<32x128xbf16>,
    return
  }
  func.func @transform_0(%arg0: i32) -> (i32, i32) {
    %c0_i32 = arith.constant 0 : i32
    %c0_i32_0 = arith.constant 0 : i32
    return %arg0, %c0_i32 : i32, i32
  }
  func.func @transform_1(%arg0: i32) -> (i32, i32) {
    %c0_i32 = arith.constant 0 : i32
    %c0_i32_0 = arith.constant 0 : i32
    %c0_i32_1 = arith.constant 0 : i32
    return %c0_i32, %c0_i32_0 : i32, i32
  }
  func.func @transform_2(%arg0: i32) -> (i32, i32) {
    %c0_i32 = arith.constant 0 : i32
    %c0_i32_0 = arith.constant 0 : i32
    %c0_i32_1 = arith.constant 0 : i32
    return %c0_i32, %c0_i32_0 : i32, i32
  }
  func.func @transform_3(%arg0: i32) -> (i32, i32) {
    %c0_i32 = arith.constant 0 : i32
    %c0_i32_0 = arith.constant 0 : i32
    return %arg0, %c0_i32 : i32, i32
  }
}

module attributes {stable_mosaic.version = 11 : i64} {
  func.func @_linear_kernel(%arg0: i32, %arg1: memref<32x128xbf16, #tpu.memory_space<vmem>>, %arg2: memref<128x128xbf16, #tpu.memory_space<vmem>>, %arg3: memref<1x128xf32, #tpu.memory_space<vmem>>, %arg4: memref<32x128xbf16, #tpu.memory_space<vmem>>, %arg5: memref<1x128xf32, #tpu.memory_space<vmem>>, %arg6: memref<1x128xf32, #tpu.memory_space<vmem>>, %arg7: memref<32x128xbf16, #tpu.memory_space<vmem>>) attributes {dimension_semantics = [#tpu.dimension_semantics<parallel>], iteration_bounds = array<i64: 1>, scalar_prefetch = 0 : i64, scratch_operands = 0 : i64, tpu.core_type = #tpu.core_type<tc>, window_params = [{transform_indices = @transform_0, window_bounds = array<i64: 32, 128>}, {pipeline_mode = #tpu.pipeline_mode<synchronous>, transform_indices = @transform_1, window_bounds = array<i64: 128, 128>}, {pipeline_mode = #tpu.pipeline_mode<synchronous>, transform_indices = @transform_2, window_bounds = array<i64: 1, 128>}, {transform_indices = @transform_3, window_bounds = array<i64: 32, 128>}, {pipeline_mode = #tpu.pipeline_mode<synchronous>, transform_indices = @transform_4, window_bounds = array<i64: 1, 128>}, {pipeline_mode = #tpu.pipeline_mode<synchronous>, transform_indices = @transform_5, window_bounds = array<i64: 1, 128>}, {transform_indices = @transform_6, window_bounds = array<i64: 32, 128>}]} {
    %c0 = arith.constant 0 : index
    %c0_0 = arith.constant 0 : index
    %0 = vector.load %arg1[%c0, %c0_0] : memref<32x128xbf16, #tpu.memory_space<vmem>>, vector<32x128xbf16>
    %c0_1 = arith.constant 0 : index
    %c0_2 = arith.constant 0 : index
    %1 = vector.load %arg2[%c0_1, %c0_2] : memref<128x128xbf16, #tpu.memory_space<vmem>>, vector<128x128xbf16>
    %cst = arith.constant dense<0.000000e+00> : vector<32x128xf32>
    %2 = tpu.matmul %0, %1, %cst {dimension_numbers = #tpu.dot_dimension_numbers<[1], [0], [0], [1], [0, 0, 1, 1], [], []>} : vector<32x128xbf16>, vector<128x128xbf16>, vector<32x128xf32> -> vector<32x128xf32>
    %c0_3 = arith.constant 0 : index
    %c0_4 = arith.constant 0 : index
    %3 = vector.load %arg3[%c0_3, %c0_4] : memref<1x128xf32, #tpu.memory_space<vmem>>, vector<1x128xf32>
    %4 = vector.broadcast %3 : vector<1x128xf32> to vector<32x128xf32>
    %5 = arith.addf %2, %4 : vector<32x128xf32>
    %c0_5 = arith.constant 0 : index
    %c0_6 = arith.constant 0 : index
    %6 = vector.load %arg4[%c0_5, %c0_6] : memref<32x128xbf16, #tpu.memory_space<vmem>>, vector<32x128xbf16>
    %7 = arith.extf %6 : vector<32x128xbf16> to vector<32x128xf32>
    %8 = arith.addf %5, %7 : vector<32x128xf32>
    %cst_7 = arith.constant dense<0.000000e+00> : vector<32xf32>
    %9 = vector.multi_reduction <add>, %8, %cst_7 [1] : vector<32x128xf32> to vector<32xf32>
    %10 = vector.shape_cast %9 : vector<32xf32> to vector<32x1xf32>
    %cst_8 = arith.constant 1.280000e+02 : f32
    %11 = vector.broadcast %cst_8 : f32 to vector<32x1xf32>
    %12 = arith.divf %10, %11 : vector<32x1xf32>
    %13 = vector.broadcast %12 : vector<32x1xf32> to vector<32x128xf32>
    %14 = arith.subf %8, %13 : vector<32x128xf32>
    %15 = arith.mulf %14, %14 : vector<32x128xf32>
    %cst_9 = arith.constant dense<0.000000e+00> : vector<32xf32>
    %16 = vector.multi_reduction <add>, %15, %cst_9 [1] : vector<32x128xf32> to vector<32xf32>
    %17 = vector.shape_cast %16 : vector<32xf32> to vector<32x1xf32>
    %cst_10 = arith.constant 1.280000e+02 : f32
    %18 = vector.broadcast %cst_10 : f32 to vector<32x1xf32>
    %19 = arith.divf %17, %18 : vector<32x1xf32>
    %20 = vector.broadcast %12 : vector<32x1xf32> to vector<32x128xf32>
    %21 = arith.subf %8, %20 : vector<32x128xf32>
    %cst_11 = arith.constant 9.99999974E-6 : f32
    %22 = vector.broadcast %cst_11 : f32 to vector<32x1xf32>
    %23 = arith.addf %19, %22 : vector<32x1xf32>
    %24 = math.rsqrt %23 : vector<32x1xf32>
    %25 = vector.broadcast %24 : vector<32x1xf32> to vector<32x128xf32>
    %26 = arith.mulf %21, %25 : vector<32x128xf32>
    %c0_12 = arith.constant 0 : index
    %c0_13 = arith.constant 0 : index
    %27 = vector.load %arg5[%c0_12, %c0_13] : memref<1x128xf32, #tpu.memory_space<vmem>>, vector<1x128xf32>
    %28 = vector.broadcast %27 : vector<1x128xf32> to vector<32x128xf32>
    %29 = arith.mulf %26, %28 : vector<32x128xf32>
    %c0_14 = arith.constant 0 : index
    %c0_15 = arith.constant 0 : index
    %30 = vector.load %arg6[%c0_14, %c0_15] : memref<1x128xf32, #tpu.memory_space<vmem>>, vector<1x128xf32>
    %31 = vector.broadcast %30 : vector<1x128xf32> to vector<32x128xf32>
    %32 = arith.addf %29, %31 : vector<32x128xf32>
    %33 = arith.truncf %32 : vector<32x128xf32> to vector<32x128xbf16>
    %c0_16 = arith.constant 0 : index
    %c0_17 = arith.constant 0 : index
    %34 = vector.load %arg7[%c0_16, %c0_17] : memref<32x128xbf16, #tpu.memory_space<vmem>>, vector<32x128xbf16>
    tpu.vector_store %arg7[%c0_16, %c0_17], %33 {strides = array<i32>} : memref<32x128xbf16, #tpu.memory_space<vmem>>, vector<32x128xbf16>,
    return
  }
  func.func @transform_0(%arg0: i32) -> (i32, i32) {
    %c0_i32 = arith.constant 0 : i32
    %c0_i32_0 = arith.constant 0 : i32
    return %arg0, %c0_i32 : i32, i32
  }
  func.func @transform_1(%arg0: i32) -> (i32, i32) {
    %c0_i32 = arith.constant 0 : i32
    %c0_i32_0 = arith.constant 0 : i32
    %c0_i32_1 = arith.constant 0 : i32
    return %c0_i32, %c0_i32_0 : i32, i32
  }
  func.func @transform_2(%arg0: i32) -> (i32, i32) {
    %c0_i32 = arith.constant 0 : i32
    %c0_i32_0 = arith.constant 0 : i32
    %c0_i32_1 = arith.constant 0 : i32
    return %c0_i32, %c0_i32_0 : i32, i32
  }
  func.func @transform_3(%arg0: i32) -> (i32, i32) {
    %c0_i32 = arith.constant 0 : i32
    %c0_i32_0 = arith.constant 0 : i32
    return %arg0, %c0_i32 : i32, i32
  }
  func.func @transform_4(%arg0: i32) -> (i32, i32) {
    %c0_i32 = arith.constant 0 : i32
    %c0_i32_0 = arith.constant 0 : i32
    %c0_i32_1 = arith.constant 0 : i32
    return %c0_i32, %c0_i32_0 : i32, i32
  }
  func.func @transform_5(%arg0: i32) -> (i32, i32) {
    %c0_i32 = arith.constant 0 : i32
    %c0_i32_0 = arith.constant 0 : i32
    %c0_i32_1 = arith.constant 0 : i32
    return %c0_i32, %c0_i32_0 : i32, i32
  }
  func.func @transform_6(%arg0: i32) -> (i32, i32) {
    %c0_i32 = arith.constant 0 : i32
    %c0_i32_0 = arith.constant 0 : i32
    return %arg0, %c0_i32 : i32, i32
  }
}

module attributes {stable_mosaic.version = 11 : i64} {
  func.func @_linear_kernel(%arg0: i32, %arg1: memref<32x128xbf16, #tpu.memory_space<vmem>>, %arg2: memref<128x128xbf16, #tpu.memory_space<vmem>>, %arg3: memref<1x128xf32, #tpu.memory_space<vmem>>, %arg4: memref<32x128xbf16, #tpu.memory_space<vmem>>) attributes {dimension_semantics = [#tpu.dimension_semantics<parallel>], iteration_bounds = array<i64: 1>, scalar_prefetch = 0 : i64, scratch_operands = 0 : i64, tpu.core_type = #tpu.core_type<tc>, window_params = [{transform_indices = @transform_0, window_bounds = array<i64: 32, 128>}, {pipeline_mode = #tpu.pipeline_mode<synchronous>, transform_indices = @transform_1, window_bounds = array<i64: 128, 128>}, {pipeline_mode = #tpu.pipeline_mode<synchronous>, transform_indices = @transform_2, window_bounds = array<i64: 1, 128>}, {transform_indices = @transform_3, window_bounds = array<i64: 32, 128>}]} {
    %c0 = arith.constant 0 : index
    %c0_0 = arith.constant 0 : index
    %0 = vector.load %arg1[%c0, %c0_0] : memref<32x128xbf16, #tpu.memory_space<vmem>>, vector<32x128xbf16>
    %c0_1 = arith.constant 0 : index
    %c0_2 = arith.constant 0 : index
    %1 = vector.load %arg2[%c0_1, %c0_2] : memref<128x128xbf16, #tpu.memory_space<vmem>>, vector<128x128xbf16>
    %cst = arith.constant dense<0.000000e+00> : vector<32x128xf32>
    %2 = tpu.matmul %0, %1, %cst {dimension_numbers = #tpu.dot_dimension_numbers<[1], [0], [0], [1], [0, 0, 1, 1], [], []>} : vector<32x128xbf16>, vector<128x128xbf16>, vector<32x128xf32> -> vector<32x128xf32>
    %c0_3 = arith.constant 0 : index
    %c0_4 = arith.constant 0 : index
    %3 = vector.load %arg3[%c0_3, %c0_4] : memref<1x128xf32, #tpu.memory_space<vmem>>, vector<1x128xf32>
    %4 = vector.broadcast %3 : vector<1x128xf32> to vector<32x128xf32>
    %5 = arith.addf %2, %4 : vector<32x128xf32>
    %6 = arith.truncf %5 : vector<32x128xf32> to vector<32x128xbf16>
    %c0_5 = arith.constant 0 : index
    %c0_6 = arith.constant 0 : index
    %7 = vector.load %arg4[%c0_5, %c0_6] : memref<32x128xbf16, #tpu.memory_space<vmem>>, vector<32x128xbf16>
    tpu.vector_store %arg4[%c0_5, %c0_6], %6 {strides = array<i32>} : memref<32x128xbf16, #tpu.memory_space<vmem>>, vector<32x128xbf16>,
    return
  }
  func.func @transform_0(%arg0: i32) -> (i32, i32) {
    %c0_i32 = arith.constant 0 : i32
    %c0_i32_0 = arith.constant 0 : i32
    return %arg0, %c0_i32 : i32, i32
  }
  func.func @transform_1(%arg0: i32) -> (i32, i32) {
    %c0_i32 = arith.constant 0 : i32
    %c0_i32_0 = arith.constant 0 : i32
    %c0_i32_1 = arith.constant 0 : i32
    return %c0_i32, %c0_i32_0 : i32, i32
  }
  func.func @transform_2(%arg0: i32) -> (i32, i32) {
    %c0_i32 = arith.constant 0 : i32
    %c0_i32_0 = arith.constant 0 : i32
    %c0_i32_1 = arith.constant 0 : i32
    return %c0_i32, %c0_i32_0 : i32, i32
  }
  func.func @transform_3(%arg0: i32) -> (i32, i32) {
    %c0_i32 = arith.constant 0 : i32
    %c0_i32_0 = arith.constant 0 : i32
    return %arg0, %c0_i32 : i32, i32
  }
}

module attributes {stable_mosaic.version = 11 : i64} {
  func.func @_linear_kernel(%arg0: i32, %arg1: memref<32x128xbf16, #tpu.memory_space<vmem>>, %arg2: memref<128x128xbf16, #tpu.memory_space<vmem>>, %arg3: memref<1x128xf32, #tpu.memory_space<vmem>>, %arg4: memref<32x128xbf16, #tpu.memory_space<vmem>>, %arg5: memref<1x128xf32, #tpu.memory_space<vmem>>, %arg6: memref<1x128xf32, #tpu.memory_space<vmem>>, %arg7: memref<32x128xbf16, #tpu.memory_space<vmem>>) attributes {dimension_semantics = [#tpu.dimension_semantics<parallel>], iteration_bounds = array<i64: 1>, scalar_prefetch = 0 : i64, scratch_operands = 0 : i64, tpu.core_type = #tpu.core_type<tc>, window_params = [{transform_indices = @transform_0, window_bounds = array<i64: 32, 128>}, {pipeline_mode = #tpu.pipeline_mode<synchronous>, transform_indices = @transform_1, window_bounds = array<i64: 128, 128>}, {pipeline_mode = #tpu.pipeline_mode<synchronous>, transform_indices = @transform_2, window_bounds = array<i64: 1, 128>}, {transform_indices = @transform_3, window_bounds = array<i64: 32, 128>}, {pipeline_mode = #tpu.pipeline_mode<synchronous>, transform_indices = @transform_4, window_bounds = array<i64: 1, 128>}, {pipeline_mode = #tpu.pipeline_mode<synchronous>, transform_indices = @transform_5, window_bounds = array<i64: 1, 128>}, {transform_indices = @transform_6, window_bounds = array<i64: 32, 128>}]} {
    %c0 = arith.constant 0 : index
    %c0_0 = arith.constant 0 : index
    %0 = vector.load %arg1[%c0, %c0_0] : memref<32x128xbf16, #tpu.memory_space<vmem>>, vector<32x128xbf16>
    %c0_1 = arith.constant 0 : index
    %c0_2 = arith.constant 0 : index
    %1 = vector.load %arg2[%c0_1, %c0_2] : memref<128x128xbf16, #tpu.memory_space<vmem>>, vector<128x128xbf16>
    %cst = arith.constant dense<0.000000e+00> : vector<32x128xf32>
    %2 = tpu.matmul %0, %1, %cst {dimension_numbers = #tpu.dot_dimension_numbers<[1], [0], [0], [1], [0, 0, 1, 1], [], []>} : vector<32x128xbf16>, vector<128x128xbf16>, vector<32x128xf32> -> vector<32x128xf32>
    %c0_3 = arith.constant 0 : index
    %c0_4 = arith.constant 0 : index
    %3 = vector.load %arg3[%c0_3, %c0_4] : memref<1x128xf32, #tpu.memory_space<vmem>>, vector<1x128xf32>
    %4 = vector.broadcast %3 : vector<1x128xf32> to vector<32x128xf32>
    %5 = arith.addf %2, %4 : vector<32x128xf32>
    %c0_5 = arith.constant 0 : index
    %c0_6 = arith.constant 0 : index
    %6 = vector.load %arg4[%c0_5, %c0_6] : memref<32x128xbf16, #tpu.memory_space<vmem>>, vector<32x128xbf16>
    %7 = arith.extf %6 : vector<32x128xbf16> to vector<32x128xf32>
    %8 = arith.addf %5, %7 : vector<32x128xf32>
    %cst_7 = arith.constant dense<0.000000e+00> : vector<32xf32>
    %9 = vector.multi_reduction <add>, %8, %cst_7 [1] : vector<32x128xf32> to vector<32xf32>
    %10 = vector.shape_cast %9 : vector<32xf32> to vector<32x1xf32>
    %cst_8 = arith.constant 1.280000e+02 : f32
    %11 = vector.broadcast %cst_8 : f32 to vector<32x1xf32>
    %12 = arith.divf %10, %11 : vector<32x1xf32>
    %13 = vector.broadcast %12 : vector<32x1xf32> to vector<32x128xf32>
    %14 = arith.subf %8, %13 : vector<32x128xf32>
    %15 = arith.mulf %14, %14 : vector<32x128xf32>
    %cst_9 = arith.constant dense<0.000000e+00> : vector<32xf32>
    %16 = vector.multi_reduction <add>, %15, %cst_9 [1] : vector<32x128xf32> to vector<32xf32>
    %17 = vector.shape_cast %16 : vector<32xf32> to vector<32x1xf32>
    %cst_10 = arith.constant 1.280000e+02 : f32
    %18 = vector.broadcast %cst_10 : f32 to vector<32x1xf32>
    %19 = arith.divf %17, %18 : vector<32x1xf32>
    %20 = vector.broadcast %12 : vector<32x1xf32> to vector<32x128xf32>
    %21 = arith.subf %8, %20 : vector<32x128xf32>
    %cst_11 = arith.constant 9.99999974E-6 : f32
    %22 = vector.broadcast %cst_11 : f32 to vector<32x1xf32>
    %23 = arith.addf %19, %22 : vector<32x1xf32>
    %24 = math.rsqrt %23 : vector<32x1xf32>
    %25 = vector.broadcast %24 : vector<32x1xf32> to vector<32x128xf32>
    %26 = arith.mulf %21, %25 : vector<32x128xf32>
    %c0_12 = arith.constant 0 : index
    %c0_13 = arith.constant 0 : index
    %27 = vector.load %arg5[%c0_12, %c0_13] : memref<1x128xf32, #tpu.memory_space<vmem>>, vector<1x128xf32>
    %28 = vector.broadcast %27 : vector<1x128xf32> to vector<32x128xf32>
    %29 = arith.mulf %26, %28 : vector<32x128xf32>
    %c0_14 = arith.constant 0 : index
    %c0_15 = arith.constant 0 : index
    %30 = vector.load %arg6[%c0_14, %c0_15] : memref<1x128xf32, #tpu.memory_space<vmem>>, vector<1x128xf32>
    %31 = vector.broadcast %30 : vector<1x128xf32> to vector<32x128xf32>
    %32 = arith.addf %29, %31 : vector<32x128xf32>
    %33 = arith.truncf %32 : vector<32x128xf32> to vector<32x128xbf16>
    %c0_16 = arith.constant 0 : index
    %c0_17 = arith.constant 0 : index
    %34 = vector.load %arg7[%c0_16, %c0_17] : memref<32x128xbf16, #tpu.memory_space<vmem>>, vector<32x128xbf16>
    tpu.vector_store %arg7[%c0_16, %c0_17], %33 {strides = array<i32>} : memref<32x128xbf16, #tpu.memory_space<vmem>>, vector<32x128xbf16>,
    return
  }
  func.func @transform_0(%arg0: i32) -> (i32, i32) {
    %c0_i32 = arith.constant 0 : i32
    %c0_i32_0 = arith.constant 0 : i32
    return %arg0, %c0_i32 : i32, i32
  }
  func.func @transform_1(%arg0: i32) -> (i32, i32) {
    %c0_i32 = arith.constant 0 : i32
    %c0_i32_0 = arith.constant 0 : i32
    %c0_i32_1 = arith.constant 0 : i32
    return %c0_i32, %c0_i32_0 : i32, i32
  }
  func.func @transform_2(%arg0: i32) -> (i32, i32) {
    %c0_i32 = arith.constant 0 : i32
    %c0_i32_0 = arith.constant 0 : i32
    %c0_i32_1 = arith.constant 0 : i32
    return %c0_i32, %c0_i32_0 : i32, i32
  }
  func.func @transform_3(%arg0: i32) -> (i32, i32) {
    %c0_i32 = arith.constant 0 : i32
    %c0_i32_0 = arith.constant 0 : i32
    return %arg0, %c0_i32 : i32, i32
  }
  func.func @transform_4(%arg0: i32) -> (i32, i32) {
    %c0_i32 = arith.constant 0 : i32
    %c0_i32_0 = arith.constant 0 : i32
    %c0_i32_1 = arith.constant 0 : i32
    return %c0_i32, %c0_i32_0 : i32, i32
  }
  func.func @transform_5(%arg0: i32) -> (i32, i32) {
    %c0_i32 = arith.constant 0 : i32
    %c0_i32_0 = arith.constant 0 : i32
    %c0_i32_1 = arith.constant 0 : i32
    return %c0_i32, %c0_i32_0 : i32, i32
  }
  func.func @transform_6(%arg0: i32) -> (i32, i32) {
    %c0_i32 = arith.constant 0 : i32
    %c0_i32_0 = arith.constant 0 : i32
    return %arg0, %c0_i32 : i32, i32
  }
}

module attributes {stable_mosaic.version = 11 : i64} {
  func.func @_linear_kernel(%arg0: i32, %arg1: memref<32x256xbf16, #tpu.memory_space<vmem>>, %arg2: memref<256x128xbf16, #tpu.memory_space<vmem>>, %arg3: memref<1x128xf32, #tpu.memory_space<vmem>>, %arg4: memref<32x128xbf16, #tpu.memory_space<vmem>>, %arg5: memref<1x128xf32, #tpu.memory_space<vmem>>, %arg6: memref<1x128xf32, #tpu.memory_space<vmem>>, %arg7: memref<32x128xbf16, #tpu.memory_space<vmem>>) attributes {dimension_semantics = [#tpu.dimension_semantics<parallel>], iteration_bounds = array<i64: 1>, scalar_prefetch = 0 : i64, scratch_operands = 0 : i64, tpu.core_type = #tpu.core_type<tc>, window_params = [{transform_indices = @transform_0, window_bounds = array<i64: 32, 256>}, {pipeline_mode = #tpu.pipeline_mode<synchronous>, transform_indices = @transform_1, window_bounds = array<i64: 256, 128>}, {pipeline_mode = #tpu.pipeline_mode<synchronous>, transform_indices = @transform_2, window_bounds = array<i64: 1, 128>}, {transform_indices = @transform_3, window_bounds = array<i64: 32, 128>}, {pipeline_mode = #tpu.pipeline_mode<synchronous>, transform_indices = @transform_4, window_bounds = array<i64: 1, 128>}, {pipeline_mode = #tpu.pipeline_mode<synchronous>, transform_indices = @transform_5, window_bounds = array<i64: 1, 128>}, {transform_indices = @transform_6, window_bounds = array<i64: 32, 128>}]} {
    %c0 = arith.constant 0 : index
    %c0_0 = arith.constant 0 : index
    %0 = vector.load %arg1[%c0, %c0_0] : memref<32x256xbf16, #tpu.memory_space<vmem>>, vector<32x256xbf16>
    %c0_1 = arith.constant 0 : index
    %c0_2 = arith.constant 0 : index
    %1 = vector.load %arg2[%c0_1, %c0_2] : memref<256x128xbf16, #tpu.memory_space<vmem>>, vector<256x128xbf16>
    %cst = arith.constant dense<0.000000e+00> : vector<32x128xf32>
    %2 = tpu.matmul %0, %1, %cst {dimension_numbers = #tpu.dot_dimension_numbers<[1], [0], [0], [1], [0, 0, 1, 1], [], []>} : vector<32x256xbf16>, vector<256x128xbf16>, vector<32x128xf32> -> vector<32x128xf32>
    %c0_3 = arith.constant 0 : index
    %c0_4 = arith.constant 0 : index
    %3 = vector.load %arg3[%c0_3, %c0_4] : memref<1x128xf32, #tpu.memory_space<vmem>>, vector<1x128xf32>
    %4 = vector.broadcast %3 : vector<1x128xf32> to vector<32x128xf32>
    %5 = arith.addf %2, %4 : vector<32x128xf32>
    %c0_5 = arith.constant 0 : index
    %c0_6 = arith.constant 0 : index
    %6 = vector.load %arg4[%c0_5, %c0_6] : memref<32x128xbf16, #tpu.memory_space<vmem>>, vector<32x128xbf16>
    %7 = arith.extf %6 : vector<32x128xbf16> to vector<32x128xf32>
    %8 = arith.addf %5, %7 : vector<32x128xf32>
    %cst_7 = arith.constant dense<0.000000e+00> : vector<32xf32>
    %9 = vector.multi_reduction <add>, %8, %cst_7 [1] : vector<32x128xf32> to vector<32xf32>
    %10 = vector.shape_cast %9 : vector<32xf32> to vector<32x1xf32>
    %cst_8 = arith.constant 1.280000e+02 : f32
    %11 = vector.broadcast %cst_8 : f32 to vector<32x1xf32>
    %12 = arith.divf %10, %11 : vector<32x1xf32>
    %13 = vector.broadcast %12 : vector<32x1xf32> to vector<32x128xf32>
    %14 = arith.subf %8, %13 : vector<32x128xf32>
    %15 = arith.mulf %14, %14 : vector<32x128xf32>
    %cst_9 = arith.constant dense<0.000000e+00> : vector<32xf32>
    %16 = vector.multi_reduction <add>, %15, %cst_9 [1] : vector<32x128xf32> to vector<32xf32>
    %17 = vector.shape_cast %16 : vector<32xf32> to vector<32x1xf32>
    %cst_10 = arith.constant 1.280000e+02 : f32
    %18 = vector.broadcast %cst_10 : f32 to vector<32x1xf32>
    %19 = arith.divf %17, %18 : vector<32x1xf32>
    %20 = vector.broadcast %12 : vector<32x1xf32> to vector<32x128xf32>
    %21 = arith.subf %8, %20 : vector<32x128xf32>
    %cst_11 = arith.constant 9.99999974E-6 : f32
    %22 = vector.broadcast %cst_11 : f32 to vector<32x1xf32>
    %23 = arith.addf %19, %22 : vector<32x1xf32>
    %24 = math.rsqrt %23 : vector<32x1xf32>
    %25 = vector.broadcast %24 : vector<32x1xf32> to vector<32x128xf32>
    %26 = arith.mulf %21, %25 : vector<32x128xf32>
    %c0_12 = arith.constant 0 : index
    %c0_13 = arith.constant 0 : index
    %27 = vector.load %arg5[%c0_12, %c0_13] : memref<1x128xf32, #tpu.memory_space<vmem>>, vector<1x128xf32>
    %28 = vector.broadcast %27 : vector<1x128xf32> to vector<32x128xf32>
    %29 = arith.mulf %26, %28 : vector<32x128xf32>
    %c0_14 = arith.constant 0 : index
    %c0_15 = arith.constant 0 : index
    %30 = vector.load %arg6[%c0_14, %c0_15] : memref<1x128xf32, #tpu.memory_space<vmem>>, vector<1x128xf32>
    %31 = vector.broadcast %30 : vector<1x128xf32> to vector<32x128xf32>
    %32 = arith.addf %29, %31 : vector<32x128xf32>
    %33 = arith.truncf %32 : vector<32x128xf32> to vector<32x128xbf16>
    %c0_16 = arith.constant 0 : index
    %c0_17 = arith.constant 0 : index
    %34 = vector.load %arg7[%c0_16, %c0_17] : memref<32x128xbf16, #tpu.memory_space<vmem>>, vector<32x128xbf16>
    tpu.vector_store %arg7[%c0_16, %c0_17], %33 {strides = array<i32>} : memref<32x128xbf16, #tpu.memory_space<vmem>>, vector<32x128xbf16>,
    return
  }
  func.func @transform_0(%arg0: i32) -> (i32, i32) {
    %c0_i32 = arith.constant 0 : i32
    %c0_i32_0 = arith.constant 0 : i32
    return %arg0, %c0_i32 : i32, i32
  }
  func.func @transform_1(%arg0: i32) -> (i32, i32) {
    %c0_i32 = arith.constant 0 : i32
    %c0_i32_0 = arith.constant 0 : i32
    %c0_i32_1 = arith.constant 0 : i32
    return %c0_i32, %c0_i32_0 : i32, i32
  }
  func.func @transform_2(%arg0: i32) -> (i32, i32) {
    %c0_i32 = arith.constant 0 : i32
    %c0_i32_0 = arith.constant 0 : i32
    %c0_i32_1 = arith.constant 0 : i32
    return %c0_i32, %c0_i32_0 : i32, i32
  }
  func.func @transform_3(%arg0: i32) -> (i32, i32) {
    %c0_i32 = arith.constant 0 : i32
    %c0_i32_0 = arith.constant 0 : i32
    return %arg0, %c0_i32 : i32, i32
  }
  func.func @transform_4(%arg0: i32) -> (i32, i32) {
    %c0_i32 = arith.constant 0 : i32
    %c0_i32_0 = arith.constant 0 : i32
    %c0_i32_1 = arith.constant 0 : i32
    return %c0_i32, %c0_i32_0 : i32, i32
  }
  func.func @transform_5(%arg0: i32) -> (i32, i32) {
    %c0_i32 = arith.constant 0 : i32
    %c0_i32_0 = arith.constant 0 : i32
    %c0_i32_1 = arith.constant 0 : i32
    return %c0_i32, %c0_i32_0 : i32, i32
  }
  func.func @transform_6(%arg0: i32) -> (i32, i32) {
    %c0_i32 = arith.constant 0 : i32
    %c0_i32_0 = arith.constant 0 : i32
    return %arg0, %c0_i32 : i32, i32
  }
}

</mosaic_0001>

<llo_original>
// kernel: nst_forward.54
$region0: #{nst_forward.54}
  #allocation0 [shape = 'u32[]', space=smem, size = 0x4, offset = 0x4, fixed_abs, tag = 'smem constant byte address 0x4 - core index']
  #allocation1 [shape = 'u32[72,128]{1,0:T(1,128)}', space=vmem, size = 0x9000, scoped, tag = 'internal scratch']
  %s0 = inlined_call_operand.vmem [shape: bf16[32,192], index: 0, kind: input, shape index: {}]
  %s1 = inlined_call_operand.vmem [shape: bf16[192,128], index: 1, kind: input, shape index: {}]
  %s2 = inlined_call_operand.vmem [shape: f32[1,128], index: 2, kind: input, shape index: {}]
  %s3 = inlined_call_operand.vmem [shape: bf16[32,128], index: 3, kind: output, shape index: {}]
  %s4 = sld [smem:[#allocation0]]
  $region22: #{nst_forward.54} parent=0
    _
  %s6 = ssub.s32 1, %s4
  %s7 = scalar_select 0, %s6, %s4
  // Predicated region
  $region2: #{nst_forward.54} parent=0 // pred_check
    _
  $region3: #{nst_forward.54} parent=0 // pred_check_branch
    %9 = sbr.rel (0) target = $region5
  $region4: #{nst_forward.54} parent=0 // pred_region
    _
  $region5: #{nst_forward.54} parent=0 // pred_fallthru
    _
  // Predicated region
  $region6: #{nst_forward.54} parent=0 // pred_check
    _
  $region7: #{nst_forward.54} parent=0 // pred_check_branch
    %11 = sbr.rel (0) target = $region9
  $region8: #{nst_forward.54} parent=0 // pred_region
    _
  $region9: #{nst_forward.54} parent=0 // pred_fallthru
    _
  // Predicated region
  $region10: #{nst_forward.54} parent=0 // pred_check
    _
  $region11: #{nst_forward.54} parent=0 // pred_check_branch
    %13 = sbr.rel (0) target = $region13
  $region12: #{nst_forward.54} parent=0 // pred_region
    _
  $region13: #{nst_forward.54} parent=0 // pred_fallthru
    _
  %v15 = vld [vmem:[%s0] sm:$0xff]
  %v16 = vld [vmem:[%s0 + $0x8] sm:$0xff]
  %v17 = vld [vmem:[%s0 + $0x10] sm:$0xff]
  %v18 = vld [vmem:[%s0 + $0x18] sm:$0xff]
  %v19 = vld [vmem:[%s1] sm:$0xf]
  %v20 = vld [vmem:[%s1 + $0x4] sm:$0xf]
  %v21 = vld [vmem:[%s1 + $0x8] sm:$0xf]
  %v22 = vld [vmem:[%s1 + $0xc] sm:$0xf]
  %v23 = vld [vmem:[%s1 + $0x10] sm:$0xf]
  %v24 = vld [vmem:[%s1 + $0x14] sm:$0xf]
  %v25 = vld [vmem:[%s1 + $0x18] sm:$0xf]
  %v26 = vld [vmem:[%s1 + $0x1c] sm:$0xf]
  %v27 = vld [vmem:[%s1 + $0x20] sm:$0xf]
  %v28 = vld [vmem:[%s1 + $0x24] sm:$0xf]
  %v29 = vld [vmem:[%s1 + $0x28] sm:$0xf]
  %v30 = vld [vmem:[%s1 + $0x2c] sm:$0xf]
  %v31 = vld [vmem:[%s1 + $0x30] sm:$0xf]
  %v32 = vld [vmem:[%s1 + $0x34] sm:$0xf]
  %v33 = vld [vmem:[%s1 + $0x38] sm:$0xf]
  %v34 = vld [vmem:[%s1 + $0x3c] sm:$0xf]
  %v35 = vld [vmem:[%s1 + $0x40] sm:$0xf]
  %v36 = vld [vmem:[%s1 + $0x44] sm:$0xf]
  %v37 = vld [vmem:[%s1 + $0x48] sm:$0xf]
  %v38 = vld [vmem:[%s1 + $0x4c] sm:$0xf]
  %v39 = vld [vmem:[%s1 + $0x50] sm:$0xf]
  %v40 = vld [vmem:[%s1 + $0x54] sm:$0xf]
  %v41 = vld [vmem:[%s1 + $0x58] sm:$0xf]
  %v42 = vld [vmem:[%s1 + $0x5c] sm:$0xf]
  %v43 = vld [vmem:[%s2] sm:$0x1]
  %v45 = vperm.slane %v43, 0
  %v51 = vunpack.c.l.b16 %v15
  %v52 = vunpack.c.h.b16 %v15
  %v53 = vunpack.c.l.b16 %v16
  %v54 = vunpack.c.h.b16 %v16
  %v55 = vunpack.c.l.b16 %v17
  %v56 = vunpack.c.h.b16 %v17
  %v57 = vunpack.c.l.b16 %v18
  %v58 = vunpack.c.h.b16 %v18
  %v59 = vpack.c.b16 %v53, %v51
  %v60 = vpack.c.b16 %v54, %v52
  %v61 = vpack.c.b16 %v57, %v55
  %v62 = vpack.c.b16 %v58, %v56
  %v89 = vunpack.c.l.b16 %v19
  %v90 = vunpack.c.l.b16 %v20
  %v91 = vunpack.c.l.b16 %v21
  %v92 = vunpack.c.l.b16 %v22
  %v93 = vunpack.c.l.b16 %v23
  %v94 = vunpack.c.l.b16 %v24
  %v95 = vunpack.c.l.b16 %v25
  %v96 = vunpack.c.l.b16 %v26
  %v97 = vunpack.c.l.b16 %v27
  %v98 = vunpack.c.l.b16 %v28
  %v99 = vunpack.c.l.b16 %v29
  %v100 = vunpack.c.l.b16 %v30
  %v101 = vunpack.c.l.b16 %v31
  %v102 = vunpack.c.l.b16 %v32
  %v103 = vunpack.c.l.b16 %v33
  %v104 = vunpack.c.l.b16 %v34
  %v105 = vunpack.c.l.b16 %v35
  %v106 = vunpack.c.l.b16 %v36
  %v107 = vunpack.c.l.b16 %v37
  %v108 = vunpack.c.l.b16 %v38
  %v109 = vunpack.c.l.b16 %v39
  %v110 = vunpack.c.l.b16 %v40
  %v111 = vunpack.c.l.b16 %v41
  %v112 = vunpack.c.l.b16 %v42
  %v113 = vpack.c.b16 %v90, %v89
  %v114 = vpack.c.b16 %v92, %v91
  %v115 = vpack.c.b16 %v94, %v93
  %v116 = vpack.c.b16 %v96, %v95
  %v117 = vpack.c.b16 %v98, %v97
  %v118 = vpack.c.b16 %v100, %v99
  %v119 = vpack.c.b16 %v102, %v101
  %v120 = vpack.c.b16 %v104, %v103
  %v121 = vpack.c.b16 %v106, %v105
  %v122 = vpack.c.b16 %v108, %v107
  %v123 = vpack.c.b16 %v110, %v109
  %v124 = vpack.c.b16 %v112, %v111
  %vm137 = vcmask 523264
  %v139 = vsel %vm137, %v60, 0
  %v142 = vsel %vm137, %v62, 0
  %144 = vmatpush.bf16.msra.mxu0 %v120
  %145 = vmatpush.bf16.msra.mxu0 %v119
  %146 = vmatpush.bf16.msra.mxu0 %v118
  %147 = vmatpush.bf16.msra.mxu0 %v117
  %148 = vmatpush.bf16.msra.mxu0 %v116
  %149 = vmatpush.bf16.msra.mxu0 %v115
  %150 = vmatpush.bf16.msra.mxu0 %v114
  %151 = vmatpush.bf16.msra.mxu0 %v113
  %152 = vmatmul.bf16.gmra.mxu0 %v59
  %v153 = vpop.f32.mrf.mxu0
  %v154 = vadd.f32 %v45, %v153
  %v155 = vpop.f32.mrf.mxu0
  %v156 = vadd.f32 %v45, %v155
  %157 = vmatmul.bf16.gmra.mxu0 %v61
  %v158 = vpop.f32.mrf.mxu0
  %v159 = vadd.f32 %v45, %v158
  %v160 = vpop.f32.mrf.mxu0
  %v161 = vadd.f32 %v45, %v160
  %162 = vdwg.mxu0
  %163 = vmatpush.bf16.msra.mxu0 0
  %164 = vmatpush.bf16.msra.mxu0 0
  %165 = vmatpush.bf16.msra.mxu0 0
  %166 = vmatpush.bf16.msra.mxu0 0
  %167 = vmatpush.bf16.msra.mxu0 %v124
  %168 = vmatpush.bf16.msra.mxu0 %v123
  %169 = vmatpush.bf16.msra.mxu0 %v122
  %170 = vmatpush.bf16.msra.mxu0 %v121
  %171 = vmatmul.bf16.gmra.mxu0 %v139
  %v172 = vpop.f32.mrf.mxu0
  %v173 = vadd.f32 %v154, %v172
  %v174 = vpop.f32.mrf.mxu0
  %v175 = vadd.f32 %v156, %v174
  %176 = vmatmul.bf16.gmra.mxu0 %v142
  %v177 = vpop.f32.mrf.mxu0
  %v178 = vadd.f32 %v159, %v177
  %v179 = vpop.f32.mrf.mxu0
  %v180 = vadd.f32 %v161, %v179
  %181 = vdwg.mxu0
  %v182 = vpack.c.bf16 %v173, %v173
  %v183 = vpack.c.bf16 %v175, %v175
  %v184 = vpack.c.bf16 %v178, %v178
  %v185 = vpack.c.bf16 %v180, %v180
  %186 = vst [vmem:[%s3] sm:$0xf] %v182
  %187 = vst [vmem:[%s3 + $0x4] sm:$0xf] %v183
  %188 = vst [vmem:[%s3 + $0x8] sm:$0xf] %v184
  %189 = vst [vmem:[%s3 + $0xc] sm:$0xf] %v185
  // Predicated region
  $region14: #{nst_forward.54} parent=0 // pred_check
    _
  $region15: #{nst_forward.54} parent=0 // pred_check_branch
    %191 = sbr.rel (0) target = $region17
  $region16: #{nst_forward.54} parent=0 // pred_region
    _
  $region17: #{nst_forward.54} parent=0 // pred_fallthru
    _
  // Predicated region
  $region18: #{nst_forward.54} parent=0 // pred_check
    _
  $region19: #{nst_forward.54} parent=0 // pred_check_branch
    %193 = sbr.rel (0) target = $region21
  $region20: #{nst_forward.54} parent=0 // pred_region
    _
  $region21: #{nst_forward.54} parent=0 // pred_fallthru
    _

// kernel: nst_forward.55
$region0: #{nst_forward.55}
  #allocation0 [shape = 'u32[]', space=smem, size = 0x4, offset = 0x4, fixed_abs, tag = 'smem constant byte address 0x4 - core index']
  #allocation1 [shape = 'u32[72,128]{1,0:T(1,128)}', space=vmem, size = 0x9000, scoped, tag = 'internal scratch']
  %s0 = inlined_call_operand.vmem [shape: bf16[32,128], index: 0, kind: input, shape index: {}]
  %s1 = inlined_call_operand.vmem [shape: bf16[128,128], index: 1, kind: input, shape index: {}]
  %s2 = inlined_call_operand.vmem [shape: f32[1,128], index: 2, kind: input, shape index: {}]
  %s3 = inlined_call_operand.vmem [shape: bf16[32,128], index: 3, kind: output, shape index: {}]
  %s4 = sld [smem:[#allocation0]]
  $region22: #{nst_forward.55} parent=0
    _
  %s6 = ssub.s32 1, %s4
  %s7 = scalar_select 0, %s6, %s4
  // Predicated region
  $region2: #{nst_forward.55} parent=0 // pred_check
    _
  $region3: #{nst_forward.55} parent=0 // pred_check_branch
    %9 = sbr.rel (0) target = $region5
  $region4: #{nst_forward.55} parent=0 // pred_region
    _
  $region5: #{nst_forward.55} parent=0 // pred_fallthru
    _
  // Predicated region
  $region6: #{nst_forward.55} parent=0 // pred_check
    _
  $region7: #{nst_forward.55} parent=0 // pred_check_branch
    %11 = sbr.rel (0) target = $region9
  $region8: #{nst_forward.55} parent=0 // pred_region
    _
  $region9: #{nst_forward.55} parent=0 // pred_fallthru
    _
  // Predicated region
  $region10: #{nst_forward.55} parent=0 // pred_check
    _
  $region11: #{nst_forward.55} parent=0 // pred_check_branch
    %13 = sbr.rel (0) target = $region13
  $region12: #{nst_forward.55} parent=0 // pred_region
    _
  $region13: #{nst_forward.55} parent=0 // pred_fallthru
    _
  %v14 = vld [vmem:[%s0] sm:$0xf]
  %v15 = vld [vmem:[%s0 + $0x4] sm:$0xf]
  %v16 = vld [vmem:[%s0 + $0x8] sm:$0xf]
  %v17 = vld [vmem:[%s0 + $0xc] sm:$0xf]
  %v18 = vld [vmem:[%s1] sm:$0xf]
  %v19 = vld [vmem:[%s1 + $0x4] sm:$0xf]
  %v20 = vld [vmem:[%s1 + $0x8] sm:$0xf]
  %v21 = vld [vmem:[%s1 + $0xc] sm:$0xf]
  %v22 = vld [vmem:[%s1 + $0x10] sm:$0xf]
  %v23 = vld [vmem:[%s1 + $0x14] sm:$0xf]
  %v24 = vld [vmem:[%s1 + $0x18] sm:$0xf]
  %v25 = vld [vmem:[%s1 + $0x1c] sm:$0xf]
  %v26 = vld [vmem:[%s1 + $0x20] sm:$0xf]
  %v27 = vld [vmem:[%s1 + $0x24] sm:$0xf]
  %v28 = vld [vmem:[%s1 + $0x28] sm:$0xf]
  %v29 = vld [vmem:[%s1 + $0x2c] sm:$0xf]
  %v30 = vld [vmem:[%s1 + $0x30] sm:$0xf]
  %v31 = vld [vmem:[%s1 + $0x34] sm:$0xf]
  %v32 = vld [vmem:[%s1 + $0x38] sm:$0xf]
  %v33 = vld [vmem:[%s1 + $0x3c] sm:$0xf]
  %v34 = vld [vmem:[%s2] sm:$0x1]
  %v36 = vperm.slane %v34, 0
  %v42 = vunpack.c.l.b16 %v14
  %v43 = vunpack.c.l.b16 %v15
  %v44 = vunpack.c.l.b16 %v16
  %v45 = vunpack.c.l.b16 %v17
  %v46 = vpack.c.b16 %v43, %v42
  %v47 = vpack.c.b16 %v45, %v44
  %v66 = vunpack.c.l.b16 %v18
  %v67 = vunpack.c.l.b16 %v19
  %v68 = vunpack.c.l.b16 %v20
  %v69 = vunpack.c.l.b16 %v21
  %v70 = vunpack.c.l.b16 %v22
  %v71 = vunpack.c.l.b16 %v23
  %v72 = vunpack.c.l.b16 %v24
  %v73 = vunpack.c.l.b16 %v25
  %v74 = vunpack.c.l.b16 %v26
  %v75 = vunpack.c.l.b16 %v27
  %v76 = vunpack.c.l.b16 %v28
  %v77 = vunpack.c.l.b16 %v29
  %v78 = vunpack.c.l.b16 %v30
  %v79 = vunpack.c.l.b16 %v31
  %v80 = vunpack.c.l.b16 %v32
  %v81 = vunpack.c.l.b16 %v33
  %v82 = vpack.c.b16 %v67, %v66
  %v83 = vpack.c.b16 %v69, %v68
  %v84 = vpack.c.b16 %v71, %v70
  %v85 = vpack.c.b16 %v73, %v72
  %v86 = vpack.c.b16 %v75, %v74
  %v87 = vpack.c.b16 %v77, %v76
  %v88 = vpack.c.b16 %v79, %v78
  %v89 = vpack.c.b16 %v81, %v80
  %98 = vmatpush.bf16.msra.mxu0 %v89
  %99 = vmatpush.bf16.msra.mxu0 %v88
  %100 = vmatpush.bf16.msra.mxu0 %v87
  %101 = vmatpush.bf16.msra.mxu0 %v86
  %102 = vmatpush.bf16.msra.mxu0 %v85
  %103 = vmatpush.bf16.msra.mxu0 %v84
  %104 = vmatpush.bf16.msra.mxu0 %v83
  %105 = vmatpush.bf16.msra.mxu0 %v82
  %106 = vmatmul.bf16.gmra.mxu0 %v46
  %v107 = vpop.f32.mrf.mxu0
  %v108 = vadd.f32 %v36, %v107
  %v109 = vpop.f32.mrf.mxu0
  %v110 = vadd.f32 %v36, %v109
  %111 = vmatmul.bf16.gmra.mxu0 %v47
  %v112 = vpop.f32.mrf.mxu0
  %v113 = vadd.f32 %v36, %v112
  %v114 = vpop.f32.mrf.mxu0
  %v115 = vadd.f32 %v36, %v114
  %116 = vdwg.mxu0
  %v117 = vpack.c.bf16 %v108, %v108
  %v118 = vpack.c.bf16 %v110, %v110
  %v119 = vpack.c.bf16 %v113, %v113
  %v120 = vpack.c.bf16 %v115, %v115
  %121 = vst [vmem:[%s3] sm:$0xf] %v117
  %122 = vst [vmem:[%s3 + $0x4] sm:$0xf] %v118
  %123 = vst [vmem:[%s3 + $0x8] sm:$0xf] %v119
  %124 = vst [vmem:[%s3 + $0xc] sm:$0xf] %v120
  // Predicated region
  $region14: #{nst_forward.55} parent=0 // pred_check
    _
  $region15: #{nst_forward.55} parent=0 // pred_check_branch
    %126 = sbr.rel (0) target = $region17
  $region16: #{nst_forward.55} parent=0 // pred_region
    _
  $region17: #{nst_forward.55} parent=0 // pred_fallthru
    _
  // Predicated region
  $region18: #{nst_forward.55} parent=0 // pred_check
    _
  $region19: #{nst_forward.55} parent=0 // pred_check_branch
    %128 = sbr.rel (0) target = $region21
  $region20: #{nst_forward.55} parent=0 // pred_region
    _
  $region21: #{nst_forward.55} parent=0 // pred_fallthru
    _

// kernel: nst_forward.58
$region0: #{nst_forward.58}
  #allocation0 [shape = 'u32[]', space=smem, size = 0x4, offset = 0x4, fixed_abs, tag = 'smem constant byte address 0x4 - core index']
  #allocation1 [shape = 'u32[72,128]{1,0:T(1,128)}', space=vmem, size = 0x9000, scoped, tag = 'internal scratch']
  %s0 = inlined_call_operand.vmem [shape: bf16[2,16,128], index: 0, kind: input, shape index: {}]
  %s1 = inlined_call_operand.vmem [shape: bf16[2,16,128], index: 1, kind: input, shape index: {}]
  %s2 = inlined_call_operand.vmem [shape: bf16[2,16,128], index: 2, kind: input, shape index: {}]
  %s3 = inlined_call_operand.vmem [shape: bf16[2,16,128], index: 3, kind: output, shape index: {}]
  %s4 = sld [smem:[#allocation0]]
  $region45: #{nst_forward.58} parent=0
    _
  %s6 = ssub.s32 1, %s4
  %s7 = scalar_select 0, %s6, %s4
  loop: start=0, step=1, limit=4
  $region2: #{nst_forward.58} parent=0 // loop_pre_header
    _
  $region3: #{nst_forward.58} parent=0 // loop_header
    %s9 = sphi 0, %s13
    %p10 = scmp.ge.s32.totalorder %s9, 4
    %s16 = sphi 0, %s28
    %s17 = sphi 0, %s24
    %s18 = sphi 0, %s16
    %s19 = sphi 0, %s17
    %s20 = sphi 0, %s18
    %s21 = sphi 0, %s19
    %s33 = sphi 0, %s35
    %s36 = sphi 0, %s33
    %s37 = sphi 0, %s36
    %s53 = sphi 0, %s37
    %s59 = sphi 0, %s61
    %s62 = sphi 0, %s59
    %s63 = sphi 0, %s62
    %s79 = sphi 0, %s63
    %s85 = sphi 0, %s87
    %s88 = sphi 0, %s85
    %s89 = sphi 0, %s88
    %s105 = sphi 0, %s89
    %s113 = sphi 0, %s115
    %s116 = sphi 0, %s113
    %s117 = sphi 0, %s116
    %s133 = sphi 0, %s117
  $region4: #{nst_forward.58} parent=0 // loop_header_branch
    %12 = sbr.rel (%p10) target = $region8
  $region5: #{nst_forward.58} parent=0 // loop_body
    %s14 = ssub.s32 %s9, 1
    %s15 = ssub.s32 %s9, 2
    %s22 = sadd.s32 1, %s17
    %p23 = scmp.ge.s32.totalorder %s22, 1
    %s24 = scalar_select %p23, 0, %s22
    %s25 = sadd.s32 1, %s16
    %s26 = scalar_select %p23, %s25, %s16
    %p27 = scmp.ge.s32.totalorder %s26, 2
    %s28 = scalar_select %p27, 0, %s26
    %s29 = ssub.s32 %s16, %s28
    %s30 = ssub.s32 %s17, %s24
    %s31 = sor.u32 %s29, %s30
    %p32 = scmp.eq.s32.totalorder %s31, 0
    %s34 = sadd.s32 %s33, 1
    %s35 = scalar_select %p32, %s33, %s34
    %p38 = pneg %p32
    %p39 = scmp.eq.s32.totalorder %s9, 1
    %p40 = por %p38, %p39
    %p41 = scmp.ne.s32.totalorder %s33, %s36
    %p42 = scmp.eq.s32.totalorder %s9, 0
    %p43 = por %p41, %p42
    %p44 = scmp.ne.s32.totalorder %s33, %s36
    %p45 = scmp.eq.s32.totalorder %s14, 1
    %p46 = por %p44, %p45
    %p47 = scmp.ne.s32.totalorder %s36, %s37
    %p48 = scmp.eq.s32.totalorder %s14, 0
    %p49 = por %p47, %p48
    %p50 = scmp.ne.s32.totalorder %s36, %s37
    %p51 = scmp.eq.s32.totalorder %s15, 1
    %p52 = por %p50, %p51
    %p54 = scmp.ne.s32.totalorder %s37, %s53
    %p55 = scmp.eq.s32.totalorder %s15, 0
    %p56 = por %p54, %p55
    %s57 = ssub.s32 %s16, %s28
    %p58 = scmp.eq.s32.totalorder %s57, 0
    %s60 = sadd.s32 %s59, 1
    %s61 = scalar_select %p58, %s59, %s60
    %p64 = pneg %p58
    %p65 = scmp.eq.s32.totalorder %s9, 1
    %p66 = por %p64, %p65
    %p67 = scmp.ne.s32.totalorder %s59, %s62
    %p68 = scmp.eq.s32.totalorder %s9, 0
    %p69 = por %p67, %p68
    %p70 = scmp.ne.s32.totalorder %s59, %s62
    %p71 = scmp.eq.s32.totalorder %s14, 1
    %p72 = por %p70, %p71
    %p73 = scmp.ne.s32.totalorder %s62, %s63
    %p74 = scmp.eq.s32.totalorder %s14, 0
    %p75 = por %p73, %p74
    %p76 = scmp.ne.s32.totalorder %s62, %s63
    %p77 = scmp.eq.s32.totalorder %s15, 1
    %p78 = por %p76, %p77
    %p80 = scmp.ne.s32.totalorder %s63, %s79
    %p81 = scmp.eq.s32.totalorder %s15, 0
    %p82 = por %p80, %p81
    %s83 = ssub.s32 %s16, %s28
    %p84 = scmp.eq.s32.totalorder %s83, 0
    %s86 = sadd.s32 %s85, 1
    %s87 = scalar_select %p84, %s85, %s86
    %p90 = pneg %p84
    %p91 = scmp.eq.s32.totalorder %s9, 1
    %p92 = por %p90, %p91
    %p93 = scmp.ne.s32.totalorder %s85, %s88
    %p94 = scmp.eq.s32.totalorder %s9, 0
    %p95 = por %p93, %p94
    %p96 = scmp.ne.s32.totalorder %s85, %s88
    %p97 = scmp.eq.s32.totalorder %s14, 1
    %p98 = por %p96, %p97
    %p99 = scmp.ne.s32.totalorder %s88, %s89
    %p100 = scmp.eq.s32.totalorder %s14, 0
    %p101 = por %p99, %p100
    %p102 = scmp.ne.s32.totalorder %s88, %s89
    %p103 = scmp.eq.s32.totalorder %s15, 1
    %p104 = por %p102, %p103
    %p106 = scmp.ne.s32.totalorder %s89, %s105
    %p107 = scmp.eq.s32.totalorder %s15, 0
    %p108 = por %p106, %p107
    %s109 = ssub.s32 %s16, %s28
    %s110 = ssub.s32 %s17, %s24
    %s111 = sor.u32 %s109, %s110
    %p112 = scmp.eq.s32.totalorder %s111, 0
    %s114 = sadd.s32 %s113, 1
    %s115 = scalar_select %p112, %s113, %s114
    %p118 = pneg %p112
    %p119 = scmp.eq.s32.totalorder %s9, 1
    %p120 = por %p118, %p119
    %p121 = scmp.ne.s32.totalorder %s113, %s116
    %p122 = scmp.eq.s32.totalorder %s9, 0
    %p123 = por %p121, %p122
    %p124 = scmp.ne.s32.totalorder %s113, %s116
    %p125 = scmp.eq.s32.totalorder %s14, 1
    %p126 = por %p124, %p125
    %p127 = scmp.ne.s32.totalorder %s116, %s117
    %p128 = scmp.eq.s32.totalorder %s14, 0
    %p129 = por %p127, %p128
    %p130 = scmp.ne.s32.totalorder %s116, %s117
    %p131 = scmp.eq.s32.totalorder %s15, 1
    %p132 = por %p130, %p131
    %p134 = scmp.ne.s32.totalorder %s117, %s133
    %p135 = scmp.eq.s32.totalorder %s15, 0
    %p136 = por %p134, %p135
    %p137 = scmp.le.s32.totalorder 1, %s9
    %p138 = scmp.lt.s32.totalorder %s9, 3
    %p139 = pnand %p137, %p138
    %p140 = pneg %p139
    // Predicated region
    $region9: #{nst_forward.58} parent=5 // pred_check
      _
    $region10: #{nst_forward.58} parent=5 // pred_check_branch
      %142 = sbr.rel (%p139) target = $region12
    $region11: #{nst_forward.58} parent=5 // pred_region
      %s143 = ssub.s32 %s9, 1
    $region12: #{nst_forward.58} parent=5 // pred_fallthru
      _
    %p144 = scmp.lt.s32.totalorder %s9, 2
    // Predicated region
    $region13: #{nst_forward.58} parent=5 // pred_check
      %p145 = pneg %p144
    $region14: #{nst_forward.58} parent=5 // pred_check_branch
      %147 = sbr.rel (%p145) target = $region16
    $region15: #{nst_forward.58} parent=5 // pred_region
      // Predicated region
      $region17: #{nst_forward.58} parent=15 // pred_check
        %p148 = pneg %p43
      $region18: #{nst_forward.58} parent=15 // pred_check_branch
        %150 = sbr.rel (%p148) target = $region20
      $region19: #{nst_forward.58} parent=15 // pred_region
        %s151 = smul.u32 2, %s17
        %p152 = scmp.lt.s32.totalorder %s16, 1
        %s153 = scalar_select %p152, %s16, 1
        %p154 = scmp.lt.s32.totalorder %s151, 1
        %s155 = scalar_select %p154, %s151, 1
        %s156 = smul.addr %s153, 2
        %s157 = sadd.s32 %s155, %s156
        %s158 = smul.addr %s157, 4
        %s159 = scalar_lea.vmem %s0, %s158
        %s160 = smul.u32 2, %s17
      $region20: #{nst_forward.58} parent=15 // pred_fallthru
        _
      // Predicated region
      $region21: #{nst_forward.58} parent=15 // pred_check
        %p161 = pneg %p69
      $region22: #{nst_forward.58} parent=15 // pred_check_branch
        %163 = sbr.rel (%p161) target = $region24
      $region23: #{nst_forward.58} parent=15 // pred_region
        %p164 = scmp.lt.s32.totalorder %s16, 1
        %s165 = scalar_select %p164, %s16, 1
        %s166 = smul.addr %s165, 2
        %s167 = smul.addr %s166, 4
        %s168 = scalar_lea.vmem %s1, %s167
      $region24: #{nst_forward.58} parent=15 // pred_fallthru
        _
      // Predicated region
      $region25: #{nst_forward.58} parent=15 // pred_check
        %p169 = pneg %p95
      $region26: #{nst_forward.58} parent=15 // pred_check_branch
        %171 = sbr.rel (%p169) target = $region28
      $region27: #{nst_forward.58} parent=15 // pred_region
        %p172 = scmp.lt.s32.totalorder %s16, 1
        %s173 = scalar_select %p172, %s16, 1
        %s174 = smul.addr %s173, 2
        %s175 = smul.addr %s174, 4
        %s176 = scalar_lea.vmem %s2, %s175
      $region28: #{nst_forward.58} parent=15 // pred_fallthru
        _
    $region16: #{nst_forward.58} parent=5 // pred_fallthru
      _
    %p177 = scmp.le.s32.totalorder 1, %s9
    %p178 = scmp.lt.s32.totalorder %s9, 3
    %p179 = pnand %p177, %p178
    %p180 = pneg %p179
    // Predicated region
    $region29: #{nst_forward.58} parent=5 // pred_check
      _
    $region30: #{nst_forward.58} parent=5 // pred_check_branch
      %182 = sbr.rel (%p179) target = $region32
    $region31: #{nst_forward.58} parent=5 // pred_region
      %s183 = ssub.s32 %s9, 1
      %s184 = smul.u32 2, %s19
      %p185 = scmp.lt.s32.totalorder %s18, 1
      %s186 = scalar_select %p185, %s18, 1
      %p187 = scmp.lt.s32.totalorder %s184, 1
      %s188 = scalar_select %p187, %s184, 1
      %s189 = smul.addr %s186, 2
      %s190 = sadd.s32 %s188, %s189
      %s191 = smul.addr %s190, 4
      %s192 = scalar_lea.vmem %s0, %s191
      %p193 = pneg %p49
      %p194 = pneg %p46
      %p195 = scmp.lt.s32.totalorder %s18, 1
      %s196 = scalar_select %p195, %s18, 1
      %s197 = smul.addr %s196, 2
      %s198 = smul.addr %s197, 4
      %s199 = scalar_lea.vmem %s1, %s198
      %p200 = pneg %p75
      %p201 = pneg %p72
      %p202 = scmp.lt.s32.totalorder %s18, 1
      %s203 = scalar_select %p202, %s18, 1
      %s204 = smul.addr %s203, 2
      %s205 = smul.addr %s204, 4
      %s206 = scalar_lea.vmem %s2, %s205
      %p207 = pneg %p101
      %p208 = pneg %p98
      %p209 = pneg %p129
      %p210 = pneg %p126
      %s211 = smul.u32 2, %s19
      %p212 = scmp.lt.s32.totalorder %s18, 1
      %s213 = scalar_select %p212, %s18, 1
      %p214 = scmp.lt.s32.totalorder %s211, 1
      %s215 = scalar_select %p214, %s211, 1
      %s216 = smul.addr %s213, 2
      %s217 = sadd.s32 %s215, %s216
      %s218 = smul.addr %s217, 4
      %s219 = scalar_lea.vmem %s3, %s218
      %s220 = smul.u32 2, %s19
      %p221 = scmp.lt.s32.totalorder %s18, 1
      %s222 = scalar_select %p221, %s18, 1
      %p223 = scmp.lt.s32.totalorder %s220, 1
      %s224 = scalar_select %p223, %s220, 1
      %s225 = smul.addr %s222, 2
      %s226 = sadd.s32 %s224, %s225
      %s227 = smul.addr %s226, 4
      %s228 = scalar_lea.vmem %s0, %s227
      %s229 = smul.u32 2, %s19
      %p230 = scmp.lt.s32.totalorder %s18, 1
      %s231 = scalar_select %p230, %s18, 1
      %s232 = smul.addr %s231, 2
      %s233 = smul.addr %s232, 4
      %s234 = scalar_lea.vmem %s1, %s233
      %p235 = scmp.lt.s32.totalorder %s18, 1
      %s236 = scalar_select %p235, %s18, 1
      %s237 = smul.addr %s236, 2
      %s238 = smul.addr %s237, 4
      %s239 = scalar_lea.vmem %s2, %s238
      %s240 = smul.u32 2, %s19
      %p241 = scmp.lt.s32.totalorder %s18, 1
      %s242 = scalar_select %p241, %s18, 1
      %p243 = scmp.lt.s32.totalorder %s240, 1
      %s244 = scalar_select %p243, %s240, 1
      %s245 = smul.addr %s242, 2
      %s246 = sadd.s32 %s244, %s245
      %s247 = smul.addr %s246, 4
      %s248 = scalar_lea.vmem %s3, %s247
      %s249 = smul.u32 2, %s19
      %v251 = vld [vmem:[%s228] sm:$0xf]
      %v252 = vld [vmem:[%s228 + $0x4] sm:$0xf]
      %v253 = vunpack.c.l.bf16 %v251
      %v254 = vunpack.c.l.bf16 %v252
      %v255 = vmul.f32 %v253, 0.17675781
      %v256 = vmul.f32 %v254, 0.17675781
      %v257 = vpack.c.bf16 %v255, %v255
      %v258 = vpack.c.bf16 %v256, %v256
      %v259 = vld [vmem:[%s234] sm:$0xf]
      %v260 = vld [vmem:[%s234 + $0x4] sm:$0xf]
      %v261 = vld [vmem:[%s239] sm:$0xf]
      %v262 = vld [vmem:[%s239 + $0x4] sm:$0xf]
      %v265 = vunpack.c.l.b16 %v257
      %v266 = vunpack.c.l.b16 %v258
      %v267 = vpack.c.b16 %v266, %v265
      %v270 = vunpack.c.l.b16 %v259
      %v271 = vunpack.c.l.b16 %v260
      %v272 = vpack.c.b16 %v271, %v270
      %vm273 = vcmask 261120
      %v275 = vsel %vm273, %v267, 0
      %v278 = vsel %vm273, %v272, 0
      %280 = vmatpush.bf16.xpose.msra.mxu0 0
      %281 = vmatpush.bf16.xpose.msra.mxu0 0
      %282 = vmatpush.bf16.xpose.msra.mxu0 0
      %283 = vmatpush.bf16.xpose.msra.mxu0 0
      %284 = vmatpush.bf16.xpose.msra.mxu0 0
      %285 = vmatpush.bf16.xpose.msra.mxu0 0
      %286 = vmatpush.bf16.xpose.msra.mxu0 0
      %287 = vmatpush.bf16.xpose.msra.mxu0 %v278
      %288 = vmatmul.bf16.gmra.mxu0 %v275
      %v289 = vpop.f32.mrf.mxu0
      %v290 = vadd.f32 0.0, %v289
      %v291 = vpop.f32.mrf.mxu0
      %v292 = vadd.f32 0.0, %v291
      %293 = vdwg.mxu0
      %vm294 = vcmask 130048
      %v295 = vsel %vm294, %v290, -inf
      %296 = vmax.xlane.f32.xlu0 %v295
      %v297 = vpop.xlane.xlu0 %296
      %v298 = vsel %vm294, %v292, -inf
      %299 = vmax.xlane.f32.xlu0 %v298
      %v300 = vpop.xlane.xlu0 %299
      %v301 = vsub.f32 %v290, %v297
      %v302 = vsub.f32 %v292, %v300
      %v303 = vmul.f32 %v301, 1.442695
      %v304 = vpow.pop %v303
      %v305 = vmul.f32 %v302, 1.442695
      %v306 = vpow.pop %v305
      %v307 = vsel %vm294, %v304, 0.0
      %308 = vadd.xlane.f32.xlu0 %v307
      %v309 = vpop.xlane.xlu0 %308
      %v310 = vsel %vm294, %v306, 0.0
      %311 = vadd.xlane.f32.xlu0 %v310
      %v312 = vpop.xlane.xlu0 %311
      %v313 = vrcp.pop %v309
      %v314 = vrcp.pop %v312
      %v315 = vmul.f32 %v304, %v313
      %v316 = vmul.f32 %v306, %v314
      %v317 = vpack.c.bf16 %v316, %v315
      %v320 = vunpack.c.l.b16 %v261
      %v321 = vunpack.c.l.b16 %v262
      %v322 = vpack.c.b16 %v321, %v320
      %v325 = vsel %vm294, %v317, 0
      %327 = vmatpush.bf16.msra.mxu0 0
      %328 = vmatpush.bf16.msra.mxu0 0
      %329 = vmatpush.bf16.msra.mxu0 0
      %330 = vmatpush.bf16.msra.mxu0 0
      %331 = vmatpush.bf16.msra.mxu0 0
      %332 = vmatpush.bf16.msra.mxu0 0
      %333 = vmatpush.bf16.msra.mxu0 0
      %334 = vmatpush.bf16.msra.mxu0 %v322
      %335 = vmatmul.bf16.gmra.mxu0 %v325
      %v336 = vpop.f32.mrf.mxu0
      %v337 = vadd.f32 0.0, %v336
      %v338 = vpop.f32.mrf.mxu0
      %v339 = vadd.f32 0.0, %v338
      %340 = vdwg.mxu0
      %341 = vrot.lane.b32.xlu0 %v267, 96
      %v342 = vpop.permute.xlu0 %341
      %343 = vrot.lane.b32.xlu0 %v272, 96
      %v344 = vpop.permute.xlu0 %343
      %v346 = vsel %vm273, %v342, 0
      %v349 = vsel %vm273, %v344, 0
      %351 = vmatpush.bf16.xpose.msra.mxu0 0
      %352 = vmatpush.bf16.xpose.msra.mxu0 0
      %353 = vmatpush.bf16.xpose.msra.mxu0 0
      %354 = vmatpush.bf16.xpose.msra.mxu0 0
      %355 = vmatpush.bf16.xpose.msra.mxu0 0
      %356 = vmatpush.bf16.xpose.msra.mxu0 0
      %357 = vmatpush.bf16.xpose.msra.mxu0 0
      %358 = vmatpush.bf16.xpose.msra.mxu0 %v349
      %359 = vmatmul.bf16.gmra.mxu0 %v346
      %v360 = vpop.f32.mrf.mxu0
      %v361 = vadd.f32 0.0, %v360
      %v362 = vpop.f32.mrf.mxu0
      %v363 = vadd.f32 0.0, %v362
      %364 = vdwg.mxu0
      %v365 = vsel %vm294, %v361, -inf
      %366 = vmax.xlane.f32.xlu0 %v365
      %v367 = vpop.xlane.xlu0 %366
      %v368 = vsel %vm294, %v363, -inf
      %369 = vmax.xlane.f32.xlu0 %v368
      %v370 = vpop.xlane.xlu0 %369
      %v371 = vsub.f32 %v361, %v367
      %v372 = vsub.f32 %v363, %v370
      %v373 = vmul.f32 %v371, 1.442695
      %v374 = vpow.pop %v373
      %v375 = vmul.f32 %v372, 1.442695
      %v376 = vpow.pop %v375
      %v377 = vsel %vm294, %v374, 0.0
      %378 = vadd.xlane.f32.xlu0 %v377
      %v379 = vpop.xlane.xlu0 %378
      %v380 = vsel %vm294, %v376, 0.0
      %381 = vadd.xlane.f32.xlu0 %v380
      %v382 = vpop.xlane.xlu0 %381
      %v383 = vrcp.pop %v379
      %v384 = vrcp.pop %v382
      %v385 = vmul.f32 %v374, %v383
      %v386 = vmul.f32 %v376, %v384
      %v387 = vpack.c.bf16 %v386, %v385
      %388 = vrot.lane.b32.xlu0 %v322, 96
      %v389 = vpop.permute.xlu0 %388
      %v392 = vsel %vm294, %v387, 0
      %394 = vmatpush.bf16.msra.mxu0 0
      %395 = vmatpush.bf16.msra.mxu0 0
      %396 = vmatpush.bf16.msra.mxu0 0
      %397 = vmatpush.bf16.msra.mxu0 0
      %398 = vmatpush.bf16.msra.mxu0 0
      %399 = vmatpush.bf16.msra.mxu0 0
      %400 = vmatpush.bf16.msra.mxu0 0
      %401 = vmatpush.bf16.msra.mxu0 %v389
      %402 = vmatmul.bf16.gmra.mxu0 %v392
      %v403 = vpop.f32.mrf.mxu0
      %v404 = vadd.f32 0.0, %v403
      %v405 = vpop.f32.mrf.mxu0
      %v406 = vadd.f32 0.0, %v405
      %407 = vdwg.mxu0
      %408 = vrot.lane.b32.xlu0 %v267, 64
      %v409 = vpop.permute.xlu0 %408
      %410 = vrot.lane.b32.xlu0 %v272, 64
      %v411 = vpop.permute.xlu0 %410
      %v413 = vsel %vm273, %v409, 0
      %v416 = vsel %vm273, %v411, 0
      %418 = vmatpush.bf16.xpose.msra.mxu0 0
      %419 = vmatpush.bf16.xpose.msra.mxu0 0
      %420 = vmatpush.bf16.xpose.msra.mxu0 0
      %421 = vmatpush.bf16.xpose.msra.mxu0 0
      %422 = vmatpush.bf16.xpose.msra.mxu0 0
      %423 = vmatpush.bf16.xpose.msra.mxu0 0
      %424 = vmatpush.bf16.xpose.msra.mxu0 0
      %425 = vmatpush.bf16.xpose.msra.mxu0 %v416
      %426 = vmatmul.bf16.gmra.mxu0 %v413
      %v427 = vpop.f32.mrf.mxu0
      %v428 = vadd.f32 0.0, %v427
      %v429 = vpop.f32.mrf.mxu0
      %v430 = vadd.f32 0.0, %v429
      %431 = vdwg.mxu0
      %v432 = vsel %vm294, %v428, -inf
      %433 = vmax.xlane.f32.xlu0 %v432
      %v434 = vpop.xlane.xlu0 %433
      %v435 = vsel %vm294, %v430, -inf
      %436 = vmax.xlane.f32.xlu0 %v435
      %v437 = vpop.xlane.xlu0 %436
      %v438 = vsub.f32 %v428, %v434
      %v439 = vsub.f32 %v430, %v437
      %v440 = vmul.f32 %v438, 1.442695
      %v441 = vpow.pop %v440
      %v442 = vmul.f32 %v439, 1.442695
      %v443 = vpow.pop %v442
      %v444 = vsel %vm294, %v441, 0.0
      %445 = vadd.xlane.f32.xlu0 %v444
      %v446 = vpop.xlane.xlu0 %445
      %v447 = vsel %vm294, %v443, 0.0
      %448 = vadd.xlane.f32.xlu0 %v447
      %v449 = vpop.xlane.xlu0 %448
      %v450 = vrcp.pop %v446
      %v451 = vrcp.pop %v449
      %v452 = vmul.f32 %v441, %v450
      %v453 = vmul.f32 %v443, %v451
      %v454 = vpack.c.bf16 %v453, %v452
      %455 = vrot.lane.b32.xlu0 %v322, 64
      %v456 = vpop.permute.xlu0 %455
      %v459 = vsel %vm294, %v454, 0
      %461 = vmatpush.bf16.msra.mxu0 0
      %462 = vmatpush.bf16.msra.mxu0 0
      %463 = vmatpush.bf16.msra.mxu0 0
      %464 = vmatpush.bf16.msra.mxu0 0
      %465 = vmatpush.bf16.msra.mxu0 0
      %466 = vmatpush.bf16.msra.mxu0 0
      %467 = vmatpush.bf16.msra.mxu0 0
      %468 = vmatpush.bf16.msra.mxu0 %v456
      %469 = vmatmul.bf16.gmra.mxu0 %v459
      %v470 = vpop.f32.mrf.mxu0
      %v471 = vadd.f32 0.0, %v470
      %v472 = vpop.f32.mrf.mxu0
      %v473 = vadd.f32 0.0, %v472
      %474 = vdwg.mxu0
      %475 = vrot.lane.b32.xlu0 %v267, 32
      %v476 = vpop.permute.xlu0 %475
      %477 = vrot.lane.b32.xlu0 %v272, 32
      %v478 = vpop.permute.xlu0 %477
      %v480 = vsel %vm273, %v476, 0
      %v483 = vsel %vm273, %v478, 0
      %485 = vmatpush.bf16.xpose.msra.mxu0 0
      %486 = vmatpush.bf16.xpose.msra.mxu0 0
      %487 = vmatpush.bf16.xpose.msra.mxu0 0
      %488 = vmatpush.bf16.xpose.msra.mxu0 0
      %489 = vmatpush.bf16.xpose.msra.mxu0 0
      %490 = vmatpush.bf16.xpose.msra.mxu0 0
      %491 = vmatpush.bf16.xpose.msra.mxu0 0
      %492 = vmatpush.bf16.xpose.msra.mxu0 %v483
      %493 = vmatmul.bf16.gmra.mxu0 %v480
      %v494 = vpop.f32.mrf.mxu0
      %v495 = vadd.f32 0.0, %v494
      %v496 = vpop.f32.mrf.mxu0
      %v497 = vadd.f32 0.0, %v496
      %498 = vdwg.mxu0
      %v499 = vsel %vm294, %v495, -inf
      %500 = vmax.xlane.f32.xlu0 %v499
      %v501 = vpop.xlane.xlu0 %500
      %v502 = vsel %vm294, %v497, -inf
      %503 = vmax.xlane.f32.xlu0 %v502
      %v504 = vpop.xlane.xlu0 %503
      %v505 = vsub.f32 %v495, %v501
      %v506 = vsub.f32 %v497, %v504
      %v507 = vmul.f32 %v505, 1.442695
      %v508 = vpow.pop %v507
      %v509 = vmul.f32 %v506, 1.442695
      %v510 = vpow.pop %v509
      %v511 = vsel %vm294, %v508, 0.0
      %512 = vadd.xlane.f32.xlu0 %v511
      %v513 = vpop.xlane.xlu0 %512
      %v514 = vsel %vm294, %v510, 0.0
      %515 = vadd.xlane.f32.xlu0 %v514
      %v516 = vpop.xlane.xlu0 %515
      %v517 = vrcp.pop %v513
      %v518 = vrcp.pop %v516
      %v519 = vmul.f32 %v508, %v517
      %v520 = vmul.f32 %v510, %v518
      %v521 = vpack.c.bf16 %v520, %v519
      %522 = vrot.lane.b32.xlu0 %v322, 32
      %v523 = vpop.permute.xlu0 %522
      %v526 = vsel %vm294, %v521, 0
      %528 = vmatpush.bf16.msra.mxu0 0
      %529 = vmatpush.bf16.msra.mxu0 0
      %530 = vmatpush.bf16.msra.mxu0 0
      %531 = vmatpush.bf16.msra.mxu0 0
      %532 = vmatpush.bf16.msra.mxu0 0
      %533 = vmatpush.bf16.msra.mxu0 0
      %534 = vmatpush.bf16.msra.mxu0 0
      %535 = vmatpush.bf16.msra.mxu0 %v523
      %536 = vmatmul.bf16.gmra.mxu0 %v526
      %v537 = vpop.f32.mrf.mxu0
      %v538 = vadd.f32 0.0, %v537
      %v539 = vpop.f32.mrf.mxu0
      %v540 = vadd.f32 0.0, %v539
      %541 = vdwg.mxu0
      %544 = vrot.lane.b32.xlu0 %v404, 32
      %v545 = vpop.permute.xlu0 %544
      %546 = vrot.lane.b32.xlu0 %v406, 32
      %v547 = vpop.permute.xlu0 %546
      %552 = vrot.lane.b32.xlu0 %v471, 64
      %v553 = vpop.permute.xlu0 %552
      %554 = vrot.lane.b32.xlu0 %v473, 64
      %v555 = vpop.permute.xlu0 %554
      %560 = vrot.lane.b32.xlu0 %v538, 96
      %v561 = vpop.permute.xlu0 %560
      %562 = vrot.lane.b32.xlu0 %v540, 96
      %v563 = vpop.permute.xlu0 %562
      %v566 = vsel %vm273, %v337, %v545
      %v567 = vsel %vm273, %v339, %v547
      %vm568 = vcmask 523264
      %v569 = vsel %vm568, %v566, %v553
      %v570 = vsel %vm568, %v567, %v555
      %vm571 = vcmask 785408
      %v572 = vsel %vm571, %v569, %v561
      %v573 = vsel %vm571, %v570, %v563
      %v574 = vpack.c.bf16 %v572, %v572
      %v575 = vpack.c.bf16 %v573, %v573
      %576 = vst [vmem:[%s248] sm:$0xf] %v574
      %577 = vst [vmem:[%s248 + $0x4] sm:$0xf] %v575
      %s578 = smul.u32 2, %s19
      %p579 = scmp.lt.s32.totalorder %s18, 1
      %s580 = scalar_select %p579, %s18, 1
      %p581 = scmp.lt.s32.totalorder %s578, 1
      %s582 = scalar_select %p581, %s578, 1
      %s583 = smul.addr %s580, 2
      %s584 = sadd.s32 %s582, %s583
      %s585 = smul.addr %s584, 4
      %s586 = scalar_lea.vmem %s3, %s585
      // Predicated region
      $region33: #{nst_forward.58} parent=31 // pred_check
        %p587 = pneg %p126
      $region34: #{nst_forward.58} parent=31 // pred_check_branch
        %589 = sbr.rel (%p587) target = $region36
      $region35: #{nst_forward.58} parent=31 // pred_region
        %s590 = smul.u32 2, %s19
      $region36: #{nst_forward.58} parent=31 // pred_fallthru
        _
    $region32: #{nst_forward.58} parent=5 // pred_fallthru
      _
    %p591 = scmp.le.s32.totalorder 2, %s9
    // Predicated region
    $region37: #{nst_forward.58} parent=5 // pred_check
      %p592 = pneg %p591
    $region38: #{nst_forward.58} parent=5 // pred_check_branch
      %594 = sbr.rel (%p592) target = $region40
    $region39: #{nst_forward.58} parent=5 // pred_region
      %s595 = ssub.s32 %s9, 2
      // Predicated region
      $region41: #{nst_forward.58} parent=39 // pred_check
        %p596 = pneg %p132
      $region42: #{nst_forward.58} parent=39 // pred_check_branch
        %598 = sbr.rel (%p596) target = $region44
      $region43: #{nst_forward.58} parent=39 // pred_region
        %s599 = smul.u32 2, %s21
        %p600 = scmp.lt.s32.totalorder %s20, 1
        %s601 = scalar_select %p600, %s20, 1
        %p602 = scmp.lt.s32.totalorder %s599, 1
        %s603 = scalar_select %p602, %s599, 1
        %s604 = smul.addr %s601, 2
        %s605 = sadd.s32 %s603, %s604
        %s606 = smul.addr %s605, 4
        %s607 = scalar_lea.vmem %s3, %s606
      $region44: #{nst_forward.58} parent=39 // pred_fallthru
        _
    $region40: #{nst_forward.58} parent=5 // pred_fallthru
      _
  $region6: #{nst_forward.58} parent=0 // loop_footer
    %s13 = sadd.s32 1, %s9
  $region7: #{nst_forward.58} parent=0 // loop_footer_branch
    %8 = sbr.rel target = $region3
  $region8: #{nst_forward.58} parent=0 // loop_exit
    _

// kernel: nst_forward.59
$region0: #{nst_forward.59}
  #allocation0 [shape = 'u32[]', space=smem, size = 0x4, offset = 0x4, fixed_abs, tag = 'smem constant byte address 0x4 - core index']
  #allocation1 [shape = 'u32[72,128]{1,0:T(1,128)}', space=vmem, size = 0x9000, scoped, tag = 'internal scratch']
  %s0 = inlined_call_operand.vmem [shape: bf16[32,128], index: 0, kind: input, shape index: {}]
  %s1 = inlined_call_operand.vmem [shape: bf16[128,128], index: 1, kind: input, shape index: {}]
  %s2 = inlined_call_operand.vmem [shape: f32[1,128], index: 2, kind: input, shape index: {}]
  %s3 = inlined_call_operand.vmem [shape: bf16[32,128], index: 3, kind: input, shape index: {}]
  %s4 = inlined_call_operand.vmem [shape: f32[1,128], index: 4, kind: input, shape index: {}]
  %s5 = inlined_call_operand.vmem [shape: f32[1,128], index: 5, kind: input, shape index: {}]
  %s6 = inlined_call_operand.vmem [shape: bf16[32,128], index: 6, kind: output, shape index: {}]
  %s7 = sld [smem:[#allocation0]]
  $region34: #{nst_forward.59} parent=0
    _
  %s9 = ssub.s32 1, %s7
  %s10 = scalar_select 0, %s9, %s7
  // Predicated region
  $region2: #{nst_forward.59} parent=0 // pred_check
    _
  $region3: #{nst_forward.59} parent=0 // pred_check_branch
    %12 = sbr.rel (0) target = $region5
  $region4: #{nst_forward.59} parent=0 // pred_region
    _
  $region5: #{nst_forward.59} parent=0 // pred_fallthru
    _
  // Predicated region
  $region6: #{nst_forward.59} parent=0 // pred_check
    _
  $region7: #{nst_forward.59} parent=0 // pred_check_branch
    %14 = sbr.rel (0) target = $region9
  $region8: #{nst_forward.59} parent=0 // pred_region
    _
  $region9: #{nst_forward.59} parent=0 // pred_fallthru
    _
  // Predicated region
  $region10: #{nst_forward.59} parent=0 // pred_check
    _
  $region11: #{nst_forward.59} parent=0 // pred_check_branch
    %16 = sbr.rel (0) target = $region13
  $region12: #{nst_forward.59} parent=0 // pred_region
    _
  $region13: #{nst_forward.59} parent=0 // pred_fallthru
    _
  // Predicated region
  $region14: #{nst_forward.59} parent=0 // pred_check
    _
  $region15: #{nst_forward.59} parent=0 // pred_check_branch
    %18 = sbr.rel (0) target = $region17
  $region16: #{nst_forward.59} parent=0 // pred_region
    _
  $region17: #{nst_forward.59} parent=0 // pred_fallthru
    _
  // Predicated region
  $region18: #{nst_forward.59} parent=0 // pred_check
    _
  $region19: #{nst_forward.59} parent=0 // pred_check_branch
    %20 = sbr.rel (0) target = $region21
  $region20: #{nst_forward.59} parent=0 // pred_region
    _
  $region21: #{nst_forward.59} parent=0 // pred_fallthru
    _
  // Predicated region
  $region22: #{nst_forward.59} parent=0 // pred_check
    _
  $region23: #{nst_forward.59} parent=0 // pred_check_branch
    %22 = sbr.rel (0) target = $region25
  $region24: #{nst_forward.59} parent=0 // pred_region
    _
  $region25: #{nst_forward.59} parent=0 // pred_fallthru
    _
  %v23 = vld [vmem:[%s0] sm:$0xf]
  %v24 = vld [vmem:[%s0 + $0x4] sm:$0xf]
  %v25 = vld [vmem:[%s0 + $0x8] sm:$0xf]
  %v26 = vld [vmem:[%s0 + $0xc] sm:$0xf]
  %v27 = vld [vmem:[%s1] sm:$0xf]
  %v28 = vld [vmem:[%s1 + $0x4] sm:$0xf]
  %v29 = vld [vmem:[%s1 + $0x8] sm:$0xf]
  %v30 = vld [vmem:[%s1 + $0xc] sm:$0xf]
  %v31 = vld [vmem:[%s1 + $0x10] sm:$0xf]
  %v32 = vld [vmem:[%s1 + $0x14] sm:$0xf]
  %v33 = vld [vmem:[%s1 + $0x18] sm:$0xf]
  %v34 = vld [vmem:[%s1 + $0x1c] sm:$0xf]
  %v35 = vld [vmem:[%s1 + $0x20] sm:$0xf]
  %v36 = vld [vmem:[%s1 + $0x24] sm:$0xf]
  %v37 = vld [vmem:[%s1 + $0x28] sm:$0xf]
  %v38 = vld [vmem:[%s1 + $0x2c] sm:$0xf]
  %v39 = vld [vmem:[%s1 + $0x30] sm:$0xf]
  %v40 = vld [vmem:[%s1 + $0x34] sm:$0xf]
  %v41 = vld [vmem:[%s1 + $0x38] sm:$0xf]
  %v42 = vld [vmem:[%s1 + $0x3c] sm:$0xf]
  %v43 = vld [vmem:[%s2] sm:$0x1]
  %v45 = vperm.slane %v43, 0
  %v51 = vunpack.c.l.b16 %v23
  %v52 = vunpack.c.l.b16 %v24
  %v53 = vunpack.c.l.b16 %v25
  %v54 = vunpack.c.l.b16 %v26
  %v55 = vpack.c.b16 %v52, %v51
  %v56 = vpack.c.b16 %v54, %v53
  %v75 = vunpack.c.l.b16 %v27
  %v76 = vunpack.c.l.b16 %v28
  %v77 = vunpack.c.l.b16 %v29
  %v78 = vunpack.c.l.b16 %v30
  %v79 = vunpack.c.l.b16 %v31
  %v80 = vunpack.c.l.b16 %v32
  %v81 = vunpack.c.l.b16 %v33
  %v82 = vunpack.c.l.b16 %v34
  %v83 = vunpack.c.l.b16 %v35
  %v84 = vunpack.c.l.b16 %v36
  %v85 = vunpack.c.l.b16 %v37
  %v86 = vunpack.c.l.b16 %v38
  %v87 = vunpack.c.l.b16 %v39
  %v88 = vunpack.c.l.b16 %v40
  %v89 = vunpack.c.l.b16 %v41
  %v90 = vunpack.c.l.b16 %v42
  %v91 = vpack.c.b16 %v76, %v75
  %v92 = vpack.c.b16 %v78, %v77
  %v93 = vpack.c.b16 %v80, %v79
  %v94 = vpack.c.b16 %v82, %v81
  %v95 = vpack.c.b16 %v84, %v83
  %v96 = vpack.c.b16 %v86, %v85
  %v97 = vpack.c.b16 %v88, %v87
  %v98 = vpack.c.b16 %v90, %v89
  %107 = vmatpush.bf16.msra.mxu0 %v98
  %108 = vmatpush.bf16.msra.mxu0 %v97
  %109 = vmatpush.bf16.msra.mxu0 %v96
  %110 = vmatpush.bf16.msra.mxu0 %v95
  %111 = vmatpush.bf16.msra.mxu0 %v94
  %112 = vmatpush.bf16.msra.mxu0 %v93
  %113 = vmatpush.bf16.msra.mxu0 %v92
  %114 = vmatpush.bf16.msra.mxu0 %v91
  %115 = vmatmul.bf16.gmra.mxu0 %v55
  %v116 = vpop.f32.mrf.mxu0
  %v117 = vadd.f32 %v45, %v116
  %v118 = vpop.f32.mrf.mxu0
  %v119 = vadd.f32 %v45, %v118
  %120 = vmatmul.bf16.gmra.mxu0 %v56
  %v121 = vpop.f32.mrf.mxu0
  %v122 = vadd.f32 %v45, %v121
  %v123 = vpop.f32.mrf.mxu0
  %v124 = vadd.f32 %v45, %v123
  %125 = vdwg.mxu0
  %v126 = vld [vmem:[%s3] sm:$0xf]
  %v127 = vld [vmem:[%s3 + $0x4] sm:$0xf]
  %v128 = vld [vmem:[%s3 + $0x8] sm:$0xf]
  %v129 = vld [vmem:[%s3 + $0xc] sm:$0xf]
  %v130 = vunpack.c.l.bf16 %v126
  %v131 = vunpack.c.l.bf16 %v127
  %v132 = vunpack.c.l.bf16 %v128
  %v133 = vunpack.c.l.bf16 %v129
  %v134 = vadd.f32 %v117, %v130
  %v135 = vadd.f32 %v119, %v131
  %v136 = vadd.f32 %v122, %v132
  %v137 = vadd.f32 %v124, %v133
  %138 = vadd.xlane.f32.xlu0 %v134
  %v139 = vpop.xlane.xlu0 %138
  %140 = vadd.xlane.f32.xlu0 %v135
  %v141 = vpop.xlane.xlu0 %140
  %142 = vadd.xlane.f32.xlu0 %v136
  %v143 = vpop.xlane.xlu0 %142
  %144 = vadd.xlane.f32.xlu0 %v137
  %v145 = vpop.xlane.xlu0 %144
  %v146 = vrcp.pop 128.0
  %v147 = vmul.f32 128.0, %v146
  %v148 = vsub.f32 1.0, %v147
  %v149 = vmul.f32 %v146, %v148
  %v150 = vadd.f32 %v146, %v149
  %vm151 = vweird.f32 %v146
  %v152 = vsel %vm151, %v146, %v150
  %v153 = vmul.f32 %v139, %v152
  %v154 = vmul.f32 %v141, %v152
  %v155 = vmul.f32 %v143, %v152
  %v156 = vmul.f32 %v145, %v152
  %v157 = vsub.f32 %v134, %v153
  %v158 = vsub.f32 %v135, %v154
  %v159 = vsub.f32 %v136, %v155
  %v160 = vsub.f32 %v137, %v156
  %v161 = vmul.f32 %v157, %v157
  %v162 = vmul.f32 %v158, %v158
  %v163 = vmul.f32 %v159, %v159
  %v164 = vmul.f32 %v160, %v160
  %165 = vadd.xlane.f32.xlu0 %v161
  %v166 = vpop.xlane.xlu0 %165
  %167 = vadd.xlane.f32.xlu0 %v162
  %v168 = vpop.xlane.xlu0 %167
  %169 = vadd.xlane.f32.xlu0 %v163
  %v170 = vpop.xlane.xlu0 %169
  %171 = vadd.xlane.f32.xlu0 %v164
  %v172 = vpop.xlane.xlu0 %171
  %v173 = vmul.f32 %v166, %v152
  %v174 = vmul.f32 %v168, %v152
  %v175 = vmul.f32 %v170, %v152
  %v176 = vmul.f32 %v172, %v152
  %v177 = vadd.f32 %v173, 1e-05
  %v178 = vadd.f32 %v174, 1e-05
  %v179 = vadd.f32 %v175, 1e-05
  %v180 = vadd.f32 %v176, 1e-05
  %v181 = vrsqrt.pop %v177
  %v182 = vmul.f32 %v181, %v177
  %v183 = vmul.f32 %v182, %v181
  %v184 = vmul.f32 0.5, %v183
  %v185 = vsub.f32 1.5, %v184
  %v186 = vmul.f32 %v181, %v185
  %vm187 = vweird.f32 %v177
  %vm188 = vweird.f32 %v181
  %vm189 = vmor %vm187, %vm188
  %v190 = vsel %vm189, %v181, %v186
  %v191 = vrsqrt.pop %v178
  %v192 = vmul.f32 %v191, %v178
  %v193 = vmul.f32 %v192, %v191
  %v194 = vmul.f32 0.5, %v193
  %v195 = vsub.f32 1.5, %v194
  %v196 = vmul.f32 %v191, %v195
  %vm197 = vweird.f32 %v178
  %vm198 = vweird.f32 %v191
  %vm199 = vmor %vm197, %vm198
  %v200 = vsel %vm199, %v191, %v196
  %v201 = vrsqrt.pop %v179
  %v202 = vmul.f32 %v201, %v179
  %v203 = vmul.f32 %v202, %v201
  %v204 = vmul.f32 0.5, %v203
  %v205 = vsub.f32 1.5, %v204
  %v206 = vmul.f32 %v201, %v205
  %vm207 = vweird.f32 %v179
  %vm208 = vweird.f32 %v201
  %vm209 = vmor %vm207, %vm208
  %v210 = vsel %vm209, %v201, %v206
  %v211 = vrsqrt.pop %v180
  %v212 = vmul.f32 %v211, %v180
  %v213 = vmul.f32 %v212, %v211
  %v214 = vmul.f32 0.5, %v213
  %v215 = vsub.f32 1.5, %v214
  %v216 = vmul.f32 %v211, %v215
  %vm217 = vweird.f32 %v180
  %vm218 = vweird.f32 %v211
  %vm219 = vmor %vm217, %vm218
  %v220 = vsel %vm219, %v211, %v216
  %v221 = vmul.f32 %v157, %v190
  %v222 = vmul.f32 %v158, %v200
  %v223 = vmul.f32 %v159, %v210
  %v224 = vmul.f32 %v160, %v220
  %v225 = vld [vmem:[%s4] sm:$0x1]
  %v227 = vperm.slane %v225, 0
  %v229 = vmul.f32 %v221, %v227
  %v230 = vmul.f32 %v222, %v227
  %v231 = vmul.f32 %v223, %v227
  %v232 = vmul.f32 %v224, %v227
  %v233 = vld [vmem:[%s5] sm:$0x1]
  %v235 = vperm.slane %v233, 0
  %v237 = vadd.f32 %v229, %v235
  %v238 = vadd.f32 %v230, %v235
  %v239 = vadd.f32 %v231, %v235
  %v240 = vadd.f32 %v232, %v235
  %v241 = vpack.c.bf16 %v237, %v237
  %v242 = vpack.c.bf16 %v238, %v238
  %v243 = vpack.c.bf16 %v239, %v239
  %v244 = vpack.c.bf16 %v240, %v240
  %245 = vst [vmem:[%s6] sm:$0xf] %v241
  %246 = vst [vmem:[%s6 + $0x4] sm:$0xf] %v242
  %247 = vst [vmem:[%s6 + $0x8] sm:$0xf] %v243
  %248 = vst [vmem:[%s6 + $0xc] sm:$0xf] %v244
  // Predicated region
  $region26: #{nst_forward.59} parent=0 // pred_check
    _
  $region27: #{nst_forward.59} parent=0 // pred_check_branch
    %250 = sbr.rel (0) target = $region29
  $region28: #{nst_forward.59} parent=0 // pred_region
    _
  $region29: #{nst_forward.59} parent=0 // pred_fallthru
    _
  // Predicated region
  $region30: #{nst_forward.59} parent=0 // pred_check
    _
  $region31: #{nst_forward.59} parent=0 // pred_check_branch
    %252 = sbr.rel (0) target = $region33
  $region32: #{nst_forward.59} parent=0 // pred_region
    _
  $region33: #{nst_forward.59} parent=0 // pred_fallthru
    _

// kernel: nst_forward.60
$region0: #{nst_forward.60}
  #allocation0 [shape = 'u32[]', space=smem, size = 0x4, offset = 0x4, fixed_abs, tag = 'smem constant byte address 0x4 - core index']
  #allocation1 [shape = 'u32[72,128]{1,0:T(1,128)}', space=vmem, size = 0x9000, scoped, tag = 'internal scratch']
  %s0 = inlined_call_operand.vmem [shape: bf16[32,128], index: 0, kind: input, shape index: {}]
  %s1 = inlined_call_operand.vmem [shape: bf16[128,256], index: 1, kind: input, shape index: {}]
  %s2 = inlined_call_operand.vmem [shape: f32[1,256], index: 2, kind: input, shape index: {}]
  %s3 = inlined_call_operand.vmem [shape: bf16[32,256], index: 3, kind: output, shape index: {}]
  %s4 = sld [smem:[#allocation0]]
  $region22: #{nst_forward.60} parent=0
    _
  %s6 = ssub.s32 1, %s4
  %s7 = scalar_select 0, %s6, %s4
  // Predicated region
  $region2: #{nst_forward.60} parent=0 // pred_check
    _
  $region3: #{nst_forward.60} parent=0 // pred_check_branch
    %9 = sbr.rel (0) target = $region5
  $region4: #{nst_forward.60} parent=0 // pred_region
    _
  $region5: #{nst_forward.60} parent=0 // pred_fallthru
    _
  // Predicated region
  $region6: #{nst_forward.60} parent=0 // pred_check
    _
  $region7: #{nst_forward.60} parent=0 // pred_check_branch
    %11 = sbr.rel (0) target = $region9
  $region8: #{nst_forward.60} parent=0 // pred_region
    _
  $region9: #{nst_forward.60} parent=0 // pred_fallthru
    _
  // Predicated region
  $region10: #{nst_forward.60} parent=0 // pred_check
    _
  $region11: #{nst_forward.60} parent=0 // pred_check_branch
    %13 = sbr.rel (0) target = $region13
  $region12: #{nst_forward.60} parent=0 // pred_region
    _
  $region13: #{nst_forward.60} parent=0 // pred_fallthru
    _
  %v14 = vld [vmem:[%s0] sm:$0xf]
  %v15 = vld [vmem:[%s0 + $0x4] sm:$0xf]
  %v16 = vld [vmem:[%s0 + $0x8] sm:$0xf]
  %v17 = vld [vmem:[%s0 + $0xc] sm:$0xf]
  %v18 = vld [vmem:[%s1] sm:$0xff]
  %v19 = vld [vmem:[%s1 + $0x8] sm:$0xff]
  %v20 = vld [vmem:[%s1 + $0x10] sm:$0xff]
  %v21 = vld [vmem:[%s1 + $0x18] sm:$0xff]
  %v22 = vld [vmem:[%s1 + $0x20] sm:$0xff]
  %v23 = vld [vmem:[%s1 + $0x28] sm:$0xff]
  %v24 = vld [vmem:[%s1 + $0x30] sm:$0xff]
  %v25 = vld [vmem:[%s1 + $0x38] sm:$0xff]
  %v26 = vld [vmem:[%s1 + $0x40] sm:$0xff]
  %v27 = vld [vmem:[%s1 + $0x48] sm:$0xff]
  %v28 = vld [vmem:[%s1 + $0x50] sm:$0xff]
  %v29 = vld [vmem:[%s1 + $0x58] sm:$0xff]
  %v30 = vld [vmem:[%s1 + $0x60] sm:$0xff]
  %v31 = vld [vmem:[%s1 + $0x68] sm:$0xff]
  %v32 = vld [vmem:[%s1 + $0x70] sm:$0xff]
  %v33 = vld [vmem:[%s1 + $0x78] sm:$0xff]
  %v34 = vld [vmem:[%s2] sm:$0x3]
  %v36 = vperm.slane %v34, 0
  %v37 = vperm.slane %v34, 1
  %v44 = vunpack.c.l.b16 %v14
  %v45 = vunpack.c.l.b16 %v15
  %v46 = vunpack.c.l.b16 %v16
  %v47 = vunpack.c.l.b16 %v17
  %v48 = vpack.c.b16 %v45, %v44
  %v49 = vpack.c.b16 %v47, %v46
  %v68 = vunpack.c.l.b16 %v18
  %v69 = vunpack.c.h.b16 %v18
  %v70 = vunpack.c.l.b16 %v19
  %v71 = vunpack.c.h.b16 %v19
  %v72 = vunpack.c.l.b16 %v20
  %v73 = vunpack.c.h.b16 %v20
  %v74 = vunpack.c.l.b16 %v21
  %v75 = vunpack.c.h.b16 %v21
  %v76 = vunpack.c.l.b16 %v22
  %v77 = vunpack.c.h.b16 %v22
  %v78 = vunpack.c.l.b16 %v23
  %v79 = vunpack.c.h.b16 %v23
  %v80 = vunpack.c.l.b16 %v24
  %v81 = vunpack.c.h.b16 %v24
  %v82 = vunpack.c.l.b16 %v25
  %v83 = vunpack.c.h.b16 %v25
  %v84 = vunpack.c.l.b16 %v26
  %v85 = vunpack.c.h.b16 %v26
  %v86 = vunpack.c.l.b16 %v27
  %v87 = vunpack.c.h.b16 %v27
  %v88 = vunpack.c.l.b16 %v28
  %v89 = vunpack.c.h.b16 %v28
  %v90 = vunpack.c.l.b16 %v29
  %v91 = vunpack.c.h.b16 %v29
  %v92 = vunpack.c.l.b16 %v30
  %v93 = vunpack.c.h.b16 %v30
  %v94 = vunpack.c.l.b16 %v31
  %v95 = vunpack.c.h.b16 %v31
  %v96 = vunpack.c.l.b16 %v32
  %v97 = vunpack.c.h.b16 %v32
  %v98 = vunpack.c.l.b16 %v33
  %v99 = vunpack.c.h.b16 %v33
  %v100 = vpack.c.b16 %v70, %v68
  %v101 = vpack.c.b16 %v71, %v69
  %v102 = vpack.c.b16 %v74, %v72
  %v103 = vpack.c.b16 %v75, %v73
  %v104 = vpack.c.b16 %v78, %v76
  %v105 = vpack.c.b16 %v79, %v77
  %v106 = vpack.c.b16 %v82, %v80
  %v107 = vpack.c.b16 %v83, %v81
  %v108 = vpack.c.b16 %v86, %v84
  %v109 = vpack.c.b16 %v87, %v85
  %v110 = vpack.c.b16 %v90, %v88
  %v111 = vpack.c.b16 %v91, %v89
  %v112 = vpack.c.b16 %v94, %v92
  %v113 = vpack.c.b16 %v95, %v93
  %v114 = vpack.c.b16 %v98, %v96
  %v115 = vpack.c.b16 %v99, %v97
  %132 = vmatpush.bf16.msra.mxu0 %v114
  %133 = vmatpush.bf16.msra.mxu0 %v112
  %134 = vmatpush.bf16.msra.mxu0 %v110
  %135 = vmatpush.bf16.msra.mxu0 %v108
  %136 = vmatpush.bf16.msra.mxu0 %v106
  %137 = vmatpush.bf16.msra.mxu0 %v104
  %138 = vmatpush.bf16.msra.mxu0 %v102
  %139 = vmatpush.bf16.msra.mxu0 %v100
  %140 = vmatmul.bf16.gmra.mxu0 %v48
  %v141 = vpop.f32.mrf.mxu0
  %v142 = vadd.f32 %v36, %v141
  %v143 = vpop.f32.mrf.mxu0
  %v144 = vadd.f32 %v36, %v143
  %145 = vmatmul.bf16.gmra.mxu0 %v49
  %v146 = vpop.f32.mrf.mxu0
  %v147 = vadd.f32 %v36, %v146
  %v148 = vpop.f32.mrf.mxu0
  %v149 = vadd.f32 %v36, %v148
  %150 = vdwg.mxu0
  %151 = vmatpush.bf16.msra.mxu0 %v115
  %152 = vmatpush.bf16.msra.mxu0 %v113
  %153 = vmatpush.bf16.msra.mxu0 %v111
  %154 = vmatpush.bf16.msra.mxu0 %v109
  %155 = vmatpush.bf16.msra.mxu0 %v107
  %156 = vmatpush.bf16.msra.mxu0 %v105
  %157 = vmatpush.bf16.msra.mxu0 %v103
  %158 = vmatpush.bf16.msra.mxu0 %v101
  %159 = vmatmul.bf16.gmra.mxu0 %v48
  %v160 = vpop.f32.mrf.mxu0
  %v161 = vadd.f32 %v37, %v160
  %v162 = vpop.f32.mrf.mxu0
  %v163 = vadd.f32 %v37, %v162
  %164 = vmatmul.bf16.gmra.mxu0 %v49
  %v165 = vpop.f32.mrf.mxu0
  %v166 = vadd.f32 %v37, %v165
  %v167 = vpop.f32.mrf.mxu0
  %v168 = vadd.f32 %v37, %v167
  %169 = vdwg.mxu0
  %v170 = vmax.f32 %v142, 0.0
  %v171 = vmax.f32 %v161, 0.0
  %v172 = vmax.f32 %v144, 0.0
  %v173 = vmax.f32 %v163, 0.0
  %v174 = vmax.f32 %v147, 0.0
  %v175 = vmax.f32 %v166, 0.0
  %v176 = vmax.f32 %v149, 0.0
  %v177 = vmax.f32 %v168, 0.0
  %v178 = vpack.c.bf16 %v171, %v170
  %v179 = vpack.c.bf16 %v173, %v172
  %v180 = vpack.c.bf16 %v175, %v174
  %v181 = vpack.c.bf16 %v177, %v176
  %182 = vst [vmem:[%s3] sm:$0xff] %v178
  %183 = vst [vmem:[%s3 + $0x8] sm:$0xff] %v179
  %184 = vst [vmem:[%s3 + $0x10] sm:$0xff] %v180
  %185 = vst [vmem:[%s3 + $0x18] sm:$0xff] %v181
  // Predicated region
  $region14: #{nst_forward.60} parent=0 // pred_check
    _
  $region15: #{nst_forward.60} parent=0 // pred_check_branch
    %187 = sbr.rel (0) target = $region17
  $region16: #{nst_forward.60} parent=0 // pred_region
    _
  $region17: #{nst_forward.60} parent=0 // pred_fallthru
    _
  // Predicated region
  $region18: #{nst_forward.60} parent=0 // pred_check
    _
  $region19: #{nst_forward.60} parent=0 // pred_check_branch
    %189 = sbr.rel (0) target = $region21
  $region20: #{nst_forward.60} parent=0 // pred_region
    _
  $region21: #{nst_forward.60} parent=0 // pred_fallthru
    _

// kernel: nst_forward.61
$region0: #{nst_forward.61}
  #allocation0 [shape = 'u32[]', space=smem, size = 0x4, offset = 0x4, fixed_abs, tag = 'smem constant byte address 0x4 - core index']
  #allocation1 [shape = 'u32[72,128]{1,0:T(1,128)}', space=vmem, size = 0x9000, scoped, tag = 'internal scratch']
  %s0 = inlined_call_operand.vmem [shape: bf16[32,256], index: 0, kind: input, shape index: {}]
  %s1 = inlined_call_operand.vmem [shape: bf16[256,128], index: 1, kind: input, shape index: {}]
  %s2 = inlined_call_operand.vmem [shape: f32[1,128], index: 2, kind: input, shape index: {}]
  %s3 = inlined_call_operand.vmem [shape: bf16[32,128], index: 3, kind: input, shape index: {}]
  %s4 = inlined_call_operand.vmem [shape: f32[1,128], index: 4, kind: input, shape index: {}]
  %s5 = inlined_call_operand.vmem [shape: f32[1,128], index: 5, kind: input, shape index: {}]
  %s6 = inlined_call_operand.vmem [shape: bf16[32,128], index: 6, kind: output, shape index: {}]
  %s7 = sld [smem:[#allocation0]]
  $region34: #{nst_forward.61} parent=0
    _
  %s9 = ssub.s32 1, %s7
  %s10 = scalar_select 0, %s9, %s7
  // Predicated region
  $region2: #{nst_forward.61} parent=0 // pred_check
    _
  $region3: #{nst_forward.61} parent=0 // pred_check_branch
    %12 = sbr.rel (0) target = $region5
  $region4: #{nst_forward.61} parent=0 // pred_region
    _
  $region5: #{nst_forward.61} parent=0 // pred_fallthru
    _
  // Predicated region
  $region6: #{nst_forward.61} parent=0 // pred_check
    _
  $region7: #{nst_forward.61} parent=0 // pred_check_branch
    %14 = sbr.rel (0) target = $region9
  $region8: #{nst_forward.61} parent=0 // pred_region
    _
  $region9: #{nst_forward.61} parent=0 // pred_fallthru
    _
  // Predicated region
  $region10: #{nst_forward.61} parent=0 // pred_check
    _
  $region11: #{nst_forward.61} parent=0 // pred_check_branch
    %16 = sbr.rel (0) target = $region13
  $region12: #{nst_forward.61} parent=0 // pred_region
    _
  $region13: #{nst_forward.61} parent=0 // pred_fallthru
    _
  // Predicated region
  $region14: #{nst_forward.61} parent=0 // pred_check
    _
  $region15: #{nst_forward.61} parent=0 // pred_check_branch
    %18 = sbr.rel (0) target = $region17
  $region16: #{nst_forward.61} parent=0 // pred_region
    _
  $region17: #{nst_forward.61} parent=0 // pred_fallthru
    _
  // Predicated region
  $region18: #{nst_forward.61} parent=0 // pred_check
    _
  $region19: #{nst_forward.61} parent=0 // pred_check_branch
    %20 = sbr.rel (0) target = $region21
  $region20: #{nst_forward.61} parent=0 // pred_region
    _
  $region21: #{nst_forward.61} parent=0 // pred_fallthru
    _
  // Predicated region
  $region22: #{nst_forward.61} parent=0 // pred_check
    _
  $region23: #{nst_forward.61} parent=0 // pred_check_branch
    %22 = sbr.rel (0) target = $region25
  $region24: #{nst_forward.61} parent=0 // pred_region
    _
  $region25: #{nst_forward.61} parent=0 // pred_fallthru
    _
  %v23 = vld [vmem:[%s0] sm:$0xff]
  %v24 = vld [vmem:[%s0 + $0x8] sm:$0xff]
  %v25 = vld [vmem:[%s0 + $0x10] sm:$0xff]
  %v26 = vld [vmem:[%s0 + $0x18] sm:$0xff]
  %v27 = vld [vmem:[%s1] sm:$0xf]
  %v28 = vld [vmem:[%s1 + $0x4] sm:$0xf]
  %v29 = vld [vmem:[%s1 + $0x8] sm:$0xf]
  %v30 = vld [vmem:[%s1 + $0xc] sm:$0xf]
  %v31 = vld [vmem:[%s1 + $0x10] sm:$0xf]
  %v32 = vld [vmem:[%s1 + $0x14] sm:$0xf]
  %v33 = vld [vmem:[%s1 + $0x18] sm:$0xf]
  %v34 = vld [vmem:[%s1 + $0x1c] sm:$0xf]
  %v35 = vld [vmem:[%s1 + $0x20] sm:$0xf]
  %v36 = vld [vmem:[%s1 + $0x24] sm:$0xf]
  %v37 = vld [vmem:[%s1 + $0x28] sm:$0xf]
  %v38 = vld [vmem:[%s1 + $0x2c] sm:$0xf]
  %v39 = vld [vmem:[%s1 + $0x30] sm:$0xf]
  %v40 = vld [vmem:[%s1 + $0x34] sm:$0xf]
  %v41 = vld [vmem:[%s1 + $0x38] sm:$0xf]
  %v42 = vld [vmem:[%s1 + $0x3c] sm:$0xf]
  %v43 = vld [vmem:[%s1 + $0x40] sm:$0xf]
  %v44 = vld [vmem:[%s1 + $0x44] sm:$0xf]
  %v45 = vld [vmem:[%s1 + $0x48] sm:$0xf]
  %v46 = vld [vmem:[%s1 + $0x4c] sm:$0xf]
  %v47 = vld [vmem:[%s1 + $0x50] sm:$0xf]
  %v48 = vld [vmem:[%s1 + $0x54] sm:$0xf]
  %v49 = vld [vmem:[%s1 + $0x58] sm:$0xf]
  %v50 = vld [vmem:[%s1 + $0x5c] sm:$0xf]
  %v51 = vld [vmem:[%s1 + $0x60] sm:$0xf]
  %v52 = vld [vmem:[%s1 + $0x64] sm:$0xf]
  %v53 = vld [vmem:[%s1 + $0x68] sm:$0xf]
  %v54 = vld [vmem:[%s1 + $0x6c] sm:$0xf]
  %v55 = vld [vmem:[%s1 + $0x70] sm:$0xf]
  %v56 = vld [vmem:[%s1 + $0x74] sm:$0xf]
  %v57 = vld [vmem:[%s1 + $0x78] sm:$0xf]
  %v58 = vld [vmem:[%s1 + $0x7c] sm:$0xf]
  %v59 = vld [vmem:[%s2] sm:$0x1]
  %v61 = vperm.slane %v59, 0
  %v67 = vunpack.c.l.b16 %v23
  %v68 = vunpack.c.h.b16 %v23
  %v69 = vunpack.c.l.b16 %v24
  %v70 = vunpack.c.h.b16 %v24
  %v71 = vunpack.c.l.b16 %v25
  %v72 = vunpack.c.h.b16 %v25
  %v73 = vunpack.c.l.b16 %v26
  %v74 = vunpack.c.h.b16 %v26
  %v75 = vpack.c.b16 %v69, %v67
  %v76 = vpack.c.b16 %v70, %v68
  %v77 = vpack.c.b16 %v73, %v71
  %v78 = vpack.c.b16 %v74, %v72
  %v115 = vunpack.c.l.b16 %v27
  %v116 = vunpack.c.l.b16 %v28
  %v117 = vunpack.c.l.b16 %v29
  %v118 = vunpack.c.l.b16 %v30
  %v119 = vunpack.c.l.b16 %v31
  %v120 = vunpack.c.l.b16 %v32
  %v121 = vunpack.c.l.b16 %v33
  %v122 = vunpack.c.l.b16 %v34
  %v123 = vunpack.c.l.b16 %v35
  %v124 = vunpack.c.l.b16 %v36
  %v125 = vunpack.c.l.b16 %v37
  %v126 = vunpack.c.l.b16 %v38
  %v127 = vunpack.c.l.b16 %v39
  %v128 = vunpack.c.l.b16 %v40
  %v129 = vunpack.c.l.b16 %v41
  %v130 = vunpack.c.l.b16 %v42
  %v131 = vunpack.c.l.b16 %v43
  %v132 = vunpack.c.l.b16 %v44
  %v133 = vunpack.c.l.b16 %v45
  %v134 = vunpack.c.l.b16 %v46
  %v135 = vunpack.c.l.b16 %v47
  %v136 = vunpack.c.l.b16 %v48
  %v137 = vunpack.c.l.b16 %v49
  %v138 = vunpack.c.l.b16 %v50
  %v139 = vunpack.c.l.b16 %v51
  %v140 = vunpack.c.l.b16 %v52
  %v141 = vunpack.c.l.b16 %v53
  %v142 = vunpack.c.l.b16 %v54
  %v143 = vunpack.c.l.b16 %v55
  %v144 = vunpack.c.l.b16 %v56
  %v145 = vunpack.c.l.b16 %v57
  %v146 = vunpack.c.l.b16 %v58
  %v147 = vpack.c.b16 %v116, %v115
  %v148 = vpack.c.b16 %v118, %v117
  %v149 = vpack.c.b16 %v120, %v119
  %v150 = vpack.c.b16 %v122, %v121
  %v151 = vpack.c.b16 %v124, %v123
  %v152 = vpack.c.b16 %v126, %v125
  %v153 = vpack.c.b16 %v128, %v127
  %v154 = vpack.c.b16 %v130, %v129
  %v155 = vpack.c.b16 %v132, %v131
  %v156 = vpack.c.b16 %v134, %v133
  %v157 = vpack.c.b16 %v136, %v135
  %v158 = vpack.c.b16 %v138, %v137
  %v159 = vpack.c.b16 %v140, %v139
  %v160 = vpack.c.b16 %v142, %v141
  %v161 = vpack.c.b16 %v144, %v143
  %v162 = vpack.c.b16 %v146, %v145
  %179 = vmatpush.bf16.msra.mxu0 %v154
  %180 = vmatpush.bf16.msra.mxu0 %v153
  %181 = vmatpush.bf16.msra.mxu0 %v152
  %182 = vmatpush.bf16.msra.mxu0 %v151
  %183 = vmatpush.bf16.msra.mxu0 %v150
  %184 = vmatpush.bf16.msra.mxu0 %v149
  %185 = vmatpush.bf16.msra.mxu0 %v148
  %186 = vmatpush.bf16.msra.mxu0 %v147
  %187 = vmatmul.bf16.gmra.mxu0 %v75
  %v188 = vpop.f32.mrf.mxu0
  %v189 = vadd.f32 %v61, %v188
  %v190 = vpop.f32.mrf.mxu0
  %v191 = vadd.f32 %v61, %v190
  %192 = vmatmul.bf16.gmra.mxu0 %v77
  %v193 = vpop.f32.mrf.mxu0
  %v194 = vadd.f32 %v61, %v193
  %v195 = vpop.f32.mrf.mxu0
  %v196 = vadd.f32 %v61, %v195
  %197 = vdwg.mxu0
  %198 = vmatpush.bf16.msra.mxu0 %v162
  %199 = vmatpush.bf16.msra.mxu0 %v161
  %200 = vmatpush.bf16.msra.mxu0 %v160
  %201 = vmatpush.bf16.msra.mxu0 %v159
  %202 = vmatpush.bf16.msra.mxu0 %v158
  %203 = vmatpush.bf16.msra.mxu0 %v157
  %204 = vmatpush.bf16.msra.mxu0 %v156
  %205 = vmatpush.bf16.msra.mxu0 %v155
  %206 = vmatmul.bf16.gmra.mxu0 %v76
  %v207 = vpop.f32.mrf.mxu0
  %v208 = vadd.f32 %v189, %v207
  %v209 = vpop.f32.mrf.mxu0
  %v210 = vadd.f32 %v191, %v209
  %211 = vmatmul.bf16.gmra.mxu0 %v78
  %v212 = vpop.f32.mrf.mxu0
  %v213 = vadd.f32 %v194, %v212
  %v214 = vpop.f32.mrf.mxu0
  %v215 = vadd.f32 %v196, %v214
  %216 = vdwg.mxu0
  %v217 = vld [vmem:[%s3] sm:$0xf]
  %v218 = vld [vmem:[%s3 + $0x4] sm:$0xf]
  %v219 = vld [vmem:[%s3 + $0x8] sm:$0xf]
  %v220 = vld [vmem:[%s3 + $0xc] sm:$0xf]
  %v221 = vunpack.c.l.bf16 %v217
  %v222 = vunpack.c.l.bf16 %v218
  %v223 = vunpack.c.l.bf16 %v219
  %v224 = vunpack.c.l.bf16 %v220
  %v225 = vadd.f32 %v208, %v221
  %v226 = vadd.f32 %v210, %v222
  %v227 = vadd.f32 %v213, %v223
  %v228 = vadd.f32 %v215, %v224
  %229 = vadd.xlane.f32.xlu0 %v225
  %v230 = vpop.xlane.xlu0 %229
  %231 = vadd.xlane.f32.xlu0 %v226
  %v232 = vpop.xlane.xlu0 %231
  %233 = vadd.xlane.f32.xlu0 %v227
  %v234 = vpop.xlane.xlu0 %233
  %235 = vadd.xlane.f32.xlu0 %v228
  %v236 = vpop.xlane.xlu0 %235
  %v237 = vrcp.pop 128.0
  %v238 = vmul.f32 128.0, %v237
  %v239 = vsub.f32 1.0, %v238
  %v240 = vmul.f32 %v237, %v239
  %v241 = vadd.f32 %v237, %v240
  %vm242 = vweird.f32 %v237
  %v243 = vsel %vm242, %v237, %v241
  %v244 = vmul.f32 %v230, %v243
  %v245 = vmul.f32 %v232, %v243
  %v246 = vmul.f32 %v234, %v243
  %v247 = vmul.f32 %v236, %v243
  %v248 = vsub.f32 %v225, %v244
  %v249 = vsub.f32 %v226, %v245
  %v250 = vsub.f32 %v227, %v246
  %v251 = vsub.f32 %v228, %v247
  %v252 = vmul.f32 %v248, %v248
  %v253 = vmul.f32 %v249, %v249
  %v254 = vmul.f32 %v250, %v250
  %v255 = vmul.f32 %v251, %v251
  %256 = vadd.xlane.f32.xlu0 %v252
  %v257 = vpop.xlane.xlu0 %256
  %258 = vadd.xlane.f32.xlu0 %v253
  %v259 = vpop.xlane.xlu0 %258
  %260 = vadd.xlane.f32.xlu0 %v254
  %v261 = vpop.xlane.xlu0 %260
  %262 = vadd.xlane.f32.xlu0 %v255
  %v263 = vpop.xlane.xlu0 %262
  %v264 = vmul.f32 %v257, %v243
  %v265 = vmul.f32 %v259, %v243
  %v266 = vmul.f32 %v261, %v243
  %v267 = vmul.f32 %v263, %v243
  %v268 = vadd.f32 %v264, 1e-05
  %v269 = vadd.f32 %v265, 1e-05
  %v270 = vadd.f32 %v266, 1e-05
  %v271 = vadd.f32 %v267, 1e-05
  %v272 = vrsqrt.pop %v268
  %v273 = vmul.f32 %v272, %v268
  %v274 = vmul.f32 %v273, %v272
  %v275 = vmul.f32 0.5, %v274
  %v276 = vsub.f32 1.5, %v275
  %v277 = vmul.f32 %v272, %v276
  %vm278 = vweird.f32 %v268
  %vm279 = vweird.f32 %v272
  %vm280 = vmor %vm278, %vm279
  %v281 = vsel %vm280, %v272, %v277
  %v282 = vrsqrt.pop %v269
  %v283 = vmul.f32 %v282, %v269
  %v284 = vmul.f32 %v283, %v282
  %v285 = vmul.f32 0.5, %v284
  %v286 = vsub.f32 1.5, %v285
  %v287 = vmul.f32 %v282, %v286
  %vm288 = vweird.f32 %v269
  %vm289 = vweird.f32 %v282
  %vm290 = vmor %vm288, %vm289
  %v291 = vsel %vm290, %v282, %v287
  %v292 = vrsqrt.pop %v270
  %v293 = vmul.f32 %v292, %v270
  %v294 = vmul.f32 %v293, %v292
  %v295 = vmul.f32 0.5, %v294
  %v296 = vsub.f32 1.5, %v295
  %v297 = vmul.f32 %v292, %v296
  %vm298 = vweird.f32 %v270
  %vm299 = vweird.f32 %v292
  %vm300 = vmor %vm298, %vm299
  %v301 = vsel %vm300, %v292, %v297
  %v302 = vrsqrt.pop %v271
  %v303 = vmul.f32 %v302, %v271
  %v304 = vmul.f32 %v303, %v302
  %v305 = vmul.f32 0.5, %v304
  %v306 = vsub.f32 1.5, %v305
  %v307 = vmul.f32 %v302, %v306
  %vm308 = vweird.f32 %v271
  %vm309 = vweird.f32 %v302
  %vm310 = vmor %vm308, %vm309
  %v311 = vsel %vm310, %v302, %v307
  %v312 = vmul.f32 %v248, %v281
  %v313 = vmul.f32 %v249, %v291
  %v314 = vmul.f32 %v250, %v301
  %v315 = vmul.f32 %v251, %v311
  %v316 = vld [vmem:[%s4] sm:$0x1]
  %v318 = vperm.slane %v316, 0
  %v320 = vmul.f32 %v312, %v318
  %v321 = vmul.f32 %v313, %v318
  %v322 = vmul.f32 %v314, %v318
  %v323 = vmul.f32 %v315, %v318
  %v324 = vld [vmem:[%s5] sm:$0x1]
  %v326 = vperm.slane %v324, 0
  %v328 = vadd.f32 %v320, %v326
  %v329 = vadd.f32 %v321, %v326
  %v330 = vadd.f32 %v322, %v326
  %v331 = vadd.f32 %v323, %v326
  %v332 = vpack.c.bf16 %v328, %v328
  %v333 = vpack.c.bf16 %v329, %v329
  %v334 = vpack.c.bf16 %v330, %v330
  %v335 = vpack.c.bf16 %v331, %v331
  %336 = vst [vmem:[%s6] sm:$0xf] %v332
  %337 = vst [vmem:[%s6 + $0x4] sm:$0xf] %v333
  %338 = vst [vmem:[%s6 + $0x8] sm:$0xf] %v334
  %339 = vst [vmem:[%s6 + $0xc] sm:$0xf] %v335
  // Predicated region
  $region26: #{nst_forward.61} parent=0 // pred_check
    _
  $region27: #{nst_forward.61} parent=0 // pred_check_branch
    %341 = sbr.rel (0) target = $region29
  $region28: #{nst_forward.61} parent=0 // pred_region
    _
  $region29: #{nst_forward.61} parent=0 // pred_fallthru
    _
  // Predicated region
  $region30: #{nst_forward.61} parent=0 // pred_check
    _
  $region31: #{nst_forward.61} parent=0 // pred_check_branch
    %343 = sbr.rel (0) target = $region33
  $region32: #{nst_forward.61} parent=0 // pred_region
    _
  $region33: #{nst_forward.61} parent=0 // pred_fallthru
    _

// kernel: nst_forward.77
$region0: #{nst_forward.77}
  #allocation0 [shape = 'u32[]', space=smem, size = 0x4, offset = 0x4, fixed_abs, tag = 'smem constant byte address 0x4 - core index']
  #allocation1 [shape = 'u32[72,128]{1,0:T(1,128)}', space=vmem, size = 0x9000, scoped, tag = 'internal scratch']
  %s0 = inlined_call_operand.vmem [shape: bf16[32,128], index: 0, kind: input, shape index: {}]
  %s1 = inlined_call_operand.vmem [shape: bf16[128,128], index: 1, kind: input, shape index: {}]
  %s2 = inlined_call_operand.hbm [shape: f32[1,128], index: 2, kind: input, shape index: {}]
  %s3 = inlined_call_operand.vmem [shape: bf16[32,128], index: 3, kind: output, shape index: {}]
  %s4 = sld [smem:[#allocation0]]
  $region26: #{nst_forward.77} parent=0
    _
  %s6 = ssub.s32 1, %s4
  %s7 = scalar_select 0, %s6, %s4
  $region1: #{nst_forward.77} parent=0
    #allocation2 [shape = 'u8[512]{0}', space=vmem, size = 0x400, scoped, tag = 'input window, operand 2, single buffered']
    #allocation3 [shape = 's32[1]{0}', space=sflag, size = 0x4, scoped, tag = 'scoped memory for nst_forward.77']
    %8 = vsyncpa [#allocation3], 0
    // Predicated region
    $region2: #{nst_forward.77} parent=1 // pred_check
      _
    $region3: #{nst_forward.77} parent=1 // pred_check_branch
      %10 = sbr.rel (0) target = $region5
    $region4: #{nst_forward.77} parent=1 // pred_region
      _
    $region5: #{nst_forward.77} parent=1 // pred_fallthru
      _
    // Predicated region
    $region6: #{nst_forward.77} parent=1 // pred_check
      _
    $region7: #{nst_forward.77} parent=1 // pred_check_branch
      %12 = sbr.rel (0) target = $region9
    $region8: #{nst_forward.77} parent=1 // pred_region
      _
    $region9: #{nst_forward.77} parent=1 // pred_fallthru
      _
    // Predicated region
    $region10: #{nst_forward.77} parent=1 // pred_check
      _
    $region11: #{nst_forward.77} parent=1 // pred_check_branch
      %14 = sbr.rel (0) target = $region13
    $region12: #{nst_forward.77} parent=1 // pred_region
      %16 = vsyncadd [#allocation3], 0
      %s18 = sshll.u32 %s2, 4
      %s19 = int_to_ptr.hbm [resolvable:$true] %s18
      %s20 = sshll.u32 [#allocation2], 4
      %s21 = int_to_ptr.vmem [resolvable:$true] %s20
      %23 = dma.hbm_to_vmem [thread:$0]  %s19, 16, %s21, [#allocation3]
    $region13: #{nst_forward.77} parent=1 // pred_fallthru
      _
    // Predicated region
    $region14: #{nst_forward.77} parent=1 // pred_check
      _
    $region15: #{nst_forward.77} parent=1 // pred_check_branch
      %25 = sbr.rel (0) target = $region17
    $region16: #{nst_forward.77} parent=1 // pred_region
      %27 = dma.done [#allocation3], 16
    $region17: #{nst_forward.77} parent=1 // pred_fallthru
      _
    %v28 = vld [vmem:[%s0] sm:$0xf]
    %v29 = vld [vmem:[%s0 + $0x4] sm:$0xf]
    %v30 = vld [vmem:[%s0 + $0x8] sm:$0xf]
    %v31 = vld [vmem:[%s0 + $0xc] sm:$0xf]
    %v32 = vld [vmem:[%s1] sm:$0xf]
    %v33 = vld [vmem:[%s1 + $0x4] sm:$0xf]
    %v34 = vld [vmem:[%s1 + $0x8] sm:$0xf]
    %v35 = vld [vmem:[%s1 + $0xc] sm:$0xf]
    %v36 = vld [vmem:[%s1 + $0x10] sm:$0xf]
    %v37 = vld [vmem:[%s1 + $0x14] sm:$0xf]
    %v38 = vld [vmem:[%s1 + $0x18] sm:$0xf]
    %v39 = vld [vmem:[%s1 + $0x1c] sm:$0xf]
    %v40 = vld [vmem:[%s1 + $0x20] sm:$0xf]
    %v41 = vld [vmem:[%s1 + $0x24] sm:$0xf]
    %v42 = vld [vmem:[%s1 + $0x28] sm:$0xf]
    %v43 = vld [vmem:[%s1 + $0x2c] sm:$0xf]
    %v44 = vld [vmem:[%s1 + $0x30] sm:$0xf]
    %v45 = vld [vmem:[%s1 + $0x34] sm:$0xf]
    %v46 = vld [vmem:[%s1 + $0x38] sm:$0xf]
    %v47 = vld [vmem:[%s1 + $0x3c] sm:$0xf]
    %v48 = vld [vmem:[#allocation2] sm:$0x1]
    %v50 = vperm.slane %v48, 0
    %v56 = vunpack.c.l.b16 %v28
    %v57 = vunpack.c.l.b16 %v29
    %v58 = vunpack.c.l.b16 %v30
    %v59 = vunpack.c.l.b16 %v31
    %v60 = vpack.c.b16 %v57, %v56
    %v61 = vpack.c.b16 %v59, %v58
    %v80 = vunpack.c.l.b16 %v32
    %v81 = vunpack.c.l.b16 %v33
    %v82 = vunpack.c.l.b16 %v34
    %v83 = vunpack.c.l.b16 %v35
    %v84 = vunpack.c.l.b16 %v36
    %v85 = vunpack.c.l.b16 %v37
    %v86 = vunpack.c.l.b16 %v38
    %v87 = vunpack.c.l.b16 %v39
    %v88 = vunpack.c.l.b16 %v40
    %v89 = vunpack.c.l.b16 %v41
    %v90 = vunpack.c.l.b16 %v42
    %v91 = vunpack.c.l.b16 %v43
    %v92 = vunpack.c.l.b16 %v44
    %v93 = vunpack.c.l.b16 %v45
    %v94 = vunpack.c.l.b16 %v46
    %v95 = vunpack.c.l.b16 %v47
    %v96 = vpack.c.b16 %v81, %v80
    %v97 = vpack.c.b16 %v83, %v82
    %v98 = vpack.c.b16 %v85, %v84
    %v99 = vpack.c.b16 %v87, %v86
    %v100 = vpack.c.b16 %v89, %v88
    %v101 = vpack.c.b16 %v91, %v90
    %v102 = vpack.c.b16 %v93, %v92
    %v103 = vpack.c.b16 %v95, %v94
    %112 = vmatpush.bf16.msra.mxu0 %v103
    %113 = vmatpush.bf16.msra.mxu0 %v102
    %114 = vmatpush.bf16.msra.mxu0 %v101
    %115 = vmatpush.bf16.msra.mxu0 %v100
    %116 = vmatpush.bf16.msra.mxu0 %v99
    %117 = vmatpush.bf16.msra.mxu0 %v98
    %118 = vmatpush.bf16.msra.mxu0 %v97
    %119 = vmatpush.bf16.msra.mxu0 %v96
    %120 = vmatmul.bf16.gmra.mxu0 %v60
    %v121 = vpop.f32.mrf.mxu0
    %v122 = vadd.f32 %v50, %v121
    %v123 = vpop.f32.mrf.mxu0
    %v124 = vadd.f32 %v50, %v123
    %125 = vmatmul.bf16.gmra.mxu0 %v61
    %v126 = vpop.f32.mrf.mxu0
    %v127 = vadd.f32 %v50, %v126
    %v128 = vpop.f32.mrf.mxu0
    %v129 = vadd.f32 %v50, %v128
    %130 = vdwg.mxu0
    %v131 = vpack.c.bf16 %v122, %v122
    %v132 = vpack.c.bf16 %v124, %v124
    %v133 = vpack.c.bf16 %v127, %v127
    %v134 = vpack.c.bf16 %v129, %v129
    %135 = vst [vmem:[%s3] sm:$0xf] %v131
    %136 = vst [vmem:[%s3 + $0x4] sm:$0xf] %v132
    %137 = vst [vmem:[%s3 + $0x8] sm:$0xf] %v133
    %138 = vst [vmem:[%s3 + $0xc] sm:$0xf] %v134
    // Predicated region
    $region18: #{nst_forward.77} parent=1 // pred_check
      _
    $region19: #{nst_forward.77} parent=1 // pred_check_branch
      %140 = sbr.rel (0) target = $region21
    $region20: #{nst_forward.77} parent=1 // pred_region
      _
    $region21: #{nst_forward.77} parent=1 // pred_fallthru
      _
    // Predicated region
    $region22: #{nst_forward.77} parent=1 // pred_check
      _
    $region23: #{nst_forward.77} parent=1 // pred_check_branch
      %142 = sbr.rel (0) target = $region25
    $region24: #{nst_forward.77} parent=1 // pred_region
      _
    $region25: #{nst_forward.77} parent=1 // pred_fallthru
      _
    %143 = vsyncpa [#allocation3], 1

// kernel: nst_forward.98
$region0: #{nst_forward.98}
  #allocation0 [shape = 'u32[]', space=smem, size = 0x4, offset = 0x4, fixed_abs, tag = 'smem constant byte address 0x4 - core index']
  #allocation1 [shape = 'u32[72,128]{1,0:T(1,128)}', space=vmem, size = 0x9000, scoped, tag = 'internal scratch']
  %s0 = inlined_call_operand.vmem [shape: bf16[32,128], index: 0, kind: input, shape index: {}]
  %s1 = inlined_call_operand.hbm [shape: bf16[128,128], index: 1, kind: input, shape index: {}]
  %s2 = inlined_call_operand.hbm [shape: f32[1,128], index: 2, kind: input, shape index: {}]
  %s3 = inlined_call_operand.vmem [shape: bf16[32,128], index: 3, kind: output, shape index: {}]
  %s4 = sld [smem:[#allocation0]]
  $region30: #{nst_forward.98} parent=0
    _
  %s6 = ssub.s32 1, %s4
  %s7 = scalar_select 0, %s6, %s4
  $region1: #{nst_forward.98} parent=0
    #allocation2 [shape = 'u8[32768]{0}', space=vmem, size = 0x8000, scoped, tag = 'input window, operand 1, single buffered']
    #allocation3 [shape = 's32[1]{0}', space=sflag, size = 0x4, scoped, tag = 'scoped memory for nst_forward.98']
    #allocation4 [shape = 'u8[512]{0}', space=vmem, size = 0x400, scoped, tag = 'input window, operand 2, single buffered']
    #allocation5 [shape = 's32[1]{0}', space=sflag, size = 0x4, scoped, tag = 'scoped memory for nst_forward.98']
    %8 = vsyncpa [#allocation3], 0
    %9 = vsyncpa [#allocation5], 0
    // Predicated region
    $region2: #{nst_forward.98} parent=1 // pred_check
      _
    $region3: #{nst_forward.98} parent=1 // pred_check_branch
      %11 = sbr.rel (0) target = $region5
    $region4: #{nst_forward.98} parent=1 // pred_region
      _
    $region5: #{nst_forward.98} parent=1 // pred_fallthru
      _
    // Predicated region
    $region6: #{nst_forward.98} parent=1 // pred_check
      _
    $region7: #{nst_forward.98} parent=1 // pred_check_branch
      %13 = sbr.rel (0) target = $region9
    $region8: #{nst_forward.98} parent=1 // pred_region
      %15 = vsyncadd [#allocation3], 0
      %s16 = sshll.u32 %s1, 4
      %s17 = int_to_ptr.hbm [resolvable:$true] %s16
      %s18 = sshll.u32 [#allocation2], 4
      %s19 = int_to_ptr.vmem [resolvable:$true] %s18
      %24 = dma.hbm_to_vmem [thread:$0]  %s17, 1024, %s19, [#allocation3], 64, 64, 4
    $region9: #{nst_forward.98} parent=1 // pred_fallthru
      _
    // Predicated region
    $region10: #{nst_forward.98} parent=1 // pred_check
      _
    $region11: #{nst_forward.98} parent=1 // pred_check_branch
      %26 = sbr.rel (0) target = $region13
    $region12: #{nst_forward.98} parent=1 // pred_region
      %28 = vsyncadd [#allocation5], 0
      %s30 = sshll.u32 %s2, 4
      %s31 = int_to_ptr.hbm [resolvable:$true] %s30
      %s32 = sshll.u32 [#allocation4], 4
      %s33 = int_to_ptr.vmem [resolvable:$true] %s32
      %35 = dma.hbm_to_vmem [thread:$0]  %s31, 16, %s33, [#allocation5]
    $region13: #{nst_forward.98} parent=1 // pred_fallthru
      _
    // Predicated region
    $region14: #{nst_forward.98} parent=1 // pred_check
      _
    $region15: #{nst_forward.98} parent=1 // pred_check_branch
      %37 = sbr.rel (0) target = $region17
    $region16: #{nst_forward.98} parent=1 // pred_region
      %39 = dma.done [#allocation3], 1024
    $region17: #{nst_forward.98} parent=1 // pred_fallthru
      _
    // Predicated region
    $region18: #{nst_forward.98} parent=1 // pred_check
      _
    $region19: #{nst_forward.98} parent=1 // pred_check_branch
      %41 = sbr.rel (0) target = $region21
    $region20: #{nst_forward.98} parent=1 // pred_region
      %43 = dma.done [#allocation5], 16
    $region21: #{nst_forward.98} parent=1 // pred_fallthru
      _
    %v44 = vld [vmem:[%s0] sm:$0xf]
    %v45 = vld [vmem:[%s0 + $0x4] sm:$0xf]
    %v46 = vld [vmem:[%s0 + $0x8] sm:$0xf]
    %v47 = vld [vmem:[%s0 + $0xc] sm:$0xf]
    %v48 = vld [vmem:[#allocation2] sm:$0xf]
    %v49 = vld [vmem:[#allocation2 + $0x4] sm:$0xf]
    %v50 = vld [vmem:[#allocation2 + $0x8] sm:$0xf]
    %v51 = vld [vmem:[#allocation2 + $0xc] sm:$0xf]
    %v52 = vld [vmem:[#allocation2 + $0x10] sm:$0xf]
    %v53 = vld [vmem:[#allocation2 + $0x14] sm:$0xf]
    %v54 = vld [vmem:[#allocation2 + $0x18] sm:$0xf]
    %v55 = vld [vmem:[#allocation2 + $0x1c] sm:$0xf]
    %v56 = vld [vmem:[#allocation2 + $0x20] sm:$0xf]
    %v57 = vld [vmem:[#allocation2 + $0x24] sm:$0xf]
    %v58 = vld [vmem:[#allocation2 + $0x28] sm:$0xf]
    %v59 = vld [vmem:[#allocation2 + $0x2c] sm:$0xf]
    %v60 = vld [vmem:[#allocation2 + $0x30] sm:$0xf]
    %v61 = vld [vmem:[#allocation2 + $0x34] sm:$0xf]
    %v62 = vld [vmem:[#allocation2 + $0x38] sm:$0xf]
    %v63 = vld [vmem:[#allocation2 + $0x3c] sm:$0xf]
    %v64 = vld [vmem:[#allocation4] sm:$0x1]
    %v66 = vperm.slane %v64, 0
    %v72 = vunpack.c.l.b16 %v44
    %v73 = vunpack.c.l.b16 %v45
    %v74 = vunpack.c.l.b16 %v46
    %v75 = vunpack.c.l.b16 %v47
    %v76 = vpack.c.b16 %v73, %v72
    %v77 = vpack.c.b16 %v75, %v74
    %v96 = vunpack.c.l.b16 %v48
    %v97 = vunpack.c.l.b16 %v49
    %v98 = vunpack.c.l.b16 %v50
    %v99 = vunpack.c.l.b16 %v51
    %v100 = vunpack.c.l.b16 %v52
    %v101 = vunpack.c.l.b16 %v53
    %v102 = vunpack.c.l.b16 %v54
    %v103 = vunpack.c.l.b16 %v55
    %v104 = vunpack.c.l.b16 %v56
    %v105 = vunpack.c.l.b16 %v57
    %v106 = vunpack.c.l.b16 %v58
    %v107 = vunpack.c.l.b16 %v59
    %v108 = vunpack.c.l.b16 %v60
    %v109 = vunpack.c.l.b16 %v61
    %v110 = vunpack.c.l.b16 %v62
    %v111 = vunpack.c.l.b16 %v63
    %v112 = vpack.c.b16 %v97, %v96
    %v113 = vpack.c.b16 %v99, %v98
    %v114 = vpack.c.b16 %v101, %v100
    %v115 = vpack.c.b16 %v103, %v102
    %v116 = vpack.c.b16 %v105, %v104
    %v117 = vpack.c.b16 %v107, %v106
    %v118 = vpack.c.b16 %v109, %v108
    %v119 = vpack.c.b16 %v111, %v110
    %128 = vmatpush.bf16.msra.mxu0 %v119
    %129 = vmatpush.bf16.msra.mxu0 %v118
    %130 = vmatpush.bf16.msra.mxu0 %v117
    %131 = vmatpush.bf16.msra.mxu0 %v116
    %132 = vmatpush.bf16.msra.mxu0 %v115
    %133 = vmatpush.bf16.msra.mxu0 %v114
    %134 = vmatpush.bf16.msra.mxu0 %v113
    %135 = vmatpush.bf16.msra.mxu0 %v112
    %136 = vmatmul.bf16.gmra.mxu0 %v76
    %v137 = vpop.f32.mrf.mxu0
    %v138 = vadd.f32 %v66, %v137
    %v139 = vpop.f32.mrf.mxu0
    %v140 = vadd.f32 %v66, %v139
    %141 = vmatmul.bf16.gmra.mxu0 %v77
    %v142 = vpop.f32.mrf.mxu0
    %v143 = vadd.f32 %v66, %v142
    %v144 = vpop.f32.mrf.mxu0
    %v145 = vadd.f32 %v66, %v144
    %146 = vdwg.mxu0
    %v147 = vpack.c.bf16 %v138, %v138
    %v148 = vpack.c.bf16 %v140, %v140
    %v149 = vpack.c.bf16 %v143, %v143
    %v150 = vpack.c.bf16 %v145, %v145
    %151 = vst [vmem:[%s3] sm:$0xf] %v147
    %152 = vst [vmem:[%s3 + $0x4] sm:$0xf] %v148
    %153 = vst [vmem:[%s3 + $0x8] sm:$0xf] %v149
    %154 = vst [vmem:[%s3 + $0xc] sm:$0xf] %v150
    // Predicated region
    $region22: #{nst_forward.98} parent=1 // pred_check
      _
    $region23: #{nst_forward.98} parent=1 // pred_check_branch
      %156 = sbr.rel (0) target = $region25
    $region24: #{nst_forward.98} parent=1 // pred_region
      _
    $region25: #{nst_forward.98} parent=1 // pred_fallthru
      _
    // Predicated region
    $region26: #{nst_forward.98} parent=1 // pred_check
      _
    $region27: #{nst_forward.98} parent=1 // pred_check_branch
      %158 = sbr.rel (0) target = $region29
    $region28: #{nst_forward.98} parent=1 // pred_region
      _
    $region29: #{nst_forward.98} parent=1 // pred_fallthru
      _
    %159 = vsyncpa [#allocation3], 1
    %160 = vsyncpa [#allocation5], 1

// kernel: nst_forward.74
$region0: #{nst_forward.74}
  #allocation0 [shape = 'u32[]', space=smem, size = 0x4, offset = 0x4, fixed_abs, tag = 'smem constant byte address 0x4 - core index']
  #allocation1 [shape = 'u32[72,128]{1,0:T(1,128)}', space=vmem, size = 0x9000, scoped, tag = 'internal scratch']
  %s0 = inlined_call_operand.vmem [shape: bf16[32,128], index: 0, kind: input, shape index: {}]
  %s1 = inlined_call_operand.vmem [shape: bf16[128,128], index: 1, kind: input, shape index: {}]
  %s2 = inlined_call_operand.hbm [shape: f32[1,128], index: 2, kind: input, shape index: {}]
  %s3 = inlined_call_operand.vmem [shape: bf16[32,128], index: 3, kind: input, shape index: {}]
  %s4 = inlined_call_operand.hbm [shape: f32[1,128], index: 4, kind: input, shape index: {}]
  %s5 = inlined_call_operand.hbm [shape: f32[1,128], index: 5, kind: input, shape index: {}]
  %s6 = inlined_call_operand.vmem [shape: bf16[32,128], index: 6, kind: output, shape index: {}]
  %s7 = sld [smem:[#allocation0]]
  $region46: #{nst_forward.74} parent=0
    _
  %s9 = ssub.s32 1, %s7
  %s10 = scalar_select 0, %s9, %s7
  $region1: #{nst_forward.74} parent=0
    #allocation2 [shape = 'u8[512]{0}', space=vmem, size = 0x400, scoped, tag = 'input window, operand 2, single buffered']
    #allocation3 [shape = 's32[1]{0}', space=sflag, size = 0x4, scoped, tag = 'scoped memory for nst_forward.74']
    #allocation4 [shape = 'u8[512]{0}', space=vmem, size = 0x400, scoped, tag = 'input window, operand 4, single buffered']
    #allocation5 [shape = 's32[1]{0}', space=sflag, size = 0x4, scoped, tag = 'scoped memory for nst_forward.74']
    #allocation6 [shape = 'u8[512]{0}', space=vmem, size = 0x400, scoped, tag = 'input window, operand 5, single buffered']
    %11 = vsyncpa [#allocation3], 0
    %12 = vsyncpa [#allocation5], 0
    // Predicated region
    $region2: #{nst_forward.74} parent=1 // pred_check
      _
    $region3: #{nst_forward.74} parent=1 // pred_check_branch
      %14 = sbr.rel (0) target = $region5
    $region4: #{nst_forward.74} parent=1 // pred_region
      _
    $region5: #{nst_forward.74} parent=1 // pred_fallthru
      _
    // Predicated region
    $region6: #{nst_forward.74} parent=1 // pred_check
      _
    $region7: #{nst_forward.74} parent=1 // pred_check_branch
      %16 = sbr.rel (0) target = $region9
    $region8: #{nst_forward.74} parent=1 // pred_region
      _
    $region9: #{nst_forward.74} parent=1 // pred_fallthru
      _
    // Predicated region
    $region10: #{nst_forward.74} parent=1 // pred_check
      _
    $region11: #{nst_forward.74} parent=1 // pred_check_branch
      %18 = sbr.rel (0) target = $region13
    $region12: #{nst_forward.74} parent=1 // pred_region
      %20 = vsyncadd [#allocation3], 0
      %s22 = sshll.u32 %s2, 4
      %s23 = int_to_ptr.hbm [resolvable:$true] %s22
      %s24 = sshll.u32 [#allocation2], 4
      %s25 = int_to_ptr.vmem [resolvable:$true] %s24
      %27 = dma.hbm_to_vmem [thread:$0]  %s23, 16, %s25, [#allocation3]
    $region13: #{nst_forward.74} parent=1 // pred_fallthru
      _
    // Predicated region
    $region14: #{nst_forward.74} parent=1 // pred_check
      _
    $region15: #{nst_forward.74} parent=1 // pred_check_branch
      %29 = sbr.rel (0) target = $region17
    $region16: #{nst_forward.74} parent=1 // pred_region
      _
    $region17: #{nst_forward.74} parent=1 // pred_fallthru
      _
    // Predicated region
    $region18: #{nst_forward.74} parent=1 // pred_check
      _
    $region19: #{nst_forward.74} parent=1 // pred_check_branch
      %31 = sbr.rel (0) target = $region21
    $region20: #{nst_forward.74} parent=1 // pred_region
      %33 = vsyncadd [#allocation5], 0
      %s35 = sshll.u32 %s4, 4
      %s36 = int_to_ptr.hbm [resolvable:$true] %s35
      %s37 = sshll.u32 [#allocation4], 4
      %s38 = int_to_ptr.vmem [resolvable:$true] %s37
      %40 = dma.hbm_to_vmem [thread:$0]  %s36, 16, %s38, [#allocation5]
    $region21: #{nst_forward.74} parent=1 // pred_fallthru
      _
    // Predicated region
    $region22: #{nst_forward.74} parent=1 // pred_check
      _
    $region23: #{nst_forward.74} parent=1 // pred_check_branch
      %42 = sbr.rel (0) target = $region25
    $region24: #{nst_forward.74} parent=1 // pred_region
      %44 = vsyncadd [#allocation5], 0
      %s46 = sshll.u32 %s5, 4
      %s47 = int_to_ptr.hbm [resolvable:$true] %s46
      %s48 = sshll.u32 [#allocation6], 4
      %s49 = int_to_ptr.vmem [resolvable:$true] %s48
      %51 = dma.hbm_to_vmem [thread:$0]  %s47, 16, %s49, [#allocation5]
    $region25: #{nst_forward.74} parent=1 // pred_fallthru
      _
    // Predicated region
    $region26: #{nst_forward.74} parent=1 // pred_check
      _
    $region27: #{nst_forward.74} parent=1 // pred_check_branch
      %53 = sbr.rel (0) target = $region29
    $region28: #{nst_forward.74} parent=1 // pred_region
      %55 = dma.done [#allocation3], 16
    $region29: #{nst_forward.74} parent=1 // pred_fallthru
      _
    // Predicated region
    $region30: #{nst_forward.74} parent=1 // pred_check
      _
    $region31: #{nst_forward.74} parent=1 // pred_check_branch
      %57 = sbr.rel (0) target = $region33
    $region32: #{nst_forward.74} parent=1 // pred_region
      %59 = dma.done [#allocation5], 16
    $region33: #{nst_forward.74} parent=1 // pred_fallthru
      _
    // Predicated region
    $region34: #{nst_forward.74} parent=1 // pred_check
      _
    $region35: #{nst_forward.74} parent=1 // pred_check_branch
      %61 = sbr.rel (0) target = $region37
    $region36: #{nst_forward.74} parent=1 // pred_region
      %63 = dma.done [#allocation5], 16
    $region37: #{nst_forward.74} parent=1 // pred_fallthru
      _
    %v64 = vld [vmem:[%s0] sm:$0xf]
    %v65 = vld [vmem:[%s0 + $0x4] sm:$0xf]
    %v66 = vld [vmem:[%s0 + $0x8] sm:$0xf]
    %v67 = vld [vmem:[%s0 + $0xc] sm:$0xf]
    %v68 = vld [vmem:[%s1] sm:$0xf]
    %v69 = vld [vmem:[%s1 + $0x4] sm:$0xf]
    %v70 = vld [vmem:[%s1 + $0x8] sm:$0xf]
    %v71 = vld [vmem:[%s1 + $0xc] sm:$0xf]
    %v72 = vld [vmem:[%s1 + $0x10] sm:$0xf]
    %v73 = vld [vmem:[%s1 + $0x14] sm:$0xf]
    %v74 = vld [vmem:[%s1 + $0x18] sm:$0xf]
    %v75 = vld [vmem:[%s1 + $0x1c] sm:$0xf]
    %v76 = vld [vmem:[%s1 + $0x20] sm:$0xf]
    %v77 = vld [vmem:[%s1 + $0x24] sm:$0xf]
    %v78 = vld [vmem:[%s1 + $0x28] sm:$0xf]
    %v79 = vld [vmem:[%s1 + $0x2c] sm:$0xf]
    %v80 = vld [vmem:[%s1 + $0x30] sm:$0xf]
    %v81 = vld [vmem:[%s1 + $0x34] sm:$0xf]
    %v82 = vld [vmem:[%s1 + $0x38] sm:$0xf]
    %v83 = vld [vmem:[%s1 + $0x3c] sm:$0xf]
    %v84 = vld [vmem:[#allocation2] sm:$0x1]
    %v86 = vperm.slane %v84, 0
    %v92 = vunpack.c.l.b16 %v64
    %v93 = vunpack.c.l.b16 %v65
    %v94 = vunpack.c.l.b16 %v66
    %v95 = vunpack.c.l.b16 %v67
    %v96 = vpack.c.b16 %v93, %v92
    %v97 = vpack.c.b16 %v95, %v94
    %v116 = vunpack.c.l.b16 %v68
    %v117 = vunpack.c.l.b16 %v69
    %v118 = vunpack.c.l.b16 %v70
    %v119 = vunpack.c.l.b16 %v71
    %v120 = vunpack.c.l.b16 %v72
    %v121 = vunpack.c.l.b16 %v73
    %v122 = vunpack.c.l.b16 %v74
    %v123 = vunpack.c.l.b16 %v75
    %v124 = vunpack.c.l.b16 %v76
    %v125 = vunpack.c.l.b16 %v77
    %v126 = vunpack.c.l.b16 %v78
    %v127 = vunpack.c.l.b16 %v79
    %v128 = vunpack.c.l.b16 %v80
    %v129 = vunpack.c.l.b16 %v81
    %v130 = vunpack.c.l.b16 %v82
    %v131 = vunpack.c.l.b16 %v83
    %v132 = vpack.c.b16 %v117, %v116
    %v133 = vpack.c.b16 %v119, %v118
    %v134 = vpack.c.b16 %v121, %v120
    %v135 = vpack.c.b16 %v123, %v122
    %v136 = vpack.c.b16 %v125, %v124
    %v137 = vpack.c.b16 %v127, %v126
    %v138 = vpack.c.b16 %v129, %v128
    %v139 = vpack.c.b16 %v131, %v130
    %148 = vmatpush.bf16.msra.mxu0 %v139
    %149 = vmatpush.bf16.msra.mxu0 %v138
    %150 = vmatpush.bf16.msra.mxu0 %v137
    %151 = vmatpush.bf16.msra.mxu0 %v136
    %152 = vmatpush.bf16.msra.mxu0 %v135
    %153 = vmatpush.bf16.msra.mxu0 %v134
    %154 = vmatpush.bf16.msra.mxu0 %v133
    %155 = vmatpush.bf16.msra.mxu0 %v132
    %156 = vmatmul.bf16.gmra.mxu0 %v96
    %v157 = vpop.f32.mrf.mxu0
    %v158 = vadd.f32 %v86, %v157
    %v159 = vpop.f32.mrf.mxu0
    %v160 = vadd.f32 %v86, %v159
    %161 = vmatmul.bf16.gmra.mxu0 %v97
    %v162 = vpop.f32.mrf.mxu0
    %v163 = vadd.f32 %v86, %v162
    %v164 = vpop.f32.mrf.mxu0
    %v165 = vadd.f32 %v86, %v164
    %166 = vdwg.mxu0
    %v167 = vld [vmem:[%s3] sm:$0xf]
    %v168 = vld [vmem:[%s3 + $0x4] sm:$0xf]
    %v169 = vld [vmem:[%s3 + $0x8] sm:$0xf]
    %v170 = vld [vmem:[%s3 + $0xc] sm:$0xf]
    %v171 = vunpack.c.l.bf16 %v167
    %v172 = vunpack.c.l.bf16 %v168
    %v173 = vunpack.c.l.bf16 %v169
    %v174 = vunpack.c.l.bf16 %v170
    %v175 = vadd.f32 %v158, %v171
    %v176 = vadd.f32 %v160, %v172
    %v177 = vadd.f32 %v163, %v173
    %v178 = vadd.f32 %v165, %v174
    %179 = vadd.xlane.f32.xlu0 %v175
    %v180 = vpop.xlane.xlu0 %179
    %181 = vadd.xlane.f32.xlu0 %v176
    %v182 = vpop.xlane.xlu0 %181
    %183 = vadd.xlane.f32.xlu0 %v177
    %v184 = vpop.xlane.xlu0 %183
    %185 = vadd.xlane.f32.xlu0 %v178
    %v186 = vpop.xlane.xlu0 %185
    %v187 = vrcp.pop 128.0
    %v188 = vmul.f32 128.0, %v187
    %v189 = vsub.f32 1.0, %v188
    %v190 = vmul.f32 %v187, %v189
    %v191 = vadd.f32 %v187, %v190
    %vm192 = vweird.f32 %v187
    %v193 = vsel %vm192, %v187, %v191
    %v194 = vmul.f32 %v180, %v193
    %v195 = vmul.f32 %v182, %v193
    %v196 = vmul.f32 %v184, %v193
    %v197 = vmul.f32 %v186, %v193
    %v198 = vsub.f32 %v175, %v194
    %v199 = vsub.f32 %v176, %v195
    %v200 = vsub.f32 %v177, %v196
    %v201 = vsub.f32 %v178, %v197
    %v202 = vmul.f32 %v198, %v198
    %v203 = vmul.f32 %v199, %v199
    %v204 = vmul.f32 %v200, %v200
    %v205 = vmul.f32 %v201, %v201
    %206 = vadd.xlane.f32.xlu0 %v202
    %v207 = vpop.xlane.xlu0 %206
    %208 = vadd.xlane.f32.xlu0 %v203
    %v209 = vpop.xlane.xlu0 %208
    %210 = vadd.xlane.f32.xlu0 %v204
    %v211 = vpop.xlane.xlu0 %210
    %212 = vadd.xlane.f32.xlu0 %v205
    %v213 = vpop.xlane.xlu0 %212
    %v214 = vmul.f32 %v207, %v193
    %v215 = vmul.f32 %v209, %v193
    %v216 = vmul.f32 %v211, %v193
    %v217 = vmul.f32 %v213, %v193
    %v218 = vadd.f32 %v214, 1e-05
    %v219 = vadd.f32 %v215, 1e-05
    %v220 = vadd.f32 %v216, 1e-05
    %v221 = vadd.f32 %v217, 1e-05
    %v222 = vrsqrt.pop %v218
    %v223 = vmul.f32 %v222, %v218
    %v224 = vmul.f32 %v223, %v222
    %v225 = vmul.f32 0.5, %v224
    %v226 = vsub.f32 1.5, %v225
    %v227 = vmul.f32 %v222, %v226
    %vm228 = vweird.f32 %v218
    %vm229 = vweird.f32 %v222
    %vm230 = vmor %vm228, %vm229
    %v231 = vsel %vm230, %v222, %v227
    %v232 = vrsqrt.pop %v219
    %v233 = vmul.f32 %v232, %v219
    %v234 = vmul.f32 %v233, %v232
    %v235 = vmul.f32 0.5, %v234
    %v236 = vsub.f32 1.5, %v235
    %v237 = vmul.f32 %v232, %v236
    %vm238 = vweird.f32 %v219
    %vm239 = vweird.f32 %v232
    %vm240 = vmor %vm238, %vm239
    %v241 = vsel %vm240, %v232, %v237
    %v242 = vrsqrt.pop %v220
    %v243 = vmul.f32 %v242, %v220
    %v244 = vmul.f32 %v243, %v242
    %v245 = vmul.f32 0.5, %v244
    %v246 = vsub.f32 1.5, %v245
    %v247 = vmul.f32 %v242, %v246
    %vm248 = vweird.f32 %v220
    %vm249 = vweird.f32 %v242
    %vm250 = vmor %vm248, %vm249
    %v251 = vsel %vm250, %v242, %v247
    %v252 = vrsqrt.pop %v221
    %v253 = vmul.f32 %v252, %v221
    %v254 = vmul.f32 %v253, %v252
    %v255 = vmul.f32 0.5, %v254
    %v256 = vsub.f32 1.5, %v255
    %v257 = vmul.f32 %v252, %v256
    %vm258 = vweird.f32 %v221
    %vm259 = vweird.f32 %v252
    %vm260 = vmor %vm258, %vm259
    %v261 = vsel %vm260, %v252, %v257
    %v262 = vmul.f32 %v198, %v231
    %v263 = vmul.f32 %v199, %v241
    %v264 = vmul.f32 %v200, %v251
    %v265 = vmul.f32 %v201, %v261
    %v266 = vld [vmem:[#allocation4] sm:$0x1]
    %v268 = vperm.slane %v266, 0
    %v270 = vmul.f32 %v262, %v268
    %v271 = vmul.f32 %v263, %v268
    %v272 = vmul.f32 %v264, %v268
    %v273 = vmul.f32 %v265, %v268
    %v274 = vld [vmem:[#allocation6] sm:$0x1]
    %v276 = vperm.slane %v274, 0
    %v278 = vadd.f32 %v270, %v276
    %v279 = vadd.f32 %v271, %v276
    %v280 = vadd.f32 %v272, %v276
    %v281 = vadd.f32 %v273, %v276
    %v282 = vpack.c.bf16 %v278, %v278
    %v283 = vpack.c.bf16 %v279, %v279
    %v284 = vpack.c.bf16 %v280, %v280
    %v285 = vpack.c.bf16 %v281, %v281
    %286 = vst [vmem:[%s6] sm:$0xf] %v282
    %287 = vst [vmem:[%s6 + $0x4] sm:$0xf] %v283
    %288 = vst [vmem:[%s6 + $0x8] sm:$0xf] %v284
    %289 = vst [vmem:[%s6 + $0xc] sm:$0xf] %v285
    // Predicated region
    $region38: #{nst_forward.74} parent=1 // pred_check
      _
    $region39: #{nst_forward.74} parent=1 // pred_check_branch
      %291 = sbr.rel (0) target = $region41
    $region40: #{nst_forward.74} parent=1 // pred_region
      _
    $region41: #{nst_forward.74} parent=1 // pred_fallthru
      _
    // Predicated region
    $region42: #{nst_forward.74} parent=1 // pred_check
      _
    $region43: #{nst_forward.74} parent=1 // pred_check_branch
      %293 = sbr.rel (0) target = $region45
    $region44: #{nst_forward.74} parent=1 // pred_region
      _
    $region45: #{nst_forward.74} parent=1 // pred_fallthru
      _
    %294 = vsyncpa [#allocation3], 1
    %295 = vsyncpa [#allocation5], 1

// kernel: nst_forward.76
$region0: #{nst_forward.76}
  #allocation0 [shape = 'u32[]', space=smem, size = 0x4, offset = 0x4, fixed_abs, tag = 'smem constant byte address 0x4 - core index']
  #allocation1 [shape = 'u32[72,128]{1,0:T(1,128)}', space=vmem, size = 0x9000, scoped, tag = 'internal scratch']
  %s0 = inlined_call_operand.vmem [shape: bf16[32,256], index: 0, kind: input, shape index: {}]
  %s1 = inlined_call_operand.vmem [shape: bf16[256,128], index: 1, kind: input, shape index: {}]
  %s2 = inlined_call_operand.hbm [shape: f32[1,128], index: 2, kind: input, shape index: {}]
  %s3 = inlined_call_operand.vmem [shape: bf16[32,128], index: 3, kind: input, shape index: {}]
  %s4 = inlined_call_operand.hbm [shape: f32[1,128], index: 4, kind: input, shape index: {}]
  %s5 = inlined_call_operand.hbm [shape: f32[1,128], index: 5, kind: input, shape index: {}]
  %s6 = inlined_call_operand.vmem [shape: bf16[32,128], index: 6, kind: output, shape index: {}]
  %s7 = sld [smem:[#allocation0]]
  $region46: #{nst_forward.76} parent=0
    _
  %s9 = ssub.s32 1, %s7
  %s10 = scalar_select 0, %s9, %s7
  $region1: #{nst_forward.76} parent=0
    #allocation2 [shape = 'u8[512]{0}', space=vmem, size = 0x400, scoped, tag = 'input window, operand 2, single buffered']
    #allocation3 [shape = 's32[1]{0}', space=sflag, size = 0x4, scoped, tag = 'scoped memory for nst_forward.76']
    #allocation4 [shape = 'u8[512]{0}', space=vmem, size = 0x400, scoped, tag = 'input window, operand 4, single buffered']
    #allocation5 [shape = 's32[1]{0}', space=sflag, size = 0x4, scoped, tag = 'scoped memory for nst_forward.76']
    #allocation6 [shape = 'u8[512]{0}', space=vmem, size = 0x400, scoped, tag = 'input window, operand 5, single buffered']
    %11 = vsyncpa [#allocation3], 0
    %12 = vsyncpa [#allocation5], 0
    // Predicated region
    $region2: #{nst_forward.76} parent=1 // pred_check
      _
    $region3: #{nst_forward.76} parent=1 // pred_check_branch
      %14 = sbr.rel (0) target = $region5
    $region4: #{nst_forward.76} parent=1 // pred_region
      _
    $region5: #{nst_forward.76} parent=1 // pred_fallthru
      _
    // Predicated region
    $region6: #{nst_forward.76} parent=1 // pred_check
      _
    $region7: #{nst_forward.76} parent=1 // pred_check_branch
      %16 = sbr.rel (0) target = $region9
    $region8: #{nst_forward.76} parent=1 // pred_region
      _
    $region9: #{nst_forward.76} parent=1 // pred_fallthru
      _
    // Predicated region
    $region10: #{nst_forward.76} parent=1 // pred_check
      _
    $region11: #{nst_forward.76} parent=1 // pred_check_branch
      %18 = sbr.rel (0) target = $region13
    $region12: #{nst_forward.76} parent=1 // pred_region
      %20 = vsyncadd [#allocation3], 0
      %s22 = sshll.u32 %s2, 4
      %s23 = int_to_ptr.hbm [resolvable:$true] %s22
      %s24 = sshll.u32 [#allocation2], 4
      %s25 = int_to_ptr.vmem [resolvable:$true] %s24
      %27 = dma.hbm_to_vmem [thread:$0]  %s23, 16, %s25, [#allocation3]
    $region13: #{nst_forward.76} parent=1 // pred_fallthru
      _
    // Predicated region
    $region14: #{nst_forward.76} parent=1 // pred_check
      _
    $region15: #{nst_forward.76} parent=1 // pred_check_branch
      %29 = sbr.rel (0) target = $region17
    $region16: #{nst_forward.76} parent=1 // pred_region
      _
    $region17: #{nst_forward.76} parent=1 // pred_fallthru
      _
    // Predicated region
    $region18: #{nst_forward.76} parent=1 // pred_check
      _
    $region19: #{nst_forward.76} parent=1 // pred_check_branch
      %31 = sbr.rel (0) target = $region21
    $region20: #{nst_forward.76} parent=1 // pred_region
      %33 = vsyncadd [#allocation5], 0
      %s35 = sshll.u32 %s4, 4
      %s36 = int_to_ptr.hbm [resolvable:$true] %s35
      %s37 = sshll.u32 [#allocation4], 4
      %s38 = int_to_ptr.vmem [resolvable:$true] %s37
      %40 = dma.hbm_to_vmem [thread:$0]  %s36, 16, %s38, [#allocation5]
    $region21: #{nst_forward.76} parent=1 // pred_fallthru
      _
    // Predicated region
    $region22: #{nst_forward.76} parent=1 // pred_check
      _
    $region23: #{nst_forward.76} parent=1 // pred_check_branch
      %42 = sbr.rel (0) target = $region25
    $region24: #{nst_forward.76} parent=1 // pred_region
      %44 = vsyncadd [#allocation5], 0
      %s46 = sshll.u32 %s5, 4
      %s47 = int_to_ptr.hbm [resolvable:$true] %s46
      %s48 = sshll.u32 [#allocation6], 4
      %s49 = int_to_ptr.vmem [resolvable:$true] %s48
      %51 = dma.hbm_to_vmem [thread:$0]  %s47, 16, %s49, [#allocation5]
    $region25: #{nst_forward.76} parent=1 // pred_fallthru
      _
    // Predicated region
    $region26: #{nst_forward.76} parent=1 // pred_check
      _
    $region27: #{nst_forward.76} parent=1 // pred_check_branch
      %53 = sbr.rel (0) target = $region29
    $region28: #{nst_forward.76} parent=1 // pred_region
      %55 = dma.done [#allocation3], 16
    $region29: #{nst_forward.76} parent=1 // pred_fallthru
      _
    // Predicated region
    $region30: #{nst_forward.76} parent=1 // pred_check
      _
    $region31: #{nst_forward.76} parent=1 // pred_check_branch
      %57 = sbr.rel (0) target = $region33
    $region32: #{nst_forward.76} parent=1 // pred_region
      %59 = dma.done [#allocation5], 16
    $region33: #{nst_forward.76} parent=1 // pred_fallthru
      _
    // Predicated region
    $region34: #{nst_forward.76} parent=1 // pred_check
      _
    $region35: #{nst_forward.76} parent=1 // pred_check_branch
      %61 = sbr.rel (0) target = $region37
    $region36: #{nst_forward.76} parent=1 // pred_region
      %63 = dma.done [#allocation5], 16
    $region37: #{nst_forward.76} parent=1 // pred_fallthru
      _
    %v64 = vld [vmem:[%s0] sm:$0xff]
    %v65 = vld [vmem:[%s0 + $0x8] sm:$0xff]
    %v66 = vld [vmem:[%s0 + $0x10] sm:$0xff]
    %v67 = vld [vmem:[%s0 + $0x18] sm:$0xff]
    %v68 = vld [vmem:[%s1] sm:$0xf]
    %v69 = vld [vmem:[%s1 + $0x4] sm:$0xf]
    %v70 = vld [vmem:[%s1 + $0x8] sm:$0xf]
    %v71 = vld [vmem:[%s1 + $0xc] sm:$0xf]
    %v72 = vld [vmem:[%s1 + $0x10] sm:$0xf]
    %v73 = vld [vmem:[%s1 + $0x14] sm:$0xf]
    %v74 = vld [vmem:[%s1 + $0x18] sm:$0xf]
    %v75 = vld [vmem:[%s1 + $0x1c] sm:$0xf]
    %v76 = vld [vmem:[%s1 + $0x20] sm:$0xf]
    %v77 = vld [vmem:[%s1 + $0x24] sm:$0xf]
    %v78 = vld [vmem:[%s1 + $0x28] sm:$0xf]
    %v79 = vld [vmem:[%s1 + $0x2c] sm:$0xf]
    %v80 = vld [vmem:[%s1 + $0x30] sm:$0xf]
    %v81 = vld [vmem:[%s1 + $0x34] sm:$0xf]
    %v82 = vld [vmem:[%s1 + $0x38] sm:$0xf]
    %v83 = vld [vmem:[%s1 + $0x3c] sm:$0xf]
    %v84 = vld [vmem:[%s1 + $0x40] sm:$0xf]
    %v85 = vld [vmem:[%s1 + $0x44] sm:$0xf]
    %v86 = vld [vmem:[%s1 + $0x48] sm:$0xf]
    %v87 = vld [vmem:[%s1 + $0x4c] sm:$0xf]
    %v88 = vld [vmem:[%s1 + $0x50] sm:$0xf]
    %v89 = vld [vmem:[%s1 + $0x54] sm:$0xf]
    %v90 = vld [vmem:[%s1 + $0x58] sm:$0xf]
    %v91 = vld [vmem:[%s1 + $0x5c] sm:$0xf]
    %v92 = vld [vmem:[%s1 + $0x60] sm:$0xf]
    %v93 = vld [vmem:[%s1 + $0x64] sm:$0xf]
    %v94 = vld [vmem:[%s1 + $0x68] sm:$0xf]
    %v95 = vld [vmem:[%s1 + $0x6c] sm:$0xf]
    %v96 = vld [vmem:[%s1 + $0x70] sm:$0xf]
    %v97 = vld [vmem:[%s1 + $0x74] sm:$0xf]
    %v98 = vld [vmem:[%s1 + $0x78] sm:$0xf]
    %v99 = vld [vmem:[%s1 + $0x7c] sm:$0xf]
    %v100 = vld [vmem:[#allocation2] sm:$0x1]
    %v102 = vperm.slane %v100, 0
    %v108 = vunpack.c.l.b16 %v64
    %v109 = vunpack.c.h.b16 %v64
    %v110 = vunpack.c.l.b16 %v65
    %v111 = vunpack.c.h.b16 %v65
    %v112 = vunpack.c.l.b16 %v66
    %v113 = vunpack.c.h.b16 %v66
    %v114 = vunpack.c.l.b16 %v67
    %v115 = vunpack.c.h.b16 %v67
    %v116 = vpack.c.b16 %v110, %v108
    %v117 = vpack.c.b16 %v111, %v109
    %v118 = vpack.c.b16 %v114, %v112
    %v119 = vpack.c.b16 %v115, %v113
    %v156 = vunpack.c.l.b16 %v68
    %v157 = vunpack.c.l.b16 %v69
    %v158 = vunpack.c.l.b16 %v70
    %v159 = vunpack.c.l.b16 %v71
    %v160 = vunpack.c.l.b16 %v72
    %v161 = vunpack.c.l.b16 %v73
    %v162 = vunpack.c.l.b16 %v74
    %v163 = vunpack.c.l.b16 %v75
    %v164 = vunpack.c.l.b16 %v76
    %v165 = vunpack.c.l.b16 %v77
    %v166 = vunpack.c.l.b16 %v78
    %v167 = vunpack.c.l.b16 %v79
    %v168 = vunpack.c.l.b16 %v80
    %v169 = vunpack.c.l.b16 %v81
    %v170 = vunpack.c.l.b16 %v82
    %v171 = vunpack.c.l.b16 %v83
    %v172 = vunpack.c.l.b16 %v84
    %v173 = vunpack.c.l.b16 %v85
    %v174 = vunpack.c.l.b16 %v86
    %v175 = vunpack.c.l.b16 %v87
    %v176 = vunpack.c.l.b16 %v88
    %v177 = vunpack.c.l.b16 %v89
    %v178 = vunpack.c.l.b16 %v90
    %v179 = vunpack.c.l.b16 %v91
    %v180 = vunpack.c.l.b16 %v92
    %v181 = vunpack.c.l.b16 %v93
    %v182 = vunpack.c.l.b16 %v94
    %v183 = vunpack.c.l.b16 %v95
    %v184 = vunpack.c.l.b16 %v96
    %v185 = vunpack.c.l.b16 %v97
    %v186 = vunpack.c.l.b16 %v98
    %v187 = vunpack.c.l.b16 %v99
    %v188 = vpack.c.b16 %v157, %v156
    %v189 = vpack.c.b16 %v159, %v158
    %v190 = vpack.c.b16 %v161, %v160
    %v191 = vpack.c.b16 %v163, %v162
    %v192 = vpack.c.b16 %v165, %v164
    %v193 = vpack.c.b16 %v167, %v166
    %v194 = vpack.c.b16 %v169, %v168
    %v195 = vpack.c.b16 %v171, %v170
    %v196 = vpack.c.b16 %v173, %v172
    %v197 = vpack.c.b16 %v175, %v174
    %v198 = vpack.c.b16 %v177, %v176
    %v199 = vpack.c.b16 %v179, %v178
    %v200 = vpack.c.b16 %v181, %v180
    %v201 = vpack.c.b16 %v183, %v182
    %v202 = vpack.c.b16 %v185, %v184
    %v203 = vpack.c.b16 %v187, %v186
    %220 = vmatpush.bf16.msra.mxu0 %v195
    %221 = vmatpush.bf16.msra.mxu0 %v194
    %222 = vmatpush.bf16.msra.mxu0 %v193
    %223 = vmatpush.bf16.msra.mxu0 %v192
    %224 = vmatpush.bf16.msra.mxu0 %v191
    %225 = vmatpush.bf16.msra.mxu0 %v190
    %226 = vmatpush.bf16.msra.mxu0 %v189
    %227 = vmatpush.bf16.msra.mxu0 %v188
    %228 = vmatmul.bf16.gmra.mxu0 %v116
    %v229 = vpop.f32.mrf.mxu0
    %v230 = vadd.f32 %v102, %v229
    %v231 = vpop.f32.mrf.mxu0
    %v232 = vadd.f32 %v102, %v231
    %233 = vmatmul.bf16.gmra.mxu0 %v118
    %v234 = vpop.f32.mrf.mxu0
    %v235 = vadd.f32 %v102, %v234
    %v236 = vpop.f32.mrf.mxu0
    %v237 = vadd.f32 %v102, %v236
    %238 = vdwg.mxu0
    %239 = vmatpush.bf16.msra.mxu0 %v203
    %240 = vmatpush.bf16.msra.mxu0 %v202
    %241 = vmatpush.bf16.msra.mxu0 %v201
    %242 = vmatpush.bf16.msra.mxu0 %v200
    %243 = vmatpush.bf16.msra.mxu0 %v199
    %244 = vmatpush.bf16.msra.mxu0 %v198
    %245 = vmatpush.bf16.msra.mxu0 %v197
    %246 = vmatpush.bf16.msra.mxu0 %v196
    %247 = vmatmul.bf16.gmra.mxu0 %v117
    %v248 = vpop.f32.mrf.mxu0
    %v249 = vadd.f32 %v230, %v248
    %v250 = vpop.f32.mrf.mxu0
    %v251 = vadd.f32 %v232, %v250
    %252 = vmatmul.bf16.gmra.mxu0 %v119
    %v253 = vpop.f32.mrf.mxu0
    %v254 = vadd.f32 %v235, %v253
    %v255 = vpop.f32.mrf.mxu0
    %v256 = vadd.f32 %v237, %v255
    %257 = vdwg.mxu0
    %v258 = vld [vmem:[%s3] sm:$0xf]
    %v259 = vld [vmem:[%s3 + $0x4] sm:$0xf]
    %v260 = vld [vmem:[%s3 + $0x8] sm:$0xf]
    %v261 = vld [vmem:[%s3 + $0xc] sm:$0xf]
    %v262 = vunpack.c.l.bf16 %v258
    %v263 = vunpack.c.l.bf16 %v259
    %v264 = vunpack.c.l.bf16 %v260
    %v265 = vunpack.c.l.bf16 %v261
    %v266 = vadd.f32 %v249, %v262
    %v267 = vadd.f32 %v251, %v263
    %v268 = vadd.f32 %v254, %v264
    %v269 = vadd.f32 %v256, %v265
    %270 = vadd.xlane.f32.xlu0 %v266
    %v271 = vpop.xlane.xlu0 %270
    %272 = vadd.xlane.f32.xlu0 %v267
    %v273 = vpop.xlane.xlu0 %272
    %274 = vadd.xlane.f32.xlu0 %v268
    %v275 = vpop.xlane.xlu0 %274
    %276 = vadd.xlane.f32.xlu0 %v269
    %v277 = vpop.xlane.xlu0 %276
    %v278 = vrcp.pop 128.0
    %v279 = vmul.f32 128.0, %v278
    %v280 = vsub.f32 1.0, %v279
    %v281 = vmul.f32 %v278, %v280
    %v282 = vadd.f32 %v278, %v281
    %vm283 = vweird.f32 %v278
    %v284 = vsel %vm283, %v278, %v282
    %v285 = vmul.f32 %v271, %v284
    %v286 = vmul.f32 %v273, %v284
    %v287 = vmul.f32 %v275, %v284
    %v288 = vmul.f32 %v277, %v284
    %v289 = vsub.f32 %v266, %v285
    %v290 = vsub.f32 %v267, %v286
    %v291 = vsub.f32 %v268, %v287
    %v292 = vsub.f32 %v269, %v288
    %v293 = vmul.f32 %v289, %v289
    %v294 = vmul.f32 %v290, %v290
    %v295 = vmul.f32 %v291, %v291
    %v296 = vmul.f32 %v292, %v292
    %297 = vadd.xlane.f32.xlu0 %v293
    %v298 = vpop.xlane.xlu0 %297
    %299 = vadd.xlane.f32.xlu0 %v294
    %v300 = vpop.xlane.xlu0 %299
    %301 = vadd.xlane.f32.xlu0 %v295
    %v302 = vpop.xlane.xlu0 %301
    %303 = vadd.xlane.f32.xlu0 %v296
    %v304 = vpop.xlane.xlu0 %303
    %v305 = vmul.f32 %v298, %v284
    %v306 = vmul.f32 %v300, %v284
    %v307 = vmul.f32 %v302, %v284
    %v308 = vmul.f32 %v304, %v284
    %v309 = vadd.f32 %v305, 1e-05
    %v310 = vadd.f32 %v306, 1e-05
    %v311 = vadd.f32 %v307, 1e-05
    %v312 = vadd.f32 %v308, 1e-05
    %v313 = vrsqrt.pop %v309
    %v314 = vmul.f32 %v313, %v309
    %v315 = vmul.f32 %v314, %v313
    %v316 = vmul.f32 0.5, %v315
    %v317 = vsub.f32 1.5, %v316
    %v318 = vmul.f32 %v313, %v317
    %vm319 = vweird.f32 %v309
    %vm320 = vweird.f32 %v313
    %vm321 = vmor %vm319, %vm320
    %v322 = vsel %vm321, %v313, %v318
    %v323 = vrsqrt.pop %v310
    %v324 = vmul.f32 %v323, %v310
    %v325 = vmul.f32 %v324, %v323
    %v326 = vmul.f32 0.5, %v325
    %v327 = vsub.f32 1.5, %v326
    %v328 = vmul.f32 %v323, %v327
    %vm329 = vweird.f32 %v310
    %vm330 = vweird.f32 %v323
    %vm331 = vmor %vm329, %vm330
    %v332 = vsel %vm331, %v323, %v328
    %v333 = vrsqrt.pop %v311
    %v334 = vmul.f32 %v333, %v311
    %v335 = vmul.f32 %v334, %v333
    %v336 = vmul.f32 0.5, %v335
    %v337 = vsub.f32 1.5, %v336
    %v338 = vmul.f32 %v333, %v337
    %vm339 = vweird.f32 %v311
    %vm340 = vweird.f32 %v333
    %vm341 = vmor %vm339, %vm340
    %v342 = vsel %vm341, %v333, %v338
    %v343 = vrsqrt.pop %v312
    %v344 = vmul.f32 %v343, %v312
    %v345 = vmul.f32 %v344, %v343
    %v346 = vmul.f32 0.5, %v345
    %v347 = vsub.f32 1.5, %v346
    %v348 = vmul.f32 %v343, %v347
    %vm349 = vweird.f32 %v312
    %vm350 = vweird.f32 %v343
    %vm351 = vmor %vm349, %vm350
    %v352 = vsel %vm351, %v343, %v348
    %v353 = vmul.f32 %v289, %v322
    %v354 = vmul.f32 %v290, %v332
    %v355 = vmul.f32 %v291, %v342
    %v356 = vmul.f32 %v292, %v352
    %v357 = vld [vmem:[#allocation4] sm:$0x1]
    %v359 = vperm.slane %v357, 0
    %v361 = vmul.f32 %v353, %v359
    %v362 = vmul.f32 %v354, %v359
    %v363 = vmul.f32 %v355, %v359
    %v364 = vmul.f32 %v356, %v359
    %v365 = vld [vmem:[#allocation6] sm:$0x1]
    %v367 = vperm.slane %v365, 0
    %v369 = vadd.f32 %v361, %v367
    %v370 = vadd.f32 %v362, %v367
    %v371 = vadd.f32 %v363, %v367
    %v372 = vadd.f32 %v364, %v367
    %v373 = vpack.c.bf16 %v369, %v369
    %v374 = vpack.c.bf16 %v370, %v370
    %v375 = vpack.c.bf16 %v371, %v371
    %v376 = vpack.c.bf16 %v372, %v372
    %377 = vst [vmem:[%s6] sm:$0xf] %v373
    %378 = vst [vmem:[%s6 + $0x4] sm:$0xf] %v374
    %379 = vst [vmem:[%s6 + $0x8] sm:$0xf] %v375
    %380 = vst [vmem:[%s6 + $0xc] sm:$0xf] %v376
    // Predicated region
    $region38: #{nst_forward.76} parent=1 // pred_check
      _
    $region39: #{nst_forward.76} parent=1 // pred_check_branch
      %382 = sbr.rel (0) target = $region41
    $region40: #{nst_forward.76} parent=1 // pred_region
      _
    $region41: #{nst_forward.76} parent=1 // pred_fallthru
      _
    // Predicated region
    $region42: #{nst_forward.76} parent=1 // pred_check
      _
    $region43: #{nst_forward.76} parent=1 // pred_check_branch
      %384 = sbr.rel (0) target = $region45
    $region44: #{nst_forward.76} parent=1 // pred_region
      _
    $region45: #{nst_forward.76} parent=1 // pred_fallthru
      _
    %385 = vsyncpa [#allocation3], 1
    %386 = vsyncpa [#allocation5], 1

// kernel: nst_forward.101
$region0: #{nst_forward.101}
  #allocation0 [shape = 'u32[]', space=smem, size = 0x4, offset = 0x4, fixed_abs, tag = 'smem constant byte address 0x4 - core index']
  #allocation1 [shape = 'u32[72,128]{1,0:T(1,128)}', space=vmem, size = 0x9000, scoped, tag = 'internal scratch']
  %s0 = inlined_call_operand.vmem [shape: bf16[32,128], index: 0, kind: input, shape index: {}]
  %s1 = inlined_call_operand.hbm [shape: bf16[128,128], index: 1, kind: input, shape index: {}]
  %s2 = inlined_call_operand.vmem [shape: f32[1,128], index: 2, kind: input, shape index: {}]
  %s3 = inlined_call_operand.vmem [shape: bf16[32,128], index: 3, kind: output, shape index: {}]
  %s4 = sld [smem:[#allocation0]]
  $region26: #{nst_forward.101} parent=0
    _
  %s6 = ssub.s32 1, %s4
  %s7 = scalar_select 0, %s6, %s4
  $region1: #{nst_forward.101} parent=0
    #allocation2 [shape = 'u8[32768]{0}', space=vmem, size = 0x8000, scoped, tag = 'input window, operand 1, single buffered']
    #allocation3 [shape = 's32[1]{0}', space=sflag, size = 0x4, scoped, tag = 'scoped memory for nst_forward.101']
    %8 = vsyncpa [#allocation3], 0
    // Predicated region
    $region2: #{nst_forward.101} parent=1 // pred_check
      _
    $region3: #{nst_forward.101} parent=1 // pred_check_branch
      %10 = sbr.rel (0) target = $region5
    $region4: #{nst_forward.101} parent=1 // pred_region
      _
    $region5: #{nst_forward.101} parent=1 // pred_fallthru
      _
    // Predicated region
    $region6: #{nst_forward.101} parent=1 // pred_check
      _
    $region7: #{nst_forward.101} parent=1 // pred_check_branch
      %12 = sbr.rel (0) target = $region9
    $region8: #{nst_forward.101} parent=1 // pred_region
      %14 = vsyncadd [#allocation3], 0
      %s15 = sshll.u32 %s1, 4
      %s16 = int_to_ptr.hbm [resolvable:$true] %s15
      %s17 = sshll.u32 [#allocation2], 4
      %s18 = int_to_ptr.vmem [resolvable:$true] %s17
      %23 = dma.hbm_to_vmem [thread:$0]  %s16, 1024, %s18, [#allocation3], 64, 64, 4
    $region9: #{nst_forward.101} parent=1 // pred_fallthru
      _
    // Predicated region
    $region10: #{nst_forward.101} parent=1 // pred_check
      _
    $region11: #{nst_forward.101} parent=1 // pred_check_branch
      %25 = sbr.rel (0) target = $region13
    $region12: #{nst_forward.101} parent=1 // pred_region
      _
    $region13: #{nst_forward.101} parent=1 // pred_fallthru
      _
    // Predicated region
    $region14: #{nst_forward.101} parent=1 // pred_check
      _
    $region15: #{nst_forward.101} parent=1 // pred_check_branch
      %27 = sbr.rel (0) target = $region17
    $region16: #{nst_forward.101} parent=1 // pred_region
      %29 = dma.done [#allocation3], 1024
    $region17: #{nst_forward.101} parent=1 // pred_fallthru
      _
    %v30 = vld [vmem:[%s0] sm:$0xf]
    %v31 = vld [vmem:[%s0 + $0x4] sm:$0xf]
    %v32 = vld [vmem:[%s0 + $0x8] sm:$0xf]
    %v33 = vld [vmem:[%s0 + $0xc] sm:$0xf]
    %v34 = vld [vmem:[#allocation2] sm:$0xf]
    %v35 = vld [vmem:[#allocation2 + $0x4] sm:$0xf]
    %v36 = vld [vmem:[#allocation2 + $0x8] sm:$0xf]
    %v37 = vld [vmem:[#allocation2 + $0xc] sm:$0xf]
    %v38 = vld [vmem:[#allocation2 + $0x10] sm:$0xf]
    %v39 = vld [vmem:[#allocation2 + $0x14] sm:$0xf]
    %v40 = vld [vmem:[#allocation2 + $0x18] sm:$0xf]
    %v41 = vld [vmem:[#allocation2 + $0x1c] sm:$0xf]
    %v42 = vld [vmem:[#allocation2 + $0x20] sm:$0xf]
    %v43 = vld [vmem:[#allocation2 + $0x24] sm:$0xf]
    %v44 = vld [vmem:[#allocation2 + $0x28] sm:$0xf]
    %v45 = vld [vmem:[#allocation2 + $0x2c] sm:$0xf]
    %v46 = vld [vmem:[#allocation2 + $0x30] sm:$0xf]
    %v47 = vld [vmem:[#allocation2 + $0x34] sm:$0xf]
    %v48 = vld [vmem:[#allocation2 + $0x38] sm:$0xf]
    %v49 = vld [vmem:[#allocation2 + $0x3c] sm:$0xf]
    %v50 = vld [vmem:[%s2] sm:$0x1]
    %v52 = vperm.slane %v50, 0
    %v58 = vunpack.c.l.b16 %v30
    %v59 = vunpack.c.l.b16 %v31
    %v60 = vunpack.c.l.b16 %v32
    %v61 = vunpack.c.l.b16 %v33
    %v62 = vpack.c.b16 %v59, %v58
    %v63 = vpack.c.b16 %v61, %v60
    %v82 = vunpack.c.l.b16 %v34
    %v83 = vunpack.c.l.b16 %v35
    %v84 = vunpack.c.l.b16 %v36
    %v85 = vunpack.c.l.b16 %v37
    %v86 = vunpack.c.l.b16 %v38
    %v87 = vunpack.c.l.b16 %v39
    %v88 = vunpack.c.l.b16 %v40
    %v89 = vunpack.c.l.b16 %v41
    %v90 = vunpack.c.l.b16 %v42
    %v91 = vunpack.c.l.b16 %v43
    %v92 = vunpack.c.l.b16 %v44
    %v93 = vunpack.c.l.b16 %v45
    %v94 = vunpack.c.l.b16 %v46
    %v95 = vunpack.c.l.b16 %v47
    %v96 = vunpack.c.l.b16 %v48
    %v97 = vunpack.c.l.b16 %v49
    %v98 = vpack.c.b16 %v83, %v82
    %v99 = vpack.c.b16 %v85, %v84
    %v100 = vpack.c.b16 %v87, %v86
    %v101 = vpack.c.b16 %v89, %v88
    %v102 = vpack.c.b16 %v91, %v90
    %v103 = vpack.c.b16 %v93, %v92
    %v104 = vpack.c.b16 %v95, %v94
    %v105 = vpack.c.b16 %v97, %v96
    %114 = vmatpush.bf16.msra.mxu0 %v105
    %115 = vmatpush.bf16.msra.mxu0 %v104
    %116 = vmatpush.bf16.msra.mxu0 %v103
    %117 = vmatpush.bf16.msra.mxu0 %v102
    %118 = vmatpush.bf16.msra.mxu0 %v101
    %119 = vmatpush.bf16.msra.mxu0 %v100
    %120 = vmatpush.bf16.msra.mxu0 %v99
    %121 = vmatpush.bf16.msra.mxu0 %v98
    %122 = vmatmul.bf16.gmra.mxu0 %v62
    %v123 = vpop.f32.mrf.mxu0
    %v124 = vadd.f32 %v52, %v123
    %v125 = vpop.f32.mrf.mxu0
    %v126 = vadd.f32 %v52, %v125
    %127 = vmatmul.bf16.gmra.mxu0 %v63
    %v128 = vpop.f32.mrf.mxu0
    %v129 = vadd.f32 %v52, %v128
    %v130 = vpop.f32.mrf.mxu0
    %v131 = vadd.f32 %v52, %v130
    %132 = vdwg.mxu0
    %v133 = vpack.c.bf16 %v124, %v124
    %v134 = vpack.c.bf16 %v126, %v126
    %v135 = vpack.c.bf16 %v129, %v129
    %v136 = vpack.c.bf16 %v131, %v131
    %137 = vst [vmem:[%s3] sm:$0xf] %v133
    %138 = vst [vmem:[%s3 + $0x4] sm:$0xf] %v134
    %139 = vst [vmem:[%s3 + $0x8] sm:$0xf] %v135
    %140 = vst [vmem:[%s3 + $0xc] sm:$0xf] %v136
    // Predicated region
    $region18: #{nst_forward.101} parent=1 // pred_check
      _
    $region19: #{nst_forward.101} parent=1 // pred_check_branch
      %142 = sbr.rel (0) target = $region21
    $region20: #{nst_forward.101} parent=1 // pred_region
      _
    $region21: #{nst_forward.101} parent=1 // pred_fallthru
      _
    // Predicated region
    $region22: #{nst_forward.101} parent=1 // pred_check
      _
    $region23: #{nst_forward.101} parent=1 // pred_check_branch
      %144 = sbr.rel (0) target = $region25
    $region24: #{nst_forward.101} parent=1 // pred_region
      _
    $region25: #{nst_forward.101} parent=1 // pred_fallthru
      _
    %145 = vsyncpa [#allocation3], 1

// kernel: nst_forward.100
$region0: #{nst_forward.100}
  #allocation0 [shape = 'u32[]', space=smem, size = 0x4, offset = 0x4, fixed_abs, tag = 'smem constant byte address 0x4 - core index']
  #allocation1 [shape = 'u32[72,128]{1,0:T(1,128)}', space=vmem, size = 0x9000, scoped, tag = 'internal scratch']
  %s0 = inlined_call_operand.vmem [shape: bf16[32,128], index: 0, kind: input, shape index: {}]
  %s1 = inlined_call_operand.hbm [shape: bf16[128,128], index: 1, kind: input, shape index: {}]
  %s2 = inlined_call_operand.hbm [shape: f32[1,128], index: 2, kind: input, shape index: {}]
  %s3 = inlined_call_operand.vmem [shape: bf16[32,128], index: 3, kind: input, shape index: {}]
  %s4 = inlined_call_operand.hbm [shape: f32[1,128], index: 4, kind: input, shape index: {}]
  %s5 = inlined_call_operand.hbm [shape: f32[1,128], index: 5, kind: input, shape index: {}]
  %s6 = inlined_call_operand.vmem [shape: bf16[32,128], index: 6, kind: output, shape index: {}]
  %s7 = sld [smem:[#allocation0]]
  $region50: #{nst_forward.100} parent=0
    _
  %s9 = ssub.s32 1, %s7
  %s10 = scalar_select 0, %s9, %s7
  $region1: #{nst_forward.100} parent=0
    #allocation2 [shape = 'u8[32768]{0}', space=vmem, size = 0x8000, scoped, tag = 'input window, operand 1, single buffered']
    #allocation3 [shape = 's32[1]{0}', space=sflag, size = 0x4, scoped, tag = 'scoped memory for nst_forward.100']
    #allocation4 [shape = 'u8[512]{0}', space=vmem, size = 0x400, scoped, tag = 'input window, operand 2, single buffered']
    #allocation5 [shape = 's32[1]{0}', space=sflag, size = 0x4, scoped, tag = 'scoped memory for nst_forward.100']
    #allocation6 [shape = 'u8[512]{0}', space=vmem, size = 0x400, scoped, tag = 'input window, operand 4, single buffered']
    #allocation7 [shape = 'u8[512]{0}', space=vmem, size = 0x400, scoped, tag = 'input window, operand 5, single buffered']
    #allocation8 [shape = 's32[1]{0}', space=sflag, size = 0x4, scoped, tag = 'scoped memory for nst_forward.100']
    %11 = vsyncpa [#allocation3], 0
    %12 = vsyncpa [#allocation5], 0
    %13 = vsyncpa [#allocation8], 0
    // Predicated region
    $region2: #{nst_forward.100} parent=1 // pred_check
      _
    $region3: #{nst_forward.100} parent=1 // pred_check_branch
      %15 = sbr.rel (0) target = $region5
    $region4: #{nst_forward.100} parent=1 // pred_region
      _
    $region5: #{nst_forward.100} parent=1 // pred_fallthru
      _
    // Predicated region
    $region6: #{nst_forward.100} parent=1 // pred_check
      _
    $region7: #{nst_forward.100} parent=1 // pred_check_branch
      %17 = sbr.rel (0) target = $region9
    $region8: #{nst_forward.100} parent=1 // pred_region
      %19 = vsyncadd [#allocation3], 0
      %s20 = sshll.u32 %s1, 4
      %s21 = int_to_ptr.hbm [resolvable:$true] %s20
      %s22 = sshll.u32 [#allocation2], 4
      %s23 = int_to_ptr.vmem [resolvable:$true] %s22
      %28 = dma.hbm_to_vmem [thread:$0]  %s21, 1024, %s23, [#allocation3], 64, 64, 4
    $region9: #{nst_forward.100} parent=1 // pred_fallthru
      _
    // Predicated region
    $region10: #{nst_forward.100} parent=1 // pred_check
      _
    $region11: #{nst_forward.100} parent=1 // pred_check_branch
      %30 = sbr.rel (0) target = $region13
    $region12: #{nst_forward.100} parent=1 // pred_region
      %32 = vsyncadd [#allocation5], 0
      %s34 = sshll.u32 %s2, 4
      %s35 = int_to_ptr.hbm [resolvable:$true] %s34
      %s36 = sshll.u32 [#allocation4], 4
      %s37 = int_to_ptr.vmem [resolvable:$true] %s36
      %39 = dma.hbm_to_vmem [thread:$0]  %s35, 16, %s37, [#allocation5]
    $region13: #{nst_forward.100} parent=1 // pred_fallthru
      _
    // Predicated region
    $region14: #{nst_forward.100} parent=1 // pred_check
      _
    $region15: #{nst_forward.100} parent=1 // pred_check_branch
      %41 = sbr.rel (0) target = $region17
    $region16: #{nst_forward.100} parent=1 // pred_region
      _
    $region17: #{nst_forward.100} parent=1 // pred_fallthru
      _
    // Predicated region
    $region18: #{nst_forward.100} parent=1 // pred_check
      _
    $region19: #{nst_forward.100} parent=1 // pred_check_branch
      %43 = sbr.rel (0) target = $region21
    $region20: #{nst_forward.100} parent=1 // pred_region
      %45 = vsyncadd [#allocation5], 0
      %s47 = sshll.u32 %s4, 4
      %s48 = int_to_ptr.hbm [resolvable:$true] %s47
      %s49 = sshll.u32 [#allocation6], 4
      %s50 = int_to_ptr.vmem [resolvable:$true] %s49
      %52 = dma.hbm_to_vmem [thread:$0]  %s48, 16, %s50, [#allocation5]
    $region21: #{nst_forward.100} parent=1 // pred_fallthru
      _
    // Predicated region
    $region22: #{nst_forward.100} parent=1 // pred_check
      _
    $region23: #{nst_forward.100} parent=1 // pred_check_branch
      %54 = sbr.rel (0) target = $region25
    $region24: #{nst_forward.100} parent=1 // pred_region
      %56 = vsyncadd [#allocation8], 0
      %s58 = sshll.u32 %s5, 4
      %s59 = int_to_ptr.hbm [resolvable:$true] %s58
      %s60 = sshll.u32 [#allocation7], 4
      %s61 = int_to_ptr.vmem [resolvable:$true] %s60
      %63 = dma.hbm_to_vmem [thread:$0]  %s59, 16, %s61, [#allocation8]
    $region25: #{nst_forward.100} parent=1 // pred_fallthru
      _
    // Predicated region
    $region26: #{nst_forward.100} parent=1 // pred_check
      _
    $region27: #{nst_forward.100} parent=1 // pred_check_branch
      %65 = sbr.rel (0) target = $region29
    $region28: #{nst_forward.100} parent=1 // pred_region
      %67 = dma.done [#allocation3], 1024
    $region29: #{nst_forward.100} parent=1 // pred_fallthru
      _
    // Predicated region
    $region30: #{nst_forward.100} parent=1 // pred_check
      _
    $region31: #{nst_forward.100} parent=1 // pred_check_branch
      %69 = sbr.rel (0) target = $region33
    $region32: #{nst_forward.100} parent=1 // pred_region
      %71 = dma.done [#allocation5], 16
    $region33: #{nst_forward.100} parent=1 // pred_fallthru
      _
    // Predicated region
    $region34: #{nst_forward.100} parent=1 // pred_check
      _
    $region35: #{nst_forward.100} parent=1 // pred_check_branch
      %73 = sbr.rel (0) target = $region37
    $region36: #{nst_forward.100} parent=1 // pred_region
      %75 = dma.done [#allocation5], 16
    $region37: #{nst_forward.100} parent=1 // pred_fallthru
      _
    // Predicated region
    $region38: #{nst_forward.100} parent=1 // pred_check
      _
    $region39: #{nst_forward.100} parent=1 // pred_check_branch
      %77 = sbr.rel (0) target = $region41
    $region40: #{nst_forward.100} parent=1 // pred_region
      %79 = dma.done [#allocation8], 16
    $region41: #{nst_forward.100} parent=1 // pred_fallthru
      _
    %v80 = vld [vmem:[%s0] sm:$0xf]
    %v81 = vld [vmem:[%s0 + $0x4] sm:$0xf]
    %v82 = vld [vmem:[%s0 + $0x8] sm:$0xf]
    %v83 = vld [vmem:[%s0 + $0xc] sm:$0xf]
    %v84 = vld [vmem:[#allocation2] sm:$0xf]
    %v85 = vld [vmem:[#allocation2 + $0x4] sm:$0xf]
    %v86 = vld [vmem:[#allocation2 + $0x8] sm:$0xf]
    %v87 = vld [vmem:[#allocation2 + $0xc] sm:$0xf]
    %v88 = vld [vmem:[#allocation2 + $0x10] sm:$0xf]
    %v89 = vld [vmem:[#allocation2 + $0x14] sm:$0xf]
    %v90 = vld [vmem:[#allocation2 + $0x18] sm:$0xf]
    %v91 = vld [vmem:[#allocation2 + $0x1c] sm:$0xf]
    %v92 = vld [vmem:[#allocation2 + $0x20] sm:$0xf]
    %v93 = vld [vmem:[#allocation2 + $0x24] sm:$0xf]
    %v94 = vld [vmem:[#allocation2 + $0x28] sm:$0xf]
    %v95 = vld [vmem:[#allocation2 + $0x2c] sm:$0xf]
    %v96 = vld [vmem:[#allocation2 + $0x30] sm:$0xf]
    %v97 = vld [vmem:[#allocation2 + $0x34] sm:$0xf]
    %v98 = vld [vmem:[#allocation2 + $0x38] sm:$0xf]
    %v99 = vld [vmem:[#allocation2 + $0x3c] sm:$0xf]
    %v100 = vld [vmem:[#allocation4] sm:$0x1]
    %v102 = vperm.slane %v100, 0
    %v108 = vunpack.c.l.b16 %v80
    %v109 = vunpack.c.l.b16 %v81
    %v110 = vunpack.c.l.b16 %v82
    %v111 = vunpack.c.l.b16 %v83
    %v112 = vpack.c.b16 %v109, %v108
    %v113 = vpack.c.b16 %v111, %v110
    %v132 = vunpack.c.l.b16 %v84
    %v133 = vunpack.c.l.b16 %v85
    %v134 = vunpack.c.l.b16 %v86
    %v135 = vunpack.c.l.b16 %v87
    %v136 = vunpack.c.l.b16 %v88
    %v137 = vunpack.c.l.b16 %v89
    %v138 = vunpack.c.l.b16 %v90
    %v139 = vunpack.c.l.b16 %v91
    %v140 = vunpack.c.l.b16 %v92
    %v141 = vunpack.c.l.b16 %v93
    %v142 = vunpack.c.l.b16 %v94
    %v143 = vunpack.c.l.b16 %v95
    %v144 = vunpack.c.l.b16 %v96
    %v145 = vunpack.c.l.b16 %v97
    %v146 = vunpack.c.l.b16 %v98
    %v147 = vunpack.c.l.b16 %v99
    %v148 = vpack.c.b16 %v133, %v132
    %v149 = vpack.c.b16 %v135, %v134
    %v150 = vpack.c.b16 %v137, %v136
    %v151 = vpack.c.b16 %v139, %v138
    %v152 = vpack.c.b16 %v141, %v140
    %v153 = vpack.c.b16 %v143, %v142
    %v154 = vpack.c.b16 %v145, %v144
    %v155 = vpack.c.b16 %v147, %v146
    %164 = vmatpush.bf16.msra.mxu0 %v155
    %165 = vmatpush.bf16.msra.mxu0 %v154
    %166 = vmatpush.bf16.msra.mxu0 %v153
    %167 = vmatpush.bf16.msra.mxu0 %v152
    %168 = vmatpush.bf16.msra.mxu0 %v151
    %169 = vmatpush.bf16.msra.mxu0 %v150
    %170 = vmatpush.bf16.msra.mxu0 %v149
    %171 = vmatpush.bf16.msra.mxu0 %v148
    %172 = vmatmul.bf16.gmra.mxu0 %v112
    %v173 = vpop.f32.mrf.mxu0
    %v174 = vadd.f32 %v102, %v173
    %v175 = vpop.f32.mrf.mxu0
    %v176 = vadd.f32 %v102, %v175
    %177 = vmatmul.bf16.gmra.mxu0 %v113
    %v178 = vpop.f32.mrf.mxu0
    %v179 = vadd.f32 %v102, %v178
    %v180 = vpop.f32.mrf.mxu0
    %v181 = vadd.f32 %v102, %v180
    %182 = vdwg.mxu0
    %v183 = vld [vmem:[%s3] sm:$0xf]
    %v184 = vld [vmem:[%s3 + $0x4] sm:$0xf]
    %v185 = vld [vmem:[%s3 + $0x8] sm:$0xf]
    %v186 = vld [vmem:[%s3 + $0xc] sm:$0xf]
    %v187 = vunpack.c.l.bf16 %v183
    %v188 = vunpack.c.l.bf16 %v184
    %v189 = vunpack.c.l.bf16 %v185
    %v190 = vunpack.c.l.bf16 %v186
    %v191 = vadd.f32 %v174, %v187
    %v192 = vadd.f32 %v176, %v188
    %v193 = vadd.f32 %v179, %v189
    %v194 = vadd.f32 %v181, %v190
    %195 = vadd.xlane.f32.xlu0 %v191
    %v196 = vpop.xlane.xlu0 %195
    %197 = vadd.xlane.f32.xlu0 %v192
    %v198 = vpop.xlane.xlu0 %197
    %199 = vadd.xlane.f32.xlu0 %v193
    %v200 = vpop.xlane.xlu0 %199
    %201 = vadd.xlane.f32.xlu0 %v194
    %v202 = vpop.xlane.xlu0 %201
    %v203 = vrcp.pop 128.0
    %v204 = vmul.f32 128.0, %v203
    %v205 = vsub.f32 1.0, %v204
    %v206 = vmul.f32 %v203, %v205
    %v207 = vadd.f32 %v203, %v206
    %vm208 = vweird.f32 %v203
    %v209 = vsel %vm208, %v203, %v207
    %v210 = vmul.f32 %v196, %v209
    %v211 = vmul.f32 %v198, %v209
    %v212 = vmul.f32 %v200, %v209
    %v213 = vmul.f32 %v202, %v209
    %v214 = vsub.f32 %v191, %v210
    %v215 = vsub.f32 %v192, %v211
    %v216 = vsub.f32 %v193, %v212
    %v217 = vsub.f32 %v194, %v213
    %v218 = vmul.f32 %v214, %v214
    %v219 = vmul.f32 %v215, %v215
    %v220 = vmul.f32 %v216, %v216
    %v221 = vmul.f32 %v217, %v217
    %222 = vadd.xlane.f32.xlu0 %v218
    %v223 = vpop.xlane.xlu0 %222
    %224 = vadd.xlane.f32.xlu0 %v219
    %v225 = vpop.xlane.xlu0 %224
    %226 = vadd.xlane.f32.xlu0 %v220
    %v227 = vpop.xlane.xlu0 %226
    %228 = vadd.xlane.f32.xlu0 %v221
    %v229 = vpop.xlane.xlu0 %228
    %v230 = vmul.f32 %v223, %v209
    %v231 = vmul.f32 %v225, %v209
    %v232 = vmul.f32 %v227, %v209
    %v233 = vmul.f32 %v229, %v209
    %v234 = vadd.f32 %v230, 1e-05
    %v235 = vadd.f32 %v231, 1e-05
    %v236 = vadd.f32 %v232, 1e-05
    %v237 = vadd.f32 %v233, 1e-05
    %v238 = vrsqrt.pop %v234
    %v239 = vmul.f32 %v238, %v234
    %v240 = vmul.f32 %v239, %v238
    %v241 = vmul.f32 0.5, %v240
    %v242 = vsub.f32 1.5, %v241
    %v243 = vmul.f32 %v238, %v242
    %vm244 = vweird.f32 %v234
    %vm245 = vweird.f32 %v238
    %vm246 = vmor %vm244, %vm245
    %v247 = vsel %vm246, %v238, %v243
    %v248 = vrsqrt.pop %v235
    %v249 = vmul.f32 %v248, %v235
    %v250 = vmul.f32 %v249, %v248
    %v251 = vmul.f32 0.5, %v250
    %v252 = vsub.f32 1.5, %v251
    %v253 = vmul.f32 %v248, %v252
    %vm254 = vweird.f32 %v235
    %vm255 = vweird.f32 %v248
    %vm256 = vmor %vm254, %vm255
    %v257 = vsel %vm256, %v248, %v253
    %v258 = vrsqrt.pop %v236
    %v259 = vmul.f32 %v258, %v236
    %v260 = vmul.f32 %v259, %v258
    %v261 = vmul.f32 0.5, %v260
    %v262 = vsub.f32 1.5, %v261
    %v263 = vmul.f32 %v258, %v262
    %vm264 = vweird.f32 %v236
    %vm265 = vweird.f32 %v258
    %vm266 = vmor %vm264, %vm265
    %v267 = vsel %vm266, %v258, %v263
    %v268 = vrsqrt.pop %v237
    %v269 = vmul.f32 %v268, %v237
    %v270 = vmul.f32 %v269, %v268
    %v271 = vmul.f32 0.5, %v270
    %v272 = vsub.f32 1.5, %v271
    %v273 = vmul.f32 %v268, %v272
    %vm274 = vweird.f32 %v237
    %vm275 = vweird.f32 %v268
    %vm276 = vmor %vm274, %vm275
    %v277 = vsel %vm276, %v268, %v273
    %v278 = vmul.f32 %v214, %v247
    %v279 = vmul.f32 %v215, %v257
    %v280 = vmul.f32 %v216, %v267
    %v281 = vmul.f32 %v217, %v277
    %v282 = vld [vmem:[#allocation6] sm:$0x1]
    %v284 = vperm.slane %v282, 0
    %v286 = vmul.f32 %v278, %v284
    %v287 = vmul.f32 %v279, %v284
    %v288 = vmul.f32 %v280, %v284
    %v289 = vmul.f32 %v281, %v284
    %v290 = vld [vmem:[#allocation7] sm:$0x1]
    %v292 = vperm.slane %v290, 0
    %v294 = vadd.f32 %v286, %v292
    %v295 = vadd.f32 %v287, %v292
    %v296 = vadd.f32 %v288, %v292
    %v297 = vadd.f32 %v289, %v292
    %v298 = vpack.c.bf16 %v294, %v294
    %v299 = vpack.c.bf16 %v295, %v295
    %v300 = vpack.c.bf16 %v296, %v296
    %v301 = vpack.c.bf16 %v297, %v297
    %302 = vst [vmem:[%s6] sm:$0xf] %v298
    %303 = vst [vmem:[%s6 + $0x4] sm:$0xf] %v299
    %304 = vst [vmem:[%s6 + $0x8] sm:$0xf] %v300
    %305 = vst [vmem:[%s6 + $0xc] sm:$0xf] %v301
    // Predicated region
    $region42: #{nst_forward.100} parent=1 // pred_check
      _
    $region43: #{nst_forward.100} parent=1 // pred_check_branch
      %307 = sbr.rel (0) target = $region45
    $region44: #{nst_forward.100} parent=1 // pred_region
      _
    $region45: #{nst_forward.100} parent=1 // pred_fallthru
      _
    // Predicated region
    $region46: #{nst_forward.100} parent=1 // pred_check
      _
    $region47: #{nst_forward.100} parent=1 // pred_check_branch
      %309 = sbr.rel (0) target = $region49
    $region48: #{nst_forward.100} parent=1 // pred_region
      _
    $region49: #{nst_forward.100} parent=1 // pred_fallthru
      _
    %310 = vsyncpa [#allocation3], 1
    %311 = vsyncpa [#allocation5], 1
    %312 = vsyncpa [#allocation8], 1

// kernel: nst_forward.105
$region0: #{nst_forward.105}
  #allocation0 [shape = 'u32[]', space=smem, size = 0x4, offset = 0x4, fixed_abs, tag = 'smem constant byte address 0x4 - core index']
  #allocation1 [shape = 'u32[72,128]{1,0:T(1,128)}', space=vmem, size = 0x9000, scoped, tag = 'internal scratch']
  %s0 = inlined_call_operand.vmem [shape: bf16[32,128], index: 0, kind: input, shape index: {}]
  %s1 = inlined_call_operand.hbm [shape: bf16[128,128], index: 1, kind: input, shape index: {}]
  %s2 = inlined_call_operand.vmem [shape: f32[1,128], index: 2, kind: input, shape index: {}]
  %s3 = inlined_call_operand.vmem [shape: bf16[32,128], index: 3, kind: input, shape index: {}]
  %s4 = inlined_call_operand.vmem [shape: f32[1,128], index: 4, kind: input, shape index: {}]
  %s5 = inlined_call_operand.vmem [shape: f32[1,128], index: 5, kind: input, shape index: {}]
  %s6 = inlined_call_operand.vmem [shape: bf16[32,128], index: 6, kind: output, shape index: {}]
  %s7 = sld [smem:[#allocation0]]
  $region38: #{nst_forward.105} parent=0
    _
  %s9 = ssub.s32 1, %s7
  %s10 = scalar_select 0, %s9, %s7
  $region1: #{nst_forward.105} parent=0
    #allocation2 [shape = 'u8[32768]{0}', space=vmem, size = 0x8000, scoped, tag = 'input window, operand 1, single buffered']
    #allocation3 [shape = 's32[1]{0}', space=sflag, size = 0x4, scoped, tag = 'scoped memory for nst_forward.105']
    %11 = vsyncpa [#allocation3], 0
    // Predicated region
    $region2: #{nst_forward.105} parent=1 // pred_check
      _
    $region3: #{nst_forward.105} parent=1 // pred_check_branch
      %13 = sbr.rel (0) target = $region5
    $region4: #{nst_forward.105} parent=1 // pred_region
      _
    $region5: #{nst_forward.105} parent=1 // pred_fallthru
      _
    // Predicated region
    $region6: #{nst_forward.105} parent=1 // pred_check
      _
    $region7: #{nst_forward.105} parent=1 // pred_check_branch
      %15 = sbr.rel (0) target = $region9
    $region8: #{nst_forward.105} parent=1 // pred_region
      %17 = vsyncadd [#allocation3], 0
      %s18 = sshll.u32 %s1, 4
      %s19 = int_to_ptr.hbm [resolvable:$true] %s18
      %s20 = sshll.u32 [#allocation2], 4
      %s21 = int_to_ptr.vmem [resolvable:$true] %s20
      %26 = dma.hbm_to_vmem [thread:$0]  %s19, 1024, %s21, [#allocation3], 64, 64, 4
    $region9: #{nst_forward.105} parent=1 // pred_fallthru
      _
    // Predicated region
    $region10: #{nst_forward.105} parent=1 // pred_check
      _
    $region11: #{nst_forward.105} parent=1 // pred_check_branch
      %28 = sbr.rel (0) target = $region13
    $region12: #{nst_forward.105} parent=1 // pred_region
      _
    $region13: #{nst_forward.105} parent=1 // pred_fallthru
      _
    // Predicated region
    $region14: #{nst_forward.105} parent=1 // pred_check
      _
    $region15: #{nst_forward.105} parent=1 // pred_check_branch
      %30 = sbr.rel (0) target = $region17
    $region16: #{nst_forward.105} parent=1 // pred_region
      _
    $region17: #{nst_forward.105} parent=1 // pred_fallthru
      _
    // Predicated region
    $region18: #{nst_forward.105} parent=1 // pred_check
      _
    $region19: #{nst_forward.105} parent=1 // pred_check_branch
      %32 = sbr.rel (0) target = $region21
    $region20: #{nst_forward.105} parent=1 // pred_region
      _
    $region21: #{nst_forward.105} parent=1 // pred_fallthru
      _
    // Predicated region
    $region22: #{nst_forward.105} parent=1 // pred_check
      _
    $region23: #{nst_forward.105} parent=1 // pred_check_branch
      %34 = sbr.rel (0) target = $region25
    $region24: #{nst_forward.105} parent=1 // pred_region
      _
    $region25: #{nst_forward.105} parent=1 // pred_fallthru
      _
    // Predicated region
    $region26: #{nst_forward.105} parent=1 // pred_check
      _
    $region27: #{nst_forward.105} parent=1 // pred_check_branch
      %36 = sbr.rel (0) target = $region29
    $region28: #{nst_forward.105} parent=1 // pred_region
      %38 = dma.done [#allocation3], 1024
    $region29: #{nst_forward.105} parent=1 // pred_fallthru
      _
    %v39 = vld [vmem:[%s0] sm:$0xf]
    %v40 = vld [vmem:[%s0 + $0x4] sm:$0xf]
    %v41 = vld [vmem:[%s0 + $0x8] sm:$0xf]
    %v42 = vld [vmem:[%s0 + $0xc] sm:$0xf]
    %v43 = vld [vmem:[#allocation2] sm:$0xf]
    %v44 = vld [vmem:[#allocation2 + $0x4] sm:$0xf]
    %v45 = vld [vmem:[#allocation2 + $0x8] sm:$0xf]
    %v46 = vld [vmem:[#allocation2 + $0xc] sm:$0xf]
    %v47 = vld [vmem:[#allocation2 + $0x10] sm:$0xf]
    %v48 = vld [vmem:[#allocation2 + $0x14] sm:$0xf]
    %v49 = vld [vmem:[#allocation2 + $0x18] sm:$0xf]
    %v50 = vld [vmem:[#allocation2 + $0x1c] sm:$0xf]
    %v51 = vld [vmem:[#allocation2 + $0x20] sm:$0xf]
    %v52 = vld [vmem:[#allocation2 + $0x24] sm:$0xf]
    %v53 = vld [vmem:[#allocation2 + $0x28] sm:$0xf]
    %v54 = vld [vmem:[#allocation2 + $0x2c] sm:$0xf]
    %v55 = vld [vmem:[#allocation2 + $0x30] sm:$0xf]
    %v56 = vld [vmem:[#allocation2 + $0x34] sm:$0xf]
    %v57 = vld [vmem:[#allocation2 + $0x38] sm:$0xf]
    %v58 = vld [vmem:[#allocation2 + $0x3c] sm:$0xf]
    %v59 = vld [vmem:[%s2] sm:$0x1]
    %v61 = vperm.slane %v59, 0
    %v67 = vunpack.c.l.b16 %v39
    %v68 = vunpack.c.l.b16 %v40
    %v69 = vunpack.c.l.b16 %v41
    %v70 = vunpack.c.l.b16 %v42
    %v71 = vpack.c.b16 %v68, %v67
    %v72 = vpack.c.b16 %v70, %v69
    %v91 = vunpack.c.l.b16 %v43
    %v92 = vunpack.c.l.b16 %v44
    %v93 = vunpack.c.l.b16 %v45
    %v94 = vunpack.c.l.b16 %v46
    %v95 = vunpack.c.l.b16 %v47
    %v96 = vunpack.c.l.b16 %v48
    %v97 = vunpack.c.l.b16 %v49
    %v98 = vunpack.c.l.b16 %v50
    %v99 = vunpack.c.l.b16 %v51
    %v100 = vunpack.c.l.b16 %v52
    %v101 = vunpack.c.l.b16 %v53
    %v102 = vunpack.c.l.b16 %v54
    %v103 = vunpack.c.l.b16 %v55
    %v104 = vunpack.c.l.b16 %v56
    %v105 = vunpack.c.l.b16 %v57
    %v106 = vunpack.c.l.b16 %v58
    %v107 = vpack.c.b16 %v92, %v91
    %v108 = vpack.c.b16 %v94, %v93
    %v109 = vpack.c.b16 %v96, %v95
    %v110 = vpack.c.b16 %v98, %v97
    %v111 = vpack.c.b16 %v100, %v99
    %v112 = vpack.c.b16 %v102, %v101
    %v113 = vpack.c.b16 %v104, %v103
    %v114 = vpack.c.b16 %v106, %v105
    %123 = vmatpush.bf16.msra.mxu0 %v114
    %124 = vmatpush.bf16.msra.mxu0 %v113
    %125 = vmatpush.bf16.msra.mxu0 %v112
    %126 = vmatpush.bf16.msra.mxu0 %v111
    %127 = vmatpush.bf16.msra.mxu0 %v110
    %128 = vmatpush.bf16.msra.mxu0 %v109
    %129 = vmatpush.bf16.msra.mxu0 %v108
    %130 = vmatpush.bf16.msra.mxu0 %v107
    %131 = vmatmul.bf16.gmra.mxu0 %v71
    %v132 = vpop.f32.mrf.mxu0
    %v133 = vadd.f32 %v61, %v132
    %v134 = vpop.f32.mrf.mxu0
    %v135 = vadd.f32 %v61, %v134
    %136 = vmatmul.bf16.gmra.mxu0 %v72
    %v137 = vpop.f32.mrf.mxu0
    %v138 = vadd.f32 %v61, %v137
    %v139 = vpop.f32.mrf.mxu0
    %v140 = vadd.f32 %v61, %v139
    %141 = vdwg.mxu0
    %v142 = vld [vmem:[%s3] sm:$0xf]
    %v143 = vld [vmem:[%s3 + $0x4] sm:$0xf]
    %v144 = vld [vmem:[%s3 + $0x8] sm:$0xf]
    %v145 = vld [vmem:[%s3 + $0xc] sm:$0xf]
    %v146 = vunpack.c.l.bf16 %v142
    %v147 = vunpack.c.l.bf16 %v143
    %v148 = vunpack.c.l.bf16 %v144
    %v149 = vunpack.c.l.bf16 %v145
    %v150 = vadd.f32 %v133, %v146
    %v151 = vadd.f32 %v135, %v147
    %v152 = vadd.f32 %v138, %v148
    %v153 = vadd.f32 %v140, %v149
    %154 = vadd.xlane.f32.xlu0 %v150
    %v155 = vpop.xlane.xlu0 %154
    %156 = vadd.xlane.f32.xlu0 %v151
    %v157 = vpop.xlane.xlu0 %156
    %158 = vadd.xlane.f32.xlu0 %v152
    %v159 = vpop.xlane.xlu0 %158
    %160 = vadd.xlane.f32.xlu0 %v153
    %v161 = vpop.xlane.xlu0 %160
    %v162 = vrcp.pop 128.0
    %v163 = vmul.f32 128.0, %v162
    %v164 = vsub.f32 1.0, %v163
    %v165 = vmul.f32 %v162, %v164
    %v166 = vadd.f32 %v162, %v165
    %vm167 = vweird.f32 %v162
    %v168 = vsel %vm167, %v162, %v166
    %v169 = vmul.f32 %v155, %v168
    %v170 = vmul.f32 %v157, %v168
    %v171 = vmul.f32 %v159, %v168
    %v172 = vmul.f32 %v161, %v168
    %v173 = vsub.f32 %v150, %v169
    %v174 = vsub.f32 %v151, %v170
    %v175 = vsub.f32 %v152, %v171
    %v176 = vsub.f32 %v153, %v172
    %v177 = vmul.f32 %v173, %v173
    %v178 = vmul.f32 %v174, %v174
    %v179 = vmul.f32 %v175, %v175
    %v180 = vmul.f32 %v176, %v176
    %181 = vadd.xlane.f32.xlu0 %v177
    %v182 = vpop.xlane.xlu0 %181
    %183 = vadd.xlane.f32.xlu0 %v178
    %v184 = vpop.xlane.xlu0 %183
    %185 = vadd.xlane.f32.xlu0 %v179
    %v186 = vpop.xlane.xlu0 %185
    %187 = vadd.xlane.f32.xlu0 %v180
    %v188 = vpop.xlane.xlu0 %187
    %v189 = vmul.f32 %v182, %v168
    %v190 = vmul.f32 %v184, %v168
    %v191 = vmul.f32 %v186, %v168
    %v192 = vmul.f32 %v188, %v168
    %v193 = vadd.f32 %v189, 1e-05
    %v194 = vadd.f32 %v190, 1e-05
    %v195 = vadd.f32 %v191, 1e-05
    %v196 = vadd.f32 %v192, 1e-05
    %v197 = vrsqrt.pop %v193
    %v198 = vmul.f32 %v197, %v193
    %v199 = vmul.f32 %v198, %v197
    %v200 = vmul.f32 0.5, %v199
    %v201 = vsub.f32 1.5, %v200
    %v202 = vmul.f32 %v197, %v201
    %vm203 = vweird.f32 %v193
    %vm204 = vweird.f32 %v197
    %vm205 = vmor %vm203, %vm204
    %v206 = vsel %vm205, %v197, %v202
    %v207 = vrsqrt.pop %v194
    %v208 = vmul.f32 %v207, %v194
    %v209 = vmul.f32 %v208, %v207
    %v210 = vmul.f32 0.5, %v209
    %v211 = vsub.f32 1.5, %v210
    %v212 = vmul.f32 %v207, %v211
    %vm213 = vweird.f32 %v194
    %vm214 = vweird.f32 %v207
    %vm215 = vmor %vm213, %vm214
    %v216 = vsel %vm215, %v207, %v212
    %v217 = vrsqrt.pop %v195
    %v218 = vmul.f32 %v217, %v195
    %v219 = vmul.f32 %v218, %v217
    %v220 = vmul.f32 0.5, %v219
    %v221 = vsub.f32 1.5, %v220
    %v222 = vmul.f32 %v217, %v221
    %vm223 = vweird.f32 %v195
    %vm224 = vweird.f32 %v217
    %vm225 = vmor %vm223, %vm224
    %v226 = vsel %vm225, %v217, %v222
    %v227 = vrsqrt.pop %v196
    %v228 = vmul.f32 %v227, %v196
    %v229 = vmul.f32 %v228, %v227
    %v230 = vmul.f32 0.5, %v229
    %v231 = vsub.f32 1.5, %v230
    %v232 = vmul.f32 %v227, %v231
    %vm233 = vweird.f32 %v196
    %vm234 = vweird.f32 %v227
    %vm235 = vmor %vm233, %vm234
    %v236 = vsel %vm235, %v227, %v232
    %v237 = vmul.f32 %v173, %v206
    %v238 = vmul.f32 %v174, %v216
    %v239 = vmul.f32 %v175, %v226
    %v240 = vmul.f32 %v176, %v236
    %v241 = vld [vmem:[%s4] sm:$0x1]
    %v243 = vperm.slane %v241, 0
    %v245 = vmul.f32 %v237, %v243
    %v246 = vmul.f32 %v238, %v243
    %v247 = vmul.f32 %v239, %v243
    %v248 = vmul.f32 %v240, %v243
    %v249 = vld [vmem:[%s5] sm:$0x1]
    %v251 = vperm.slane %v249, 0
    %v253 = vadd.f32 %v245, %v251
    %v254 = vadd.f32 %v246, %v251
    %v255 = vadd.f32 %v247, %v251
    %v256 = vadd.f32 %v248, %v251
    %v257 = vpack.c.bf16 %v253, %v253
    %v258 = vpack.c.bf16 %v254, %v254
    %v259 = vpack.c.bf16 %v255, %v255
    %v260 = vpack.c.bf16 %v256, %v256
    %261 = vst [vmem:[%s6] sm:$0xf] %v257
    %262 = vst [vmem:[%s6 + $0x4] sm:$0xf] %v258
    %263 = vst [vmem:[%s6 + $0x8] sm:$0xf] %v259
    %264 = vst [vmem:[%s6 + $0xc] sm:$0xf] %v260
    // Predicated region
    $region30: #{nst_forward.105} parent=1 // pred_check
      _
    $region31: #{nst_forward.105} parent=1 // pred_check_branch
      %266 = sbr.rel (0) target = $region33
    $region32: #{nst_forward.105} parent=1 // pred_region
      _
    $region33: #{nst_forward.105} parent=1 // pred_fallthru
      _
    // Predicated region
    $region34: #{nst_forward.105} parent=1 // pred_check
      _
    $region35: #{nst_forward.105} parent=1 // pred_check_branch
      %268 = sbr.rel (0) target = $region37
    $region36: #{nst_forward.105} parent=1 // pred_region
      _
    $region37: #{nst_forward.105} parent=1 // pred_fallthru
      _
    %269 = vsyncpa [#allocation3], 1

// kernel: nst_forward.107
$region0: #{nst_forward.107}
  #allocation0 [shape = 'u32[]', space=smem, size = 0x4, offset = 0x4, fixed_abs, tag = 'smem constant byte address 0x4 - core index']
  #allocation1 [shape = 'u32[72,128]{1,0:T(1,128)}', space=vmem, size = 0x9000, scoped, tag = 'internal scratch']
  %s0 = inlined_call_operand.vmem [shape: bf16[32,256], index: 0, kind: input, shape index: {}]
  %s1 = inlined_call_operand.vmem [shape: bf16[256,128], index: 1, kind: input, shape index: {}]
  %s2 = inlined_call_operand.vmem [shape: f32[1,128], index: 2, kind: input, shape index: {}]
  %s3 = inlined_call_operand.vmem [shape: bf16[32,128], index: 3, kind: input, shape index: {}]
  %s4 = inlined_call_operand.vmem [shape: f32[1,128], index: 4, kind: input, shape index: {}]
  %s5 = inlined_call_operand.vmem [shape: f32[1,128], index: 5, kind: input, shape index: {}]
  %s6 = inlined_call_operand.hbm [shape: bf16[32,128], index: 6, kind: output, shape index: {}]
  %s7 = sld [smem:[#allocation0]]
  $region34: #{nst_forward.107} parent=0
    _
  %s9 = ssub.s32 1, %s7
  %s10 = scalar_select 0, %s9, %s7
  $region1: #{nst_forward.107} parent=0
    #allocation2 [shape = 'u8[8192]{0}', space=vmem, size = 0x2000, scoped, tag = 'output window, operand 0, single buffered']
    #allocation3 [shape = 's32[1]{0}', space=sflag, size = 0x4, scoped, tag = 'scoped memory for nst_forward.107']
    %11 = vsyncpa [#allocation3], 0
    // Predicated region
    $region2: #{nst_forward.107} parent=1 // pred_check
      _
    $region3: #{nst_forward.107} parent=1 // pred_check_branch
      %13 = sbr.rel (0) target = $region5
    $region4: #{nst_forward.107} parent=1 // pred_region
      _
    $region5: #{nst_forward.107} parent=1 // pred_fallthru
      _
    // Predicated region
    $region6: #{nst_forward.107} parent=1 // pred_check
      _
    $region7: #{nst_forward.107} parent=1 // pred_check_branch
      %15 = sbr.rel (0) target = $region9
    $region8: #{nst_forward.107} parent=1 // pred_region
      _
    $region9: #{nst_forward.107} parent=1 // pred_fallthru
      _
    // Predicated region
    $region10: #{nst_forward.107} parent=1 // pred_check
      _
    $region11: #{nst_forward.107} parent=1 // pred_check_branch
      %17 = sbr.rel (0) target = $region13
    $region12: #{nst_forward.107} parent=1 // pred_region
      _
    $region13: #{nst_forward.107} parent=1 // pred_fallthru
      _
    // Predicated region
    $region14: #{nst_forward.107} parent=1 // pred_check
      _
    $region15: #{nst_forward.107} parent=1 // pred_check_branch
      %19 = sbr.rel (0) target = $region17
    $region16: #{nst_forward.107} parent=1 // pred_region
      _
    $region17: #{nst_forward.107} parent=1 // pred_fallthru
      _
    // Predicated region
    $region18: #{nst_forward.107} parent=1 // pred_check
      _
    $region19: #{nst_forward.107} parent=1 // pred_check_branch
      %21 = sbr.rel (0) target = $region21
    $region20: #{nst_forward.107} parent=1 // pred_region
      _
    $region21: #{nst_forward.107} parent=1 // pred_fallthru
      _
    // Predicated region
    $region22: #{nst_forward.107} parent=1 // pred_check
      _
    $region23: #{nst_forward.107} parent=1 // pred_check_branch
      %23 = sbr.rel (0) target = $region25
    $region24: #{nst_forward.107} parent=1 // pred_region
      _
    $region25: #{nst_forward.107} parent=1 // pred_fallthru
      _
    %v24 = vld [vmem:[%s0] sm:$0xff]
    %v25 = vld [vmem:[%s0 + $0x8] sm:$0xff]
    %v26 = vld [vmem:[%s0 + $0x10] sm:$0xff]
    %v27 = vld [vmem:[%s0 + $0x18] sm:$0xff]
    %v28 = vld [vmem:[%s1] sm:$0xf]
    %v29 = vld [vmem:[%s1 + $0x4] sm:$0xf]
    %v30 = vld [vmem:[%s1 + $0x8] sm:$0xf]
    %v31 = vld [vmem:[%s1 + $0xc] sm:$0xf]
    %v32 = vld [vmem:[%s1 + $0x10] sm:$0xf]
    %v33 = vld [vmem:[%s1 + $0x14] sm:$0xf]
    %v34 = vld [vmem:[%s1 + $0x18] sm:$0xf]
    %v35 = vld [vmem:[%s1 + $0x1c] sm:$0xf]
    %v36 = vld [vmem:[%s1 + $0x20] sm:$0xf]
    %v37 = vld [vmem:[%s1 + $0x24] sm:$0xf]
    %v38 = vld [vmem:[%s1 + $0x28] sm:$0xf]
    %v39 = vld [vmem:[%s1 + $0x2c] sm:$0xf]
    %v40 = vld [vmem:[%s1 + $0x30] sm:$0xf]
    %v41 = vld [vmem:[%s1 + $0x34] sm:$0xf]
    %v42 = vld [vmem:[%s1 + $0x38] sm:$0xf]
    %v43 = vld [vmem:[%s1 + $0x3c] sm:$0xf]
    %v44 = vld [vmem:[%s1 + $0x40] sm:$0xf]
    %v45 = vld [vmem:[%s1 + $0x44] sm:$0xf]
    %v46 = vld [vmem:[%s1 + $0x48] sm:$0xf]
    %v47 = vld [vmem:[%s1 + $0x4c] sm:$0xf]
    %v48 = vld [vmem:[%s1 + $0x50] sm:$0xf]
    %v49 = vld [vmem:[%s1 + $0x54] sm:$0xf]
    %v50 = vld [vmem:[%s1 + $0x58] sm:$0xf]
    %v51 = vld [vmem:[%s1 + $0x5c] sm:$0xf]
    %v52 = vld [vmem:[%s1 + $0x60] sm:$0xf]
    %v53 = vld [vmem:[%s1 + $0x64] sm:$0xf]
    %v54 = vld [vmem:[%s1 + $0x68] sm:$0xf]
    %v55 = vld [vmem:[%s1 + $0x6c] sm:$0xf]
    %v56 = vld [vmem:[%s1 + $0x70] sm:$0xf]
    %v57 = vld [vmem:[%s1 + $0x74] sm:$0xf]
    %v58 = vld [vmem:[%s1 + $0x78] sm:$0xf]
    %v59 = vld [vmem:[%s1 + $0x7c] sm:$0xf]
    %v60 = vld [vmem:[%s2] sm:$0x1]
    %v62 = vperm.slane %v60, 0
    %v68 = vunpack.c.l.b16 %v24
    %v69 = vunpack.c.h.b16 %v24
    %v70 = vunpack.c.l.b16 %v25
    %v71 = vunpack.c.h.b16 %v25
    %v72 = vunpack.c.l.b16 %v26
    %v73 = vunpack.c.h.b16 %v26
    %v74 = vunpack.c.l.b16 %v27
    %v75 = vunpack.c.h.b16 %v27
    %v76 = vpack.c.b16 %v70, %v68
    %v77 = vpack.c.b16 %v71, %v69
    %v78 = vpack.c.b16 %v74, %v72
    %v79 = vpack.c.b16 %v75, %v73
    %v116 = vunpack.c.l.b16 %v28
    %v117 = vunpack.c.l.b16 %v29
    %v118 = vunpack.c.l.b16 %v30
    %v119 = vunpack.c.l.b16 %v31
    %v120 = vunpack.c.l.b16 %v32
    %v121 = vunpack.c.l.b16 %v33
    %v122 = vunpack.c.l.b16 %v34
    %v123 = vunpack.c.l.b16 %v35
    %v124 = vunpack.c.l.b16 %v36
    %v125 = vunpack.c.l.b16 %v37
    %v126 = vunpack.c.l.b16 %v38
    %v127 = vunpack.c.l.b16 %v39
    %v128 = vunpack.c.l.b16 %v40
    %v129 = vunpack.c.l.b16 %v41
    %v130 = vunpack.c.l.b16 %v42
    %v131 = vunpack.c.l.b16 %v43
    %v132 = vunpack.c.l.b16 %v44
    %v133 = vunpack.c.l.b16 %v45
    %v134 = vunpack.c.l.b16 %v46
    %v135 = vunpack.c.l.b16 %v47
    %v136 = vunpack.c.l.b16 %v48
    %v137 = vunpack.c.l.b16 %v49
    %v138 = vunpack.c.l.b16 %v50
    %v139 = vunpack.c.l.b16 %v51
    %v140 = vunpack.c.l.b16 %v52
    %v141 = vunpack.c.l.b16 %v53
    %v142 = vunpack.c.l.b16 %v54
    %v143 = vunpack.c.l.b16 %v55
    %v144 = vunpack.c.l.b16 %v56
    %v145 = vunpack.c.l.b16 %v57
    %v146 = vunpack.c.l.b16 %v58
    %v147 = vunpack.c.l.b16 %v59
    %v148 = vpack.c.b16 %v117, %v116
    %v149 = vpack.c.b16 %v119, %v118
    %v150 = vpack.c.b16 %v121, %v120
    %v151 = vpack.c.b16 %v123, %v122
    %v152 = vpack.c.b16 %v125, %v124
    %v153 = vpack.c.b16 %v127, %v126
    %v154 = vpack.c.b16 %v129, %v128
    %v155 = vpack.c.b16 %v131, %v130
    %v156 = vpack.c.b16 %v133, %v132
    %v157 = vpack.c.b16 %v135, %v134
    %v158 = vpack.c.b16 %v137, %v136
    %v159 = vpack.c.b16 %v139, %v138
    %v160 = vpack.c.b16 %v141, %v140
    %v161 = vpack.c.b16 %v143, %v142
    %v162 = vpack.c.b16 %v145, %v144
    %v163 = vpack.c.b16 %v147, %v146
    %180 = vmatpush.bf16.msra.mxu0 %v155
    %181 = vmatpush.bf16.msra.mxu0 %v154
    %182 = vmatpush.bf16.msra.mxu0 %v153
    %183 = vmatpush.bf16.msra.mxu0 %v152
    %184 = vmatpush.bf16.msra.mxu0 %v151
    %185 = vmatpush.bf16.msra.mxu0 %v150
    %186 = vmatpush.bf16.msra.mxu0 %v149
    %187 = vmatpush.bf16.msra.mxu0 %v148
    %188 = vmatmul.bf16.gmra.mxu0 %v76
    %v189 = vpop.f32.mrf.mxu0
    %v190 = vadd.f32 %v62, %v189
    %v191 = vpop.f32.mrf.mxu0
    %v192 = vadd.f32 %v62, %v191
    %193 = vmatmul.bf16.gmra.mxu0 %v78
    %v194 = vpop.f32.mrf.mxu0
    %v195 = vadd.f32 %v62, %v194
    %v196 = vpop.f32.mrf.mxu0
    %v197 = vadd.f32 %v62, %v196
    %198 = vdwg.mxu0
    %199 = vmatpush.bf16.msra.mxu0 %v163
    %200 = vmatpush.bf16.msra.mxu0 %v162
    %201 = vmatpush.bf16.msra.mxu0 %v161
    %202 = vmatpush.bf16.msra.mxu0 %v160
    %203 = vmatpush.bf16.msra.mxu0 %v159
    %204 = vmatpush.bf16.msra.mxu0 %v158
    %205 = vmatpush.bf16.msra.mxu0 %v157
    %206 = vmatpush.bf16.msra.mxu0 %v156
    %207 = vmatmul.bf16.gmra.mxu0 %v77
    %v208 = vpop.f32.mrf.mxu0
    %v209 = vadd.f32 %v190, %v208
    %v210 = vpop.f32.mrf.mxu0
    %v211 = vadd.f32 %v192, %v210
    %212 = vmatmul.bf16.gmra.mxu0 %v79
    %v213 = vpop.f32.mrf.mxu0
    %v214 = vadd.f32 %v195, %v213
    %v215 = vpop.f32.mrf.mxu0
    %v216 = vadd.f32 %v197, %v215
    %217 = vdwg.mxu0
    %v218 = vld [vmem:[%s3] sm:$0xf]
    %v219 = vld [vmem:[%s3 + $0x4] sm:$0xf]
    %v220 = vld [vmem:[%s3 + $0x8] sm:$0xf]
    %v221 = vld [vmem:[%s3 + $0xc] sm:$0xf]
    %v222 = vunpack.c.l.bf16 %v218
    %v223 = vunpack.c.l.bf16 %v219
    %v224 = vunpack.c.l.bf16 %v220
    %v225 = vunpack.c.l.bf16 %v221
    %v226 = vadd.f32 %v209, %v222
    %v227 = vadd.f32 %v211, %v223
    %v228 = vadd.f32 %v214, %v224
    %v229 = vadd.f32 %v216, %v225
    %230 = vadd.xlane.f32.xlu0 %v226
    %v231 = vpop.xlane.xlu0 %230
    %232 = vadd.xlane.f32.xlu0 %v227
    %v233 = vpop.xlane.xlu0 %232
    %234 = vadd.xlane.f32.xlu0 %v228
    %v235 = vpop.xlane.xlu0 %234
    %236 = vadd.xlane.f32.xlu0 %v229
    %v237 = vpop.xlane.xlu0 %236
    %v238 = vrcp.pop 128.0
    %v239 = vmul.f32 128.0, %v238
    %v240 = vsub.f32 1.0, %v239
    %v241 = vmul.f32 %v238, %v240
    %v242 = vadd.f32 %v238, %v241
    %vm243 = vweird.f32 %v238
    %v244 = vsel %vm243, %v238, %v242
    %v245 = vmul.f32 %v231, %v244
    %v246 = vmul.f32 %v233, %v244
    %v247 = vmul.f32 %v235, %v244
    %v248 = vmul.f32 %v237, %v244
    %v249 = vsub.f32 %v226, %v245
    %v250 = vsub.f32 %v227, %v246
    %v251 = vsub.f32 %v228, %v247
    %v252 = vsub.f32 %v229, %v248
    %v253 = vmul.f32 %v249, %v249
    %v254 = vmul.f32 %v250, %v250
    %v255 = vmul.f32 %v251, %v251
    %v256 = vmul.f32 %v252, %v252
    %257 = vadd.xlane.f32.xlu0 %v253
    %v258 = vpop.xlane.xlu0 %257
    %259 = vadd.xlane.f32.xlu0 %v254
    %v260 = vpop.xlane.xlu0 %259
    %261 = vadd.xlane.f32.xlu0 %v255
    %v262 = vpop.xlane.xlu0 %261
    %263 = vadd.xlane.f32.xlu0 %v256
    %v264 = vpop.xlane.xlu0 %263
    %v265 = vmul.f32 %v258, %v244
    %v266 = vmul.f32 %v260, %v244
    %v267 = vmul.f32 %v262, %v244
    %v268 = vmul.f32 %v264, %v244
    %v269 = vadd.f32 %v265, 1e-05
    %v270 = vadd.f32 %v266, 1e-05
    %v271 = vadd.f32 %v267, 1e-05
    %v272 = vadd.f32 %v268, 1e-05
    %v273 = vrsqrt.pop %v269
    %v274 = vmul.f32 %v273, %v269
    %v275 = vmul.f32 %v274, %v273
    %v276 = vmul.f32 0.5, %v275
    %v277 = vsub.f32 1.5, %v276
    %v278 = vmul.f32 %v273, %v277
    %vm279 = vweird.f32 %v269
    %vm280 = vweird.f32 %v273
    %vm281 = vmor %vm279, %vm280
    %v282 = vsel %vm281, %v273, %v278
    %v283 = vrsqrt.pop %v270
    %v284 = vmul.f32 %v283, %v270
    %v285 = vmul.f32 %v284, %v283
    %v286 = vmul.f32 0.5, %v285
    %v287 = vsub.f32 1.5, %v286
    %v288 = vmul.f32 %v283, %v287
    %vm289 = vweird.f32 %v270
    %vm290 = vweird.f32 %v283
    %vm291 = vmor %vm289, %vm290
    %v292 = vsel %vm291, %v283, %v288
    %v293 = vrsqrt.pop %v271
    %v294 = vmul.f32 %v293, %v271
    %v295 = vmul.f32 %v294, %v293
    %v296 = vmul.f32 0.5, %v295
    %v297 = vsub.f32 1.5, %v296
    %v298 = vmul.f32 %v293, %v297
    %vm299 = vweird.f32 %v271
    %vm300 = vweird.f32 %v293
    %vm301 = vmor %vm299, %vm300
    %v302 = vsel %vm301, %v293, %v298
    %v303 = vrsqrt.pop %v272
    %v304 = vmul.f32 %v303, %v272
    %v305 = vmul.f32 %v304, %v303
    %v306 = vmul.f32 0.5, %v305
    %v307 = vsub.f32 1.5, %v306
    %v308 = vmul.f32 %v303, %v307
    %vm309 = vweird.f32 %v272
    %vm310 = vweird.f32 %v303
    %vm311 = vmor %vm309, %vm310
    %v312 = vsel %vm311, %v303, %v308
    %v313 = vmul.f32 %v249, %v282
    %v314 = vmul.f32 %v250, %v292
    %v315 = vmul.f32 %v251, %v302
    %v316 = vmul.f32 %v252, %v312
    %v317 = vld [vmem:[%s4] sm:$0x1]
    %v319 = vperm.slane %v317, 0
    %v321 = vmul.f32 %v313, %v319
    %v322 = vmul.f32 %v314, %v319
    %v323 = vmul.f32 %v315, %v319
    %v324 = vmul.f32 %v316, %v319
    %v325 = vld [vmem:[%s5] sm:$0x1]
    %v327 = vperm.slane %v325, 0
    %v329 = vadd.f32 %v321, %v327
    %v330 = vadd.f32 %v322, %v327
    %v331 = vadd.f32 %v323, %v327
    %v332 = vadd.f32 %v324, %v327
    %v333 = vpack.c.bf16 %v329, %v329
    %v334 = vpack.c.bf16 %v330, %v330
    %v335 = vpack.c.bf16 %v331, %v331
    %v336 = vpack.c.bf16 %v332, %v332
    %337 = vst [vmem:[#allocation2] sm:$0xf] %v333
    %338 = vst [vmem:[#allocation2 + $0x4] sm:$0xf] %v334
    %339 = vst [vmem:[#allocation2 + $0x8] sm:$0xf] %v335
    %340 = vst [vmem:[#allocation2 + $0xc] sm:$0xf] %v336
    // Predicated region
    $region26: #{nst_forward.107} parent=1 // pred_check
      _
    $region27: #{nst_forward.107} parent=1 // pred_check_branch
      %342 = sbr.rel (0) target = $region29
    $region28: #{nst_forward.107} parent=1 // pred_region
      %344 = vsyncadd [#allocation3], 0
      %s345 = sshll.u32 [#allocation2], 4
      %s346 = int_to_ptr.vmem [resolvable:$true] %s345
      %s347 = sshll.u32 %s6, 4
      %s348 = int_to_ptr.hbm [resolvable:$true] %s347
      %353 = dma.vmem_to_hbm [thread:$0]  %s346, 256, %s348, [#allocation3], 64, 64, 4
    $region29: #{nst_forward.107} parent=1 // pred_fallthru
      _
    // Predicated region
    $region30: #{nst_forward.107} parent=1 // pred_check
      _
    $region31: #{nst_forward.107} parent=1 // pred_check_branch
      %355 = sbr.rel (0) target = $region33
    $region32: #{nst_forward.107} parent=1 // pred_region
      %357 = dma.done [#allocation3], 256
    $region33: #{nst_forward.107} parent=1 // pred_fallthru
      _
    %358 = vsyncpa [#allocation3], 1

</llo_original>
